<compile_context>
chip_gen: v7x
topology: tpu7x:2x2x1
jax: 0.10.0
libtpu: 0.0.40
codegen_flags: <defaults>
</compile_context>

<pallas_src>
import numpy as np
import jax
import jax.numpy as jnp
from jax import lax
from jax.experimental import pallas as pl
from jax.experimental.pallas import tpu as pltpu

# Padded grid geometry per stage (grid width includes the 1-pixel zero border).
G1, G2, G3 = 30, 16, 9          # 28x28 -> 14x14 -> 7x7 interiors
L1, L2, L3 = 1024, 256, 128     # lane-padded flat grid sizes (multiples of 128)


def _gelu_exact(x):
    # PyTorch nn.GELU() default: exact erf formulation.
    return 0.5 * x * (1.0 + lax.erf(x * (1.0 / np.sqrt(2.0))))


def _tap(a, d):
    # Returns t with t[:, p] == a[:, (p + d) mod N] (N = lane width, multiple of 128).
    # Wrapped reads only ever land in border / lane-padding columns, which are masked out
    # downstream (zero selection columns / zero fc1-weight rows).
    n = a.shape[-1]
    s = (-d) % n
    if s == 0:
        return a
    return pltpu.roll(a, s, 1)


def _conv3x3_gelu_bn(a, wm, scale, shift, gw):
    # a: (Cin, N) zero-bordered padded-flat activation; wm: (Cout, 9*Cin); gw: grid width.
    taps = []
    for kh in range(3):
        for kw in range(3):
            taps.append(_tap(a, (kh - 1) * gw + (kw - 1)))
    p = jnp.concatenate(taps, axis=0)                                   # (9*Cin, N)
    y = jnp.dot(wm, p, preferred_element_type=jnp.float32)              # (Cout, N) lane-dense
    return _gelu_exact(y) * scale + shift                               # BN affine AFTER GELU


def _maxpool2x2(a, sel, gw):
    # 2x2 window max at every anchor, then one-hot matmul picks the stride-2 anchors and
    # re-lays them into the next (zero-bordered, lane-padded) grid.
    z = a
    for d in (1, gw, gw + 1):
        z = jnp.maximum(z, _tap(a, d))
    return jnp.dot(z, sel, preferred_element_type=jnp.float32)


def mnist_kernel(x_ref, wm1_ref, sc1_ref, sh1_ref, wm2_ref, sc2_ref, sh2_ref,
                 wm3_ref, sc3_ref, sh3_ref, s1_ref, s2_ref,
                 w1_ref, b1_ref, w2_ref, b2_ref, o_ref):
    a = x_ref[0]                                                              # (1, L1)
    a = _conv3x3_gelu_bn(a, wm1_ref[...], sc1_ref[...], sh1_ref[...], G1)     # (6, L1)
    a = _maxpool2x2(a, s1_ref[...], G1)                                       # (6, L2)
    a = _conv3x3_gelu_bn(a, wm2_ref[...], sc2_ref[...], sh2_ref[...], G2)     # (12, L2)
    a = _maxpool2x2(a, s2_ref[...], G2)                                       # (12, L3)
    a = _conv3x3_gelu_bn(a, wm3_ref[...], sc3_ref[...], sh3_ref[...], G3)     # (16, L3)

    # FC head.  torch's .view(-1, 16*7*7) flatten is channel-major; padded/garbage grid
    # positions hit all-zero rows of the padded fc1 weight and contribute nothing.
    f = jnp.concatenate([a[c:c + 1, :] for c in range(a.shape[0])], axis=1)   # (1, 16*L3)
    h = jnp.dot(f, w1_ref[...], preferred_element_type=jnp.float32) + b1_ref[...]
    h = _gelu_exact(h)
    # nn.Dropout(0.2) is identity at inference time.
    logits = jnp.dot(h, w2_ref[...], preferred_element_type=jnp.float32) + b2_ref[...]
    m = jnp.max(logits, axis=1, keepdims=True)
    lse = jnp.log(jnp.sum(jnp.exp(logits - m), axis=1, keepdims=True)) + m
    o_ref[0] = logits - lse


# ---------------- host-side (tiny, one-time) layout prep ----------------
def _pool_selection(n_out, gw_in, gw_out, rows, cols):
    # One-hot matrix: pooled anchor (2oi+1, 2oj+1) of the input grid -> interior position
    # (oi+1, oj+1) of the next padded grid; all other columns (borders / lane pad) are zero.
    s = np.zeros((rows, cols), np.float32)
    for oi in range(n_out):
        for oj in range(n_out):
            s[(2 * oi + 1) * gw_in + (2 * oj + 1), (oi + 1) * gw_out + (oj + 1)] = 1.0
    return s


def _prep_conv_weight(w):
    # (Cout, Cin, 3, 3) -> (Cout, 9*Cin) with (tap, cin) column ordering, tap = kh*3+kw.
    co, ci = w.shape[0], w.shape[1]
    return jnp.transpose(w, (0, 2, 3, 1)).reshape(co, 9 * ci)


def _prep_bn(stats, eps=1e-5):
    gamma, beta, mean, var = stats
    s = gamma / jnp.sqrt(var + eps)
    return s.reshape(-1, 1), (beta - mean * s).reshape(-1, 1)


def _prep_fc1(w_fc1):
    # (784, 24) -> (16*L3, 24): channel-major rows placed at interior positions of the 9x9
    # padded grid; zero rows for border and lane-padding positions.
    cols = w_fc1.shape[1]
    w4 = w_fc1.reshape(16, 7, 7, cols)
    wp = jnp.zeros((16, G3, G3, cols), jnp.float32)
    wp = wp.at[:, 1:8, 1:8, :].set(w4)
    wp = jnp.pad(wp.reshape(16, G3 * G3, cols), ((0, 0), (0, L3 - G3 * G3), (0, 0)))
    return wp.reshape(16 * L3, cols)


def mnist_forward(x, p):
    b = x.shape[0]
    wm1 = _prep_conv_weight(p["w_conv1"])
    wm2 = _prep_conv_weight(p["w_conv2"])
    wm3 = _prep_conv_weight(p["w_conv3"])
    sc1, sh1 = _prep_bn(p["bn1"])
    sc2, sh2 = _prep_bn(p["bn2"])
    sc3, sh3 = _prep_bn(p["bn3"])
    w1p = _prep_fc1(p["w_fc1"])
    s1 = jnp.asarray(_pool_selection(14, G1, G2, L1, L2))
    s2 = jnp.asarray(_pool_selection(7, G2, G3, L2, L3))

    # Input (B,1,28,28) -> zero-bordered 30x30 grid, flattened and lane-padded to L1.
    xg = jnp.pad(x[:, 0], ((0, 0), (1, 1), (1, 1))).reshape(b, G1 * G1)
    xg = jnp.pad(xg, ((0, 0), (0, L1 - G1 * G1))).reshape(b, 1, L1)

    full = lambda a: pl.BlockSpec(a.shape, lambda i: (0,) * a.ndim)
    out = pl.pallas_call(
        mnist_kernel,
        out_shape=jax.ShapeDtypeStruct((b, 1, 10), jnp.float32),
        grid=(b,),
        in_specs=[
            pl.BlockSpec((1, 1, L1), lambda i: (i, 0, 0)),
            full(wm1), full(sc1), full(sh1),
            full(wm2), full(sc2), full(sh2),
            full(wm3), full(sc3), full(sh3),
            full(s1), full(s2),
            full(w1p), full(p["b_fc1"]), full(p["w_fc2"]), full(p["b_fc2"]),
        ],
        out_specs=pl.BlockSpec((1, 1, 10), lambda i: (i, 0, 0)),
        compiler_params=pltpu.CompilerParams(dimension_semantics=("parallel",)),
    )(xg, wm1, sc1, sh1, wm2, sc2, sh2, wm3, sc3, sh3, s1, s2,
      w1p, p["b_fc1"], p["w_fc2"], p["b_fc2"])
    return out.reshape(b, 10)


# ---------------- Pure-JAX reference (for correctness check) ----------------
def reference_forward(x, p):
    def conv(x, w):
        return lax.conv_general_dilated(x, w, (1, 1), ((1, 1), (1, 1)),
                                        dimension_numbers=("NCHW", "OIHW", "NCHW"))

    def bn(x, stats):
        gamma, beta, mean, var = stats
        s = gamma / jnp.sqrt(var + 1e-5)
        return x * s[None, :, None, None] + (beta - mean * s)[None, :, None, None]

    def pool(x):
        b, c, h, w = x.shape
        return x.reshape(b, c, h // 2, 2, w // 2, 2).max(axis=(3, 5))

    g = lambda v: jax.nn.gelu(v, approximate=False)

    x = pool(bn(g(conv(x, p["w_conv1"])), p["bn1"]))
    x = pool(bn(g(conv(x, p["w_conv2"])), p["bn2"]))
    x = bn(g(conv(x, p["w_conv3"])), p["bn3"])
    x = x.reshape(x.shape[0], -1)
    h = g(x @ p["w_fc1"] + p["b_fc1"][0])
    logits = h @ p["w_fc2"] + p["b_fc2"][0]
    return jax.nn.log_softmax(logits, axis=1)


def init_params(key):
    ks = jax.random.split(key, 16)
    f32 = jnp.float32

    def bn_stats(k, c):
        k1, k2, k3, k4 = jax.random.split(k, 4)
        gamma = 1.0 + 0.1 * jax.random.normal(k1, (c,), f32)
        beta = 0.1 * jax.random.normal(k2, (c,), f32)
        mean = 0.1 * jax.random.normal(k3, (c,), f32)
        var = jnp.abs(jax.random.normal(k4, (c,), f32)) + 0.5
        return (gamma, beta, mean, var)

    return {
        "w_conv1": 0.2 * jax.random.normal(ks[0], (6, 1, 3, 3), f32),
        "w_conv2": 0.2 * jax.random.normal(ks[1], (12, 6, 3, 3), f32),
        "w_conv3": 0.2 * jax.random.normal(ks[2], (16, 12, 3, 3), f32),
        "bn1": bn_stats(ks[3], 6),
        "bn2": bn_stats(ks[4], 12),
        "bn3": bn_stats(ks[5], 16),
        "w_fc1": 0.05 * jax.random.normal(ks[6], (16 * 7 * 7, 24), f32),
        "b_fc1": 0.05 * jax.random.normal(ks[7], (1, 24), f32),
        "w_fc2": 0.1 * jax.random.normal(ks[8], (24, 10), f32),
        "b_fc2": 0.1 * jax.random.normal(ks[9], (1, 10), f32),
    }


if __name__ == "__main__":
    key = jax.random.PRNGKey(0)
    kx, kp = jax.random.split(key)
    # MNIST-shaped input (small batch): (B, 1, 28, 28)
    x = jax.random.normal(kx, (2, 1, 28, 28), jnp.float32)
    params = init_params(kp)

    out = jax.block_until_ready(jax.jit(mnist_forward)(x, params))

    with jax.default_matmul_precision("float32"):
        ref = jax.block_until_ready(reference_forward(x, params))

    np.testing.assert_allclose(np.asarray(out), np.asarray(ref), rtol=2e-3, atol=2e-3)
    assert out.shape == (2, 10)

    print("KERNEL_OK")
</pallas_src>

<mosaic_0001>
module attributes {stable_mosaic.version = 11 : i64} {
  func.func @mnist_kernel(%arg0: i32, %arg1: memref<1x1x1024xf32, #tpu.memory_space<vmem>>, %arg2: memref<6x9xf32, #tpu.memory_space<vmem>>, %arg3: memref<6x1xf32, #tpu.memory_space<vmem>>, %arg4: memref<6x1xf32, #tpu.memory_space<vmem>>, %arg5: memref<12x54xf32, #tpu.memory_space<vmem>>, %arg6: memref<12x1xf32, #tpu.memory_space<vmem>>, %arg7: memref<12x1xf32, #tpu.memory_space<vmem>>, %arg8: memref<16x108xf32, #tpu.memory_space<vmem>>, %arg9: memref<16x1xf32, #tpu.memory_space<vmem>>, %arg10: memref<16x1xf32, #tpu.memory_space<vmem>>, %arg11: memref<1024x256xf32, #tpu.memory_space<vmem>>, %arg12: memref<256x128xf32, #tpu.memory_space<vmem>>, %arg13: memref<2048x24xf32, #tpu.memory_space<vmem>>, %arg14: memref<1x24xf32, #tpu.memory_space<vmem>>, %arg15: memref<24x10xf32, #tpu.memory_space<vmem>>, %arg16: memref<1x10xf32, #tpu.memory_space<vmem>>, %arg17: memref<1x1x10xf32, #tpu.memory_space<vmem>>) attributes {dimension_semantics = [#tpu.dimension_semantics<parallel>], iteration_bounds = array<i64: 2>, scalar_prefetch = 0 : i64, scratch_operands = 0 : i64, tpu.core_type = #tpu.core_type<tc>, window_params = [{transform_indices = @transform_0, window_bounds = array<i64: 1, 1, 1024>}, {pipeline_mode = #tpu.pipeline_mode<synchronous>, transform_indices = @transform_1, window_bounds = array<i64: 6, 9>}, {pipeline_mode = #tpu.pipeline_mode<synchronous>, transform_indices = @transform_2, window_bounds = array<i64: 6, 1>}, {pipeline_mode = #tpu.pipeline_mode<synchronous>, transform_indices = @transform_3, window_bounds = array<i64: 6, 1>}, {pipeline_mode = #tpu.pipeline_mode<synchronous>, transform_indices = @transform_4, window_bounds = array<i64: 12, 54>}, {pipeline_mode = #tpu.pipeline_mode<synchronous>, transform_indices = @transform_5, window_bounds = array<i64: 12, 1>}, {pipeline_mode = #tpu.pipeline_mode<synchronous>, transform_indices = @transform_6, window_bounds = array<i64: 12, 1>}, {pipeline_mode = #tpu.pipeline_mode<synchronous>, transform_indices = @transform_7, window_bounds = array<i64: 16, 108>}, {pipeline_mode = #tpu.pipeline_mode<synchronous>, transform_indices = @transform_8, window_bounds = array<i64: 16, 1>}, {pipeline_mode = #tpu.pipeline_mode<synchronous>, transform_indices = @transform_9, window_bounds = array<i64: 16, 1>}, {pipeline_mode = #tpu.pipeline_mode<synchronous>, transform_indices = @transform_10, window_bounds = array<i64: 1024, 256>}, {pipeline_mode = #tpu.pipeline_mode<synchronous>, transform_indices = @transform_11, window_bounds = array<i64: 256, 128>}, {pipeline_mode = #tpu.pipeline_mode<synchronous>, transform_indices = @transform_12, window_bounds = array<i64: 2048, 24>}, {pipeline_mode = #tpu.pipeline_mode<synchronous>, transform_indices = @transform_13, window_bounds = array<i64: 1, 24>}, {pipeline_mode = #tpu.pipeline_mode<synchronous>, transform_indices = @transform_14, window_bounds = array<i64: 24, 10>}, {pipeline_mode = #tpu.pipeline_mode<synchronous>, transform_indices = @transform_15, window_bounds = array<i64: 1, 10>}, {transform_indices = @transform_16, window_bounds = array<i64: 1, 1, 10>}]} {
    %c0 = arith.constant 0 : index
    %c0_0 = arith.constant 0 : index
    %c0_1 = arith.constant 0 : index
    %0 = vector.load %arg1[%c0, %c0_0, %c0_1] : memref<1x1x1024xf32, #tpu.memory_space<vmem>>, vector<1x1x1024xf32>
    %1 = vector.shape_cast %0 : vector<1x1x1024xf32> to vector<1x1024xf32>
    %c0_2 = arith.constant 0 : index
    %c0_3 = arith.constant 0 : index
    %2 = vector.load %arg2[%c0_2, %c0_3] : memref<6x9xf32, #tpu.memory_space<vmem>>, vector<6x9xf32>
    %c0_4 = arith.constant 0 : index
    %c0_5 = arith.constant 0 : index
    %3 = vector.load %arg3[%c0_4, %c0_5] : memref<6x1xf32, #tpu.memory_space<vmem>>, vector<6x1xf32>
    %c0_6 = arith.constant 0 : index
    %c0_7 = arith.constant 0 : index
    %4 = vector.load %arg4[%c0_6, %c0_7] : memref<6x1xf32, #tpu.memory_space<vmem>>, vector<6x1xf32>
    %c31_i32 = arith.constant 31 : i32
    %5 = tpu.dynamic_rotate %1 by %c31_i32 dim 1 : vector<1x1024xf32>, i32 -> vector<1x1024xf32>
    %c30_i32 = arith.constant 30 : i32
    %6 = tpu.dynamic_rotate %1 by %c30_i32 dim 1 : vector<1x1024xf32>, i32 -> vector<1x1024xf32>
    %c29_i32 = arith.constant 29 : i32
    %7 = tpu.dynamic_rotate %1 by %c29_i32 dim 1 : vector<1x1024xf32>, i32 -> vector<1x1024xf32>
    %c1_i32 = arith.constant 1 : i32
    %8 = tpu.dynamic_rotate %1 by %c1_i32 dim 1 : vector<1x1024xf32>, i32 -> vector<1x1024xf32>
    %c1023_i32 = arith.constant 1023 : i32
    %9 = tpu.dynamic_rotate %1 by %c1023_i32 dim 1 : vector<1x1024xf32>, i32 -> vector<1x1024xf32>
    %c995_i32 = arith.constant 995 : i32
    %10 = tpu.dynamic_rotate %1 by %c995_i32 dim 1 : vector<1x1024xf32>, i32 -> vector<1x1024xf32>
    %c994_i32 = arith.constant 994 : i32
    %11 = tpu.dynamic_rotate %1 by %c994_i32 dim 1 : vector<1x1024xf32>, i32 -> vector<1x1024xf32>
    %c993_i32 = arith.constant 993 : i32
    %12 = tpu.dynamic_rotate %1 by %c993_i32 dim 1 : vector<1x1024xf32>, i32 -> vector<1x1024xf32>
    %13 = tpu.concatenate %5, %6, %7, %8, %1, %9, %10, %11, %12 in 0 : vector<1x1024xf32>, vector<1x1024xf32>, vector<1x1024xf32>, vector<1x1024xf32>, vector<1x1024xf32>, vector<1x1024xf32>, vector<1x1024xf32>, vector<1x1024xf32>, vector<1x1024xf32> -> vector<9x1024xf32>
    %cst = arith.constant dense<0.000000e+00> : vector<6x1024xf32>
    %14 = tpu.matmul %2, %13, %cst {dimension_numbers = #tpu.dot_dimension_numbers<[1], [0], [0], [1], [0, 0, 1, 1], [], []>} : vector<6x9xf32>, vector<9x1024xf32>, vector<6x1024xf32> -> vector<6x1024xf32>
    %cst_8 = arith.constant 5.000000e-01 : f32
    %15 = vector.broadcast %cst_8 : f32 to vector<6x1024xf32>
    %16 = arith.mulf %15, %14 : vector<6x1024xf32>
    %cst_9 = arith.constant 0.707106769 : f32
    %17 = vector.broadcast %cst_9 : f32 to vector<6x1024xf32>
    %18 = arith.mulf %14, %17 : vector<6x1024xf32>
    %19 = math.erf %18 : vector<6x1024xf32>
    %cst_10 = arith.constant 1.000000e+00 : f32
    %20 = vector.broadcast %cst_10 : f32 to vector<6x1024xf32>
    %21 = arith.addf %20, %19 : vector<6x1024xf32>
    %22 = arith.mulf %16, %21 : vector<6x1024xf32>
    %23 = vector.broadcast %3 : vector<6x1xf32> to vector<6x1024xf32>
    %24 = arith.mulf %22, %23 : vector<6x1024xf32>
    %25 = vector.broadcast %4 : vector<6x1xf32> to vector<6x1024xf32>
    %26 = arith.addf %24, %25 : vector<6x1024xf32>
    %c0_11 = arith.constant 0 : index
    %c0_12 = arith.constant 0 : index
    %27 = vector.load %arg11[%c0_11, %c0_12] : memref<1024x256xf32, #tpu.memory_space<vmem>>, vector<1024x256xf32>
    %c1023_i32_13 = arith.constant 1023 : i32
    %28 = tpu.dynamic_rotate %26 by %c1023_i32_13 dim 1 : vector<6x1024xf32>, i32 -> vector<6x1024xf32>
    %29 = arith.maximumf %26, %28 : vector<6x1024xf32>
    %c994_i32_14 = arith.constant 994 : i32
    %30 = tpu.dynamic_rotate %26 by %c994_i32_14 dim 1 : vector<6x1024xf32>, i32 -> vector<6x1024xf32>
    %31 = arith.maximumf %29, %30 : vector<6x1024xf32>
    %c993_i32_15 = arith.constant 993 : i32
    %32 = tpu.dynamic_rotate %26 by %c993_i32_15 dim 1 : vector<6x1024xf32>, i32 -> vector<6x1024xf32>
    %33 = arith.maximumf %31, %32 : vector<6x1024xf32>
    %cst_16 = arith.constant dense<0.000000e+00> : vector<6x256xf32>
    %34 = tpu.matmul %33, %27, %cst_16 {dimension_numbers = #tpu.dot_dimension_numbers<[1], [0], [0], [1], [0, 0, 1, 1], [], []>} : vector<6x1024xf32>, vector<1024x256xf32>, vector<6x256xf32> -> vector<6x256xf32>
    %c0_17 = arith.constant 0 : index
    %c0_18 = arith.constant 0 : index
    %35 = vector.load %arg5[%c0_17, %c0_18] : memref<12x54xf32, #tpu.memory_space<vmem>>, vector<12x54xf32>
    %c0_19 = arith.constant 0 : index
    %c0_20 = arith.constant 0 : index
    %36 = vector.load %arg6[%c0_19, %c0_20] : memref<12x1xf32, #tpu.memory_space<vmem>>, vector<12x1xf32>
    %c0_21 = arith.constant 0 : index
    %c0_22 = arith.constant 0 : index
    %37 = vector.load %arg7[%c0_21, %c0_22] : memref<12x1xf32, #tpu.memory_space<vmem>>, vector<12x1xf32>
    %c17_i32 = arith.constant 17 : i32
    %38 = tpu.dynamic_rotate %34 by %c17_i32 dim 1 : vector<6x256xf32>, i32 -> vector<6x256xf32>
    %c16_i32 = arith.constant 16 : i32
    %39 = tpu.dynamic_rotate %34 by %c16_i32 dim 1 : vector<6x256xf32>, i32 -> vector<6x256xf32>
    %c15_i32 = arith.constant 15 : i32
    %40 = tpu.dynamic_rotate %34 by %c15_i32 dim 1 : vector<6x256xf32>, i32 -> vector<6x256xf32>
    %c1_i32_23 = arith.constant 1 : i32
    %41 = tpu.dynamic_rotate %34 by %c1_i32_23 dim 1 : vector<6x256xf32>, i32 -> vector<6x256xf32>
    %c255_i32 = arith.constant 255 : i32
    %42 = tpu.dynamic_rotate %34 by %c255_i32 dim 1 : vector<6x256xf32>, i32 -> vector<6x256xf32>
    %c241_i32 = arith.constant 241 : i32
    %43 = tpu.dynamic_rotate %34 by %c241_i32 dim 1 : vector<6x256xf32>, i32 -> vector<6x256xf32>
    %c240_i32 = arith.constant 240 : i32
    %44 = tpu.dynamic_rotate %34 by %c240_i32 dim 1 : vector<6x256xf32>, i32 -> vector<6x256xf32>
    %c239_i32 = arith.constant 239 : i32
    %45 = tpu.dynamic_rotate %34 by %c239_i32 dim 1 : vector<6x256xf32>, i32 -> vector<6x256xf32>
    %46 = tpu.concatenate %38, %39, %40, %41, %34, %42, %43, %44, %45 in 0 : vector<6x256xf32>, vector<6x256xf32>, vector<6x256xf32>, vector<6x256xf32>, vector<6x256xf32>, vector<6x256xf32>, vector<6x256xf32>, vector<6x256xf32>, vector<6x256xf32> -> vector<54x256xf32>
    %cst_24 = arith.constant dense<0.000000e+00> : vector<12x256xf32>
    %47 = tpu.matmul %35, %46, %cst_24 {dimension_numbers = #tpu.dot_dimension_numbers<[1], [0], [0], [1], [0, 0, 1, 1], [], []>} : vector<12x54xf32>, vector<54x256xf32>, vector<12x256xf32> -> vector<12x256xf32>
    %cst_25 = arith.constant 5.000000e-01 : f32
    %48 = vector.broadcast %cst_25 : f32 to vector<12x256xf32>
    %49 = arith.mulf %48, %47 : vector<12x256xf32>
    %cst_26 = arith.constant 0.707106769 : f32
    %50 = vector.broadcast %cst_26 : f32 to vector<12x256xf32>
    %51 = arith.mulf %47, %50 : vector<12x256xf32>
    %52 = math.erf %51 : vector<12x256xf32>
    %cst_27 = arith.constant 1.000000e+00 : f32
    %53 = vector.broadcast %cst_27 : f32 to vector<12x256xf32>
    %54 = arith.addf %53, %52 : vector<12x256xf32>
    %55 = arith.mulf %49, %54 : vector<12x256xf32>
    %56 = vector.broadcast %36 : vector<12x1xf32> to vector<12x256xf32>
    %57 = arith.mulf %55, %56 : vector<12x256xf32>
    %58 = vector.broadcast %37 : vector<12x1xf32> to vector<12x256xf32>
    %59 = arith.addf %57, %58 : vector<12x256xf32>
    %c0_28 = arith.constant 0 : index
    %c0_29 = arith.constant 0 : index
    %60 = vector.load %arg12[%c0_28, %c0_29] : memref<256x128xf32, #tpu.memory_space<vmem>>, vector<256x128xf32>
    %c255_i32_30 = arith.constant 255 : i32
    %61 = tpu.dynamic_rotate %59 by %c255_i32_30 dim 1 : vector<12x256xf32>, i32 -> vector<12x256xf32>
    %62 = arith.maximumf %59, %61 : vector<12x256xf32>
    %c240_i32_31 = arith.constant 240 : i32
    %63 = tpu.dynamic_rotate %59 by %c240_i32_31 dim 1 : vector<12x256xf32>, i32 -> vector<12x256xf32>
    %64 = arith.maximumf %62, %63 : vector<12x256xf32>
    %c239_i32_32 = arith.constant 239 : i32
    %65 = tpu.dynamic_rotate %59 by %c239_i32_32 dim 1 : vector<12x256xf32>, i32 -> vector<12x256xf32>
    %66 = arith.maximumf %64, %65 : vector<12x256xf32>
    %cst_33 = arith.constant dense<0.000000e+00> : vector<12x128xf32>
    %67 = tpu.matmul %66, %60, %cst_33 {dimension_numbers = #tpu.dot_dimension_numbers<[1], [0], [0], [1], [0, 0, 1, 1], [], []>} : vector<12x256xf32>, vector<256x128xf32>, vector<12x128xf32> -> vector<12x128xf32>
    %c0_34 = arith.constant 0 : index
    %c0_35 = arith.constant 0 : index
    %68 = vector.load %arg8[%c0_34, %c0_35] : memref<16x108xf32, #tpu.memory_space<vmem>>, vector<16x108xf32>
    %c0_36 = arith.constant 0 : index
    %c0_37 = arith.constant 0 : index
    %69 = vector.load %arg9[%c0_36, %c0_37] : memref<16x1xf32, #tpu.memory_space<vmem>>, vector<16x1xf32>
    %c0_38 = arith.constant 0 : index
    %c0_39 = arith.constant 0 : index
    %70 = vector.load %arg10[%c0_38, %c0_39] : memref<16x1xf32, #tpu.memory_space<vmem>>, vector<16x1xf32>
    %c10_i32 = arith.constant 10 : i32
    %71 = tpu.dynamic_rotate %67 by %c10_i32 dim 1 : vector<12x128xf32>, i32 -> vector<12x128xf32>
    %c9_i32 = arith.constant 9 : i32
    %72 = tpu.dynamic_rotate %67 by %c9_i32 dim 1 : vector<12x128xf32>, i32 -> vector<12x128xf32>
    %c8_i32 = arith.constant 8 : i32
    %73 = tpu.dynamic_rotate %67 by %c8_i32 dim 1 : vector<12x128xf32>, i32 -> vector<12x128xf32>
    %c1_i32_40 = arith.constant 1 : i32
    %74 = tpu.dynamic_rotate %67 by %c1_i32_40 dim 1 : vector<12x128xf32>, i32 -> vector<12x128xf32>
    %c127_i32 = arith.constant 127 : i32
    %75 = tpu.dynamic_rotate %67 by %c127_i32 dim 1 : vector<12x128xf32>, i32 -> vector<12x128xf32>
    %c120_i32 = arith.constant 120 : i32
    %76 = tpu.dynamic_rotate %67 by %c120_i32 dim 1 : vector<12x128xf32>, i32 -> vector<12x128xf32>
    %c119_i32 = arith.constant 119 : i32
    %77 = tpu.dynamic_rotate %67 by %c119_i32 dim 1 : vector<12x128xf32>, i32 -> vector<12x128xf32>
    %c118_i32 = arith.constant 118 : i32
    %78 = tpu.dynamic_rotate %67 by %c118_i32 dim 1 : vector<12x128xf32>, i32 -> vector<12x128xf32>
    %79 = tpu.concatenate %71, %72, %73, %74, %67, %75, %76, %77, %78 in 0 : vector<12x128xf32>, vector<12x128xf32>, vector<12x128xf32>, vector<12x128xf32>, vector<12x128xf32>, vector<12x128xf32>, vector<12x128xf32>, vector<12x128xf32>, vector<12x128xf32> -> vector<108x128xf32>
    %cst_41 = arith.constant dense<0.000000e+00> : vector<16x128xf32>
    %80 = tpu.matmul %68, %79, %cst_41 {dimension_numbers = #tpu.dot_dimension_numbers<[1], [0], [0], [1], [0, 0, 1, 1], [], []>} : vector<16x108xf32>, vector<108x128xf32>, vector<16x128xf32> -> vector<16x128xf32>
    %cst_42 = arith.constant 5.000000e-01 : f32
    %81 = vector.broadcast %cst_42 : f32 to vector<16x128xf32>
    %82 = arith.mulf %81, %80 : vector<16x128xf32>
    %cst_43 = arith.constant 0.707106769 : f32
    %83 = vector.broadcast %cst_43 : f32 to vector<16x128xf32>
    %84 = arith.mulf %80, %83 : vector<16x128xf32>
    %85 = math.erf %84 : vector<16x128xf32>
    %cst_44 = arith.constant 1.000000e+00 : f32
    %86 = vector.broadcast %cst_44 : f32 to vector<16x128xf32>
    %87 = arith.addf %86, %85 : vector<16x128xf32>
    %88 = arith.mulf %82, %87 : vector<16x128xf32>
    %89 = vector.broadcast %69 : vector<16x1xf32> to vector<16x128xf32>
    %90 = arith.mulf %88, %89 : vector<16x128xf32>
    %91 = vector.broadcast %70 : vector<16x1xf32> to vector<16x128xf32>
    %92 = arith.addf %90, %91 : vector<16x128xf32>
    %93 = vector.extract_strided_slice %92 {offsets = [0, 0], sizes = [1, 128], strides = [1, 1]} : vector<16x128xf32> to vector<1x128xf32>
    %94 = vector.extract_strided_slice %92 {offsets = [1, 0], sizes = [1, 128], strides = [1, 1]} : vector<16x128xf32> to vector<1x128xf32>
    %95 = vector.extract_strided_slice %92 {offsets = [2, 0], sizes = [1, 128], strides = [1, 1]} : vector<16x128xf32> to vector<1x128xf32>
    %96 = vector.extract_strided_slice %92 {offsets = [3, 0], sizes = [1, 128], strides = [1, 1]} : vector<16x128xf32> to vector<1x128xf32>
    %97 = vector.extract_strided_slice %92 {offsets = [4, 0], sizes = [1, 128], strides = [1, 1]} : vector<16x128xf32> to vector<1x128xf32>
    %98 = vector.extract_strided_slice %92 {offsets = [5, 0], sizes = [1, 128], strides = [1, 1]} : vector<16x128xf32> to vector<1x128xf32>
    %99 = vector.extract_strided_slice %92 {offsets = [6, 0], sizes = [1, 128], strides = [1, 1]} : vector<16x128xf32> to vector<1x128xf32>
    %100 = vector.extract_strided_slice %92 {offsets = [7, 0], sizes = [1, 128], strides = [1, 1]} : vector<16x128xf32> to vector<1x128xf32>
    %101 = vector.extract_strided_slice %92 {offsets = [8, 0], sizes = [1, 128], strides = [1, 1]} : vector<16x128xf32> to vector<1x128xf32>
    %102 = vector.extract_strided_slice %92 {offsets = [9, 0], sizes = [1, 128], strides = [1, 1]} : vector<16x128xf32> to vector<1x128xf32>
    %103 = vector.extract_strided_slice %92 {offsets = [10, 0], sizes = [1, 128], strides = [1, 1]} : vector<16x128xf32> to vector<1x128xf32>
    %104 = vector.extract_strided_slice %92 {offsets = [11, 0], sizes = [1, 128], strides = [1, 1]} : vector<16x128xf32> to vector<1x128xf32>
    %105 = vector.extract_strided_slice %92 {offsets = [12, 0], sizes = [1, 128], strides = [1, 1]} : vector<16x128xf32> to vector<1x128xf32>
    %106 = vector.extract_strided_slice %92 {offsets = [13, 0], sizes = [1, 128], strides = [1, 1]} : vector<16x128xf32> to vector<1x128xf32>
    %107 = vector.extract_strided_slice %92 {offsets = [14, 0], sizes = [1, 128], strides = [1, 1]} : vector<16x128xf32> to vector<1x128xf32>
    %108 = vector.extract_strided_slice %92 {offsets = [15, 0], sizes = [1, 128], strides = [1, 1]} : vector<16x128xf32> to vector<1x128xf32>
    %109 = tpu.concatenate %93, %94, %95, %96, %97, %98, %99, %100, %101, %102, %103, %104, %105, %106, %107, %108 in 1 : vector<1x128xf32>, vector<1x128xf32>, vector<1x128xf32>, vector<1x128xf32>, vector<1x128xf32>, vector<1x128xf32>, vector<1x128xf32>, vector<1x128xf32>, vector<1x128xf32>, vector<1x128xf32>, vector<1x128xf32>, vector<1x128xf32>, vector<1x128xf32>, vector<1x128xf32>, vector<1x128xf32>, vector<1x128xf32> -> vector<1x2048xf32>
    %c0_45 = arith.constant 0 : index
    %c0_46 = arith.constant 0 : index
    %110 = vector.load %arg13[%c0_45, %c0_46] : memref<2048x24xf32, #tpu.memory_space<vmem>>, vector<2048x24xf32>
    %cst_47 = arith.constant dense<0.000000e+00> : vector<1x24xf32>
    %111 = tpu.matmul %109, %110, %cst_47 {dimension_numbers = #tpu.dot_dimension_numbers<[1], [0], [0], [1], [0, 0, 1, 1], [], []>} : vector<1x2048xf32>, vector<2048x24xf32>, vector<1x24xf32> -> vector<1x24xf32>
    %c0_48 = arith.constant 0 : index
    %c0_49 = arith.constant 0 : index
    %112 = vector.load %arg14[%c0_48, %c0_49] : memref<1x24xf32, #tpu.memory_space<vmem>>, vector<1x24xf32>
    %113 = arith.addf %111, %112 : vector<1x24xf32>
    %cst_50 = arith.constant 5.000000e-01 : f32
    %114 = vector.broadcast %cst_50 : f32 to vector<1x24xf32>
    %115 = arith.mulf %114, %113 : vector<1x24xf32>
    %cst_51 = arith.constant 0.707106769 : f32
    %116 = vector.broadcast %cst_51 : f32 to vector<1x24xf32>
    %117 = arith.mulf %113, %116 : vector<1x24xf32>
    %118 = math.erf %117 : vector<1x24xf32>
    %cst_52 = arith.constant 1.000000e+00 : f32
    %119 = vector.broadcast %cst_52 : f32 to vector<1x24xf32>
    %120 = arith.addf %119, %118 : vector<1x24xf32>
    %121 = arith.mulf %115, %120 : vector<1x24xf32>
    %c0_53 = arith.constant 0 : index
    %c0_54 = arith.constant 0 : index
    %122 = vector.load %arg15[%c0_53, %c0_54] : memref<24x10xf32, #tpu.memory_space<vmem>>, vector<24x10xf32>
    %cst_55 = arith.constant dense<0.000000e+00> : vector<1x10xf32>
    %123 = tpu.matmul %121, %122, %cst_55 {dimension_numbers = #tpu.dot_dimension_numbers<[1], [0], [0], [1], [0, 0, 1, 1], [], []>} : vector<1x24xf32>, vector<24x10xf32>, vector<1x10xf32> -> vector<1x10xf32>
    %c0_56 = arith.constant 0 : index
    %c0_57 = arith.constant 0 : index
    %124 = vector.load %arg16[%c0_56, %c0_57] : memref<1x10xf32, #tpu.memory_space<vmem>>, vector<1x10xf32>
    %125 = arith.addf %123, %124 : vector<1x10xf32>
    %cst_58 = arith.constant dense<0xFF800000> : vector<1xf32>
    %126 = vector.multi_reduction <maximumf>, %125, %cst_58 [1] : vector<1x10xf32> to vector<1xf32>
    %127 = vector.shape_cast %126 : vector<1xf32> to vector<1x1xf32>
    %128 = vector.broadcast %127 : vector<1x1xf32> to vector<1x10xf32>
    %129 = arith.subf %125, %128 : vector<1x10xf32>
    %130 = math.exp %129 : vector<1x10xf32>
    %cst_59 = arith.constant dense<0.000000e+00> : vector<1xf32>
    %131 = vector.multi_reduction <add>, %130, %cst_59 [1] : vector<1x10xf32> to vector<1xf32>
    %132 = vector.shape_cast %131 : vector<1xf32> to vector<1x1xf32>
    %133 = math.log %132 : vector<1x1xf32>
    %134 = arith.addf %133, %127 : vector<1x1xf32>
    %135 = vector.broadcast %134 : vector<1x1xf32> to vector<1x10xf32>
    %136 = arith.subf %125, %135 : vector<1x10xf32>
    %c0_60 = arith.constant 0 : index
    %c0_61 = arith.constant 0 : index
    %c0_62 = arith.constant 0 : index
    %137 = vector.load %arg17[%c0_60, %c0_61, %c0_62] : memref<1x1x10xf32, #tpu.memory_space<vmem>>, vector<1x1x10xf32>
    %138 = vector.shape_cast %137 : vector<1x1x10xf32> to vector<1x10xf32>
    %139 = vector.shape_cast %136 : vector<1x10xf32> to vector<1x1x10xf32>
    tpu.vector_store %arg17[%c0_60, %c0_61, %c0_62], %139 {strides = array<i32>} : memref<1x1x10xf32, #tpu.memory_space<vmem>>, vector<1x1x10xf32>,
    return
  }
  func.func @transform_0(%arg0: i32) -> (i32, i32, i32) {
    %c0_i32 = arith.constant 0 : i32
    %c0_i32_0 = arith.constant 0 : i32
    %c0_i32_1 = arith.constant 0 : i32
    return %arg0, %c0_i32, %c0_i32_0 : i32, i32, i32
  }
  func.func @transform_1(%arg0: i32) -> (i32, i32) {
    %c0_i32 = arith.constant 0 : i32
    %c0_i32_0 = arith.constant 0 : i32
    %c0_i32_1 = arith.constant 0 : i32
    return %c0_i32, %c0_i32_0 : i32, i32
  }
  func.func @transform_2(%arg0: i32) -> (i32, i32) {
    %c0_i32 = arith.constant 0 : i32
    %c0_i32_0 = arith.constant 0 : i32
    %c0_i32_1 = arith.constant 0 : i32
    return %c0_i32, %c0_i32_0 : i32, i32
  }
  func.func @transform_3(%arg0: i32) -> (i32, i32) {
    %c0_i32 = arith.constant 0 : i32
    %c0_i32_0 = arith.constant 0 : i32
    %c0_i32_1 = arith.constant 0 : i32
    return %c0_i32, %c0_i32_0 : i32, i32
  }
  func.func @transform_4(%arg0: i32) -> (i32, i32) {
    %c0_i32 = arith.constant 0 : i32
    %c0_i32_0 = arith.constant 0 : i32
    %c0_i32_1 = arith.constant 0 : i32
    return %c0_i32, %c0_i32_0 : i32, i32
  }
  func.func @transform_5(%arg0: i32) -> (i32, i32) {
    %c0_i32 = arith.constant 0 : i32
    %c0_i32_0 = arith.constant 0 : i32
    %c0_i32_1 = arith.constant 0 : i32
    return %c0_i32, %c0_i32_0 : i32, i32
  }
  func.func @transform_6(%arg0: i32) -> (i32, i32) {
    %c0_i32 = arith.constant 0 : i32
    %c0_i32_0 = arith.constant 0 : i32
    %c0_i32_1 = arith.constant 0 : i32
    return %c0_i32, %c0_i32_0 : i32, i32
  }
  func.func @transform_7(%arg0: i32) -> (i32, i32) {
    %c0_i32 = arith.constant 0 : i32
    %c0_i32_0 = arith.constant 0 : i32
    %c0_i32_1 = arith.constant 0 : i32
    return %c0_i32, %c0_i32_0 : i32, i32
  }
  func.func @transform_8(%arg0: i32) -> (i32, i32) {
    %c0_i32 = arith.constant 0 : i32
    %c0_i32_0 = arith.constant 0 : i32
    %c0_i32_1 = arith.constant 0 : i32
    return %c0_i32, %c0_i32_0 : i32, i32
  }
  func.func @transform_9(%arg0: i32) -> (i32, i32) {
    %c0_i32 = arith.constant 0 : i32
    %c0_i32_0 = arith.constant 0 : i32
    %c0_i32_1 = arith.constant 0 : i32
    return %c0_i32, %c0_i32_0 : i32, i32
  }
  func.func @transform_10(%arg0: i32) -> (i32, i32) {
    %c0_i32 = arith.constant 0 : i32
    %c0_i32_0 = arith.constant 0 : i32
    %c0_i32_1 = arith.constant 0 : i32
    return %c0_i32, %c0_i32_0 : i32, i32
  }
  func.func @transform_11(%arg0: i32) -> (i32, i32) {
    %c0_i32 = arith.constant 0 : i32
    %c0_i32_0 = arith.constant 0 : i32
    %c0_i32_1 = arith.constant 0 : i32
    return %c0_i32, %c0_i32_0 : i32, i32
  }
  func.func @transform_12(%arg0: i32) -> (i32, i32) {
    %c0_i32 = arith.constant 0 : i32
    %c0_i32_0 = arith.constant 0 : i32
    %c0_i32_1 = arith.constant 0 : i32
    return %c0_i32, %c0_i32_0 : i32, i32
  }
  func.func @transform_13(%arg0: i32) -> (i32, i32) {
    %c0_i32 = arith.constant 0 : i32
    %c0_i32_0 = arith.constant 0 : i32
    %c0_i32_1 = arith.constant 0 : i32
    return %c0_i32, %c0_i32_0 : i32, i32
  }
  func.func @transform_14(%arg0: i32) -> (i32, i32) {
    %c0_i32 = arith.constant 0 : i32
    %c0_i32_0 = arith.constant 0 : i32
    %c0_i32_1 = arith.constant 0 : i32
    return %c0_i32, %c0_i32_0 : i32, i32
  }
  func.func @transform_15(%arg0: i32) -> (i32, i32) {
    %c0_i32 = arith.constant 0 : i32
    %c0_i32_0 = arith.constant 0 : i32
    %c0_i32_1 = arith.constant 0 : i32
    return %c0_i32, %c0_i32_0 : i32, i32
  }
  func.func @transform_16(%arg0: i32) -> (i32, i32, i32) {
    %c0_i32 = arith.constant 0 : i32
    %c0_i32_0 = arith.constant 0 : i32
    %c0_i32_1 = arith.constant 0 : i32
    return %arg0, %c0_i32, %c0_i32_0 : i32, i32, i32
  }
}

</mosaic_0001>

<llo_original>
// kernel: mnist_forward.1
$region0: #{mnist_forward.1}
  #allocation0 [shape = 'u32[]', space=smem, size = 0x4, offset = 0x4, fixed_abs, tag = 'smem constant byte address 0x4 - core index']
  #allocation1 [shape = 'u32[144,128]{1,0:T(1,128)}', space=vmem, size = 0x12000, scoped, tag = 'internal scratch']
  %s0 = inlined_call_operand.vmem [shape: f32[2,1,1024], index: 0, kind: input, shape index: {}]
  %s1 = inlined_call_operand.vmem [shape: f32[6,9], index: 1, kind: input, shape index: {}]
  %s2 = inlined_call_operand.vmem [shape: f32[6,1], index: 2, kind: input, shape index: {}]
  %s3 = inlined_call_operand.vmem [shape: f32[6,1], index: 3, kind: input, shape index: {}]
  %s4 = inlined_call_operand.vmem [shape: f32[12,54], index: 4, kind: input, shape index: {}]
  %s5 = inlined_call_operand.vmem [shape: f32[12,1], index: 5, kind: input, shape index: {}]
  %s6 = inlined_call_operand.vmem [shape: f32[12,1], index: 6, kind: input, shape index: {}]
  %s7 = inlined_call_operand.vmem [shape: f32[16,108], index: 7, kind: input, shape index: {}]
  %s8 = inlined_call_operand.vmem [shape: f32[16,1], index: 8, kind: input, shape index: {}]
  %s9 = inlined_call_operand.vmem [shape: f32[16,1], index: 9, kind: input, shape index: {}]
  %s10 = inlined_call_operand.vmem [shape: f32[1024,256], index: 10, kind: input, shape index: {}]
  %s11 = inlined_call_operand.vmem [shape: f32[256,128], index: 11, kind: input, shape index: {}]
  %s12 = inlined_call_operand.vmem [shape: f32[2048,24], index: 12, kind: input, shape index: {}]
  %s13 = inlined_call_operand.vmem [shape: f32[1,24], index: 13, kind: input, shape index: {}]
  %s14 = inlined_call_operand.vmem [shape: f32[24,10], index: 14, kind: input, shape index: {}]
  %s15 = inlined_call_operand.vmem [shape: f32[1,10], index: 15, kind: input, shape index: {}]
  %s16 = inlined_call_operand.hbm [shape: f32[2,1,10], index: 16, kind: output, shape index: {}]
  %s17 = sld [smem:[#allocation0]]
  $region97: #{mnist_forward.1} parent=0
    _
  %s19 = ssub.s32 1, %s17
  %s20 = scalar_select 0, %s19, %s17
  $region1: #{mnist_forward.1} parent=0
    #allocation2 [shape = 'u8[1024]{0}', space=vmem, size = 0x400, scoped, tag = 'output window, operand 0']
    #allocation3 [shape = 's32[2]{0}', space=sflag, size = 0x8, scoped, tag = 'scoped memory for mnist_forward.1']
    %21 = vsyncpa [#allocation3], 0
    %s22 = scalar_lea.sflag [#allocation3], 1
    %23 = vsyncpa %s22, 0
    loop: start=0, step=1, limit=4
    $region2: #{mnist_forward.1} parent=1 // loop_pre_header
      _
    $region3: #{mnist_forward.1} parent=1 // loop_header
      %s25 = sphi 0, %s29
      %p26 = scmp.ge.s32.totalorder %s25, 4
      %s35 = sphi 0, %s37
      %s38 = sphi 0, %s35
      %s39 = sphi 0, %s38
      %s55 = sphi 0, %s39
      %s59 = sphi 0, %s59
      %s61 = sphi 0, %s59
      %s62 = sphi 0, %s61
      %s76 = sphi 0, %s62
      %s80 = sphi 0, %s80
      %s82 = sphi 0, %s80
      %s83 = sphi 0, %s82
      %s97 = sphi 0, %s83
      %s101 = sphi 0, %s101
      %s103 = sphi 0, %s101
      %s104 = sphi 0, %s103
      %s118 = sphi 0, %s104
      %s122 = sphi 0, %s122
      %s124 = sphi 0, %s122
      %s125 = sphi 0, %s124
      %s139 = sphi 0, %s125
      %s143 = sphi 0, %s143
      %s145 = sphi 0, %s143
      %s146 = sphi 0, %s145
      %s160 = sphi 0, %s146
      %s164 = sphi 0, %s164
      %s166 = sphi 0, %s164
      %s167 = sphi 0, %s166
      %s181 = sphi 0, %s167
      %s185 = sphi 0, %s185
      %s187 = sphi 0, %s185
      %s188 = sphi 0, %s187
      %s202 = sphi 0, %s188
      %s206 = sphi 0, %s206
      %s208 = sphi 0, %s206
      %s209 = sphi 0, %s208
      %s223 = sphi 0, %s209
      %s227 = sphi 0, %s227
      %s229 = sphi 0, %s227
      %s230 = sphi 0, %s229
      %s244 = sphi 0, %s230
      %s248 = sphi 0, %s248
      %s250 = sphi 0, %s248
      %s251 = sphi 0, %s250
      %s265 = sphi 0, %s251
      %s269 = sphi 0, %s269
      %s271 = sphi 0, %s269
      %s272 = sphi 0, %s271
      %s286 = sphi 0, %s272
      %s290 = sphi 0, %s290
      %s292 = sphi 0, %s290
      %s293 = sphi 0, %s292
      %s307 = sphi 0, %s293
      %s311 = sphi 0, %s311
      %s313 = sphi 0, %s311
      %s314 = sphi 0, %s313
      %s328 = sphi 0, %s314
      %s332 = sphi 0, %s332
      %s334 = sphi 0, %s332
      %s335 = sphi 0, %s334
      %s349 = sphi 0, %s335
      %s353 = sphi 0, %s353
      %s355 = sphi 0, %s353
      %s356 = sphi 0, %s355
      %s370 = sphi 0, %s356
      %s376 = sphi 0, %s378
      %s379 = sphi 0, %s376
      %s380 = sphi 0, %s379
      %s396 = sphi 0, %s380
    $region4: #{mnist_forward.1} parent=1 // loop_header_branch
      %28 = sbr.rel (%p26) target = $region8
    $region5: #{mnist_forward.1} parent=1 // loop_body
      %s30 = ssub.s32 %s25, 1
      %s31 = ssub.s32 %s25, 2
      %s32 = sadd.s32 %s25, 1
      %s33 = ssub.s32 %s25, %s32
      %p34 = scmp.eq.s32.totalorder %s33, 0
      %s36 = sadd.s32 %s35, 1
      %s37 = scalar_select %p34, %s35, %s36
      %p40 = pneg %p34
      %p41 = scmp.eq.s32.totalorder %s25, 1
      %p42 = por %p40, %p41
      %p43 = scmp.ne.s32.totalorder %s35, %s38
      %p44 = scmp.eq.s32.totalorder %s25, 0
      %p45 = por %p43, %p44
      %p46 = scmp.ne.s32.totalorder %s35, %s38
      %p47 = scmp.eq.s32.totalorder %s30, 1
      %p48 = por %p46, %p47
      %p49 = scmp.ne.s32.totalorder %s38, %s39
      %p50 = scmp.eq.s32.totalorder %s30, 0
      %p51 = por %p49, %p50
      %p52 = scmp.ne.s32.totalorder %s38, %s39
      %p53 = scmp.eq.s32.totalorder %s31, 1
      %p54 = por %p52, %p53
      %p56 = scmp.ne.s32.totalorder %s39, %s55
      %p57 = scmp.eq.s32.totalorder %s31, 0
      %p58 = por %p56, %p57
      %s60 = sadd.s32 %s59, 1
      %p63 = scmp.eq.s32.totalorder %s25, 1
      %p64 = scmp.ne.s32.totalorder %s59, %s61
      %p65 = scmp.eq.s32.totalorder %s25, 0
      %p66 = por %p64, %p65
      %p67 = scmp.ne.s32.totalorder %s59, %s61
      %p68 = scmp.eq.s32.totalorder %s30, 1
      %p69 = por %p67, %p68
      %p70 = scmp.ne.s32.totalorder %s61, %s62
      %p71 = scmp.eq.s32.totalorder %s30, 0
      %p72 = por %p70, %p71
      %p73 = scmp.ne.s32.totalorder %s61, %s62
      %p74 = scmp.eq.s32.totalorder %s31, 1
      %p75 = por %p73, %p74
      %p77 = scmp.ne.s32.totalorder %s62, %s76
      %p78 = scmp.eq.s32.totalorder %s31, 0
      %p79 = por %p77, %p78
      %s81 = sadd.s32 %s80, 1
      %p84 = scmp.eq.s32.totalorder %s25, 1
      %p85 = scmp.ne.s32.totalorder %s80, %s82
      %p86 = scmp.eq.s32.totalorder %s25, 0
      %p87 = por %p85, %p86
      %p88 = scmp.ne.s32.totalorder %s80, %s82
      %p89 = scmp.eq.s32.totalorder %s30, 1
      %p90 = por %p88, %p89
      %p91 = scmp.ne.s32.totalorder %s82, %s83
      %p92 = scmp.eq.s32.totalorder %s30, 0
      %p93 = por %p91, %p92
      %p94 = scmp.ne.s32.totalorder %s82, %s83
      %p95 = scmp.eq.s32.totalorder %s31, 1
      %p96 = por %p94, %p95
      %p98 = scmp.ne.s32.totalorder %s83, %s97
      %p99 = scmp.eq.s32.totalorder %s31, 0
      %p100 = por %p98, %p99
      %s102 = sadd.s32 %s101, 1
      %p105 = scmp.eq.s32.totalorder %s25, 1
      %p106 = scmp.ne.s32.totalorder %s101, %s103
      %p107 = scmp.eq.s32.totalorder %s25, 0
      %p108 = por %p106, %p107
      %p109 = scmp.ne.s32.totalorder %s101, %s103
      %p110 = scmp.eq.s32.totalorder %s30, 1
      %p111 = por %p109, %p110
      %p112 = scmp.ne.s32.totalorder %s103, %s104
      %p113 = scmp.eq.s32.totalorder %s30, 0
      %p114 = por %p112, %p113
      %p115 = scmp.ne.s32.totalorder %s103, %s104
      %p116 = scmp.eq.s32.totalorder %s31, 1
      %p117 = por %p115, %p116
      %p119 = scmp.ne.s32.totalorder %s104, %s118
      %p120 = scmp.eq.s32.totalorder %s31, 0
      %p121 = por %p119, %p120
      %s123 = sadd.s32 %s122, 1
      %p126 = scmp.eq.s32.totalorder %s25, 1
      %p127 = scmp.ne.s32.totalorder %s122, %s124
      %p128 = scmp.eq.s32.totalorder %s25, 0
      %p129 = por %p127, %p128
      %p130 = scmp.ne.s32.totalorder %s122, %s124
      %p131 = scmp.eq.s32.totalorder %s30, 1
      %p132 = por %p130, %p131
      %p133 = scmp.ne.s32.totalorder %s124, %s125
      %p134 = scmp.eq.s32.totalorder %s30, 0
      %p135 = por %p133, %p134
      %p136 = scmp.ne.s32.totalorder %s124, %s125
      %p137 = scmp.eq.s32.totalorder %s31, 1
      %p138 = por %p136, %p137
      %p140 = scmp.ne.s32.totalorder %s125, %s139
      %p141 = scmp.eq.s32.totalorder %s31, 0
      %p142 = por %p140, %p141
      %s144 = sadd.s32 %s143, 1
      %p147 = scmp.eq.s32.totalorder %s25, 1
      %p148 = scmp.ne.s32.totalorder %s143, %s145
      %p149 = scmp.eq.s32.totalorder %s25, 0
      %p150 = por %p148, %p149
      %p151 = scmp.ne.s32.totalorder %s143, %s145
      %p152 = scmp.eq.s32.totalorder %s30, 1
      %p153 = por %p151, %p152
      %p154 = scmp.ne.s32.totalorder %s145, %s146
      %p155 = scmp.eq.s32.totalorder %s30, 0
      %p156 = por %p154, %p155
      %p157 = scmp.ne.s32.totalorder %s145, %s146
      %p158 = scmp.eq.s32.totalorder %s31, 1
      %p159 = por %p157, %p158
      %p161 = scmp.ne.s32.totalorder %s146, %s160
      %p162 = scmp.eq.s32.totalorder %s31, 0
      %p163 = por %p161, %p162
      %s165 = sadd.s32 %s164, 1
      %p168 = scmp.eq.s32.totalorder %s25, 1
      %p169 = scmp.ne.s32.totalorder %s164, %s166
      %p170 = scmp.eq.s32.totalorder %s25, 0
      %p171 = por %p169, %p170
      %p172 = scmp.ne.s32.totalorder %s164, %s166
      %p173 = scmp.eq.s32.totalorder %s30, 1
      %p174 = por %p172, %p173
      %p175 = scmp.ne.s32.totalorder %s166, %s167
      %p176 = scmp.eq.s32.totalorder %s30, 0
      %p177 = por %p175, %p176
      %p178 = scmp.ne.s32.totalorder %s166, %s167
      %p179 = scmp.eq.s32.totalorder %s31, 1
      %p180 = por %p178, %p179
      %p182 = scmp.ne.s32.totalorder %s167, %s181
      %p183 = scmp.eq.s32.totalorder %s31, 0
      %p184 = por %p182, %p183
      %s186 = sadd.s32 %s185, 1
      %p189 = scmp.eq.s32.totalorder %s25, 1
      %p190 = scmp.ne.s32.totalorder %s185, %s187
      %p191 = scmp.eq.s32.totalorder %s25, 0
      %p192 = por %p190, %p191
      %p193 = scmp.ne.s32.totalorder %s185, %s187
      %p194 = scmp.eq.s32.totalorder %s30, 1
      %p195 = por %p193, %p194
      %p196 = scmp.ne.s32.totalorder %s187, %s188
      %p197 = scmp.eq.s32.totalorder %s30, 0
      %p198 = por %p196, %p197
      %p199 = scmp.ne.s32.totalorder %s187, %s188
      %p200 = scmp.eq.s32.totalorder %s31, 1
      %p201 = por %p199, %p200
      %p203 = scmp.ne.s32.totalorder %s188, %s202
      %p204 = scmp.eq.s32.totalorder %s31, 0
      %p205 = por %p203, %p204
      %s207 = sadd.s32 %s206, 1
      %p210 = scmp.eq.s32.totalorder %s25, 1
      %p211 = scmp.ne.s32.totalorder %s206, %s208
      %p212 = scmp.eq.s32.totalorder %s25, 0
      %p213 = por %p211, %p212
      %p214 = scmp.ne.s32.totalorder %s206, %s208
      %p215 = scmp.eq.s32.totalorder %s30, 1
      %p216 = por %p214, %p215
      %p217 = scmp.ne.s32.totalorder %s208, %s209
      %p218 = scmp.eq.s32.totalorder %s30, 0
      %p219 = por %p217, %p218
      %p220 = scmp.ne.s32.totalorder %s208, %s209
      %p221 = scmp.eq.s32.totalorder %s31, 1
      %p222 = por %p220, %p221
      %p224 = scmp.ne.s32.totalorder %s209, %s223
      %p225 = scmp.eq.s32.totalorder %s31, 0
      %p226 = por %p224, %p225
      %s228 = sadd.s32 %s227, 1
      %p231 = scmp.eq.s32.totalorder %s25, 1
      %p232 = scmp.ne.s32.totalorder %s227, %s229
      %p233 = scmp.eq.s32.totalorder %s25, 0
      %p234 = por %p232, %p233
      %p235 = scmp.ne.s32.totalorder %s227, %s229
      %p236 = scmp.eq.s32.totalorder %s30, 1
      %p237 = por %p235, %p236
      %p238 = scmp.ne.s32.totalorder %s229, %s230
      %p239 = scmp.eq.s32.totalorder %s30, 0
      %p240 = por %p238, %p239
      %p241 = scmp.ne.s32.totalorder %s229, %s230
      %p242 = scmp.eq.s32.totalorder %s31, 1
      %p243 = por %p241, %p242
      %p245 = scmp.ne.s32.totalorder %s230, %s244
      %p246 = scmp.eq.s32.totalorder %s31, 0
      %p247 = por %p245, %p246
      %s249 = sadd.s32 %s248, 1
      %p252 = scmp.eq.s32.totalorder %s25, 1
      %p253 = scmp.ne.s32.totalorder %s248, %s250
      %p254 = scmp.eq.s32.totalorder %s25, 0
      %p255 = por %p253, %p254
      %p256 = scmp.ne.s32.totalorder %s248, %s250
      %p257 = scmp.eq.s32.totalorder %s30, 1
      %p258 = por %p256, %p257
      %p259 = scmp.ne.s32.totalorder %s250, %s251
      %p260 = scmp.eq.s32.totalorder %s30, 0
      %p261 = por %p259, %p260
      %p262 = scmp.ne.s32.totalorder %s250, %s251
      %p263 = scmp.eq.s32.totalorder %s31, 1
      %p264 = por %p262, %p263
      %p266 = scmp.ne.s32.totalorder %s251, %s265
      %p267 = scmp.eq.s32.totalorder %s31, 0
      %p268 = por %p266, %p267
      %s270 = sadd.s32 %s269, 1
      %p273 = scmp.eq.s32.totalorder %s25, 1
      %p274 = scmp.ne.s32.totalorder %s269, %s271
      %p275 = scmp.eq.s32.totalorder %s25, 0
      %p276 = por %p274, %p275
      %p277 = scmp.ne.s32.totalorder %s269, %s271
      %p278 = scmp.eq.s32.totalorder %s30, 1
      %p279 = por %p277, %p278
      %p280 = scmp.ne.s32.totalorder %s271, %s272
      %p281 = scmp.eq.s32.totalorder %s30, 0
      %p282 = por %p280, %p281
      %p283 = scmp.ne.s32.totalorder %s271, %s272
      %p284 = scmp.eq.s32.totalorder %s31, 1
      %p285 = por %p283, %p284
      %p287 = scmp.ne.s32.totalorder %s272, %s286
      %p288 = scmp.eq.s32.totalorder %s31, 0
      %p289 = por %p287, %p288
      %s291 = sadd.s32 %s290, 1
      %p294 = scmp.eq.s32.totalorder %s25, 1
      %p295 = scmp.ne.s32.totalorder %s290, %s292
      %p296 = scmp.eq.s32.totalorder %s25, 0
      %p297 = por %p295, %p296
      %p298 = scmp.ne.s32.totalorder %s290, %s292
      %p299 = scmp.eq.s32.totalorder %s30, 1
      %p300 = por %p298, %p299
      %p301 = scmp.ne.s32.totalorder %s292, %s293
      %p302 = scmp.eq.s32.totalorder %s30, 0
      %p303 = por %p301, %p302
      %p304 = scmp.ne.s32.totalorder %s292, %s293
      %p305 = scmp.eq.s32.totalorder %s31, 1
      %p306 = por %p304, %p305
      %p308 = scmp.ne.s32.totalorder %s293, %s307
      %p309 = scmp.eq.s32.totalorder %s31, 0
      %p310 = por %p308, %p309
      %s312 = sadd.s32 %s311, 1
      %p315 = scmp.eq.s32.totalorder %s25, 1
      %p316 = scmp.ne.s32.totalorder %s311, %s313
      %p317 = scmp.eq.s32.totalorder %s25, 0
      %p318 = por %p316, %p317
      %p319 = scmp.ne.s32.totalorder %s311, %s313
      %p320 = scmp.eq.s32.totalorder %s30, 1
      %p321 = por %p319, %p320
      %p322 = scmp.ne.s32.totalorder %s313, %s314
      %p323 = scmp.eq.s32.totalorder %s30, 0
      %p324 = por %p322, %p323
      %p325 = scmp.ne.s32.totalorder %s313, %s314
      %p326 = scmp.eq.s32.totalorder %s31, 1
      %p327 = por %p325, %p326
      %p329 = scmp.ne.s32.totalorder %s314, %s328
      %p330 = scmp.eq.s32.totalorder %s31, 0
      %p331 = por %p329, %p330
      %s333 = sadd.s32 %s332, 1
      %p336 = scmp.eq.s32.totalorder %s25, 1
      %p337 = scmp.ne.s32.totalorder %s332, %s334
      %p338 = scmp.eq.s32.totalorder %s25, 0
      %p339 = por %p337, %p338
      %p340 = scmp.ne.s32.totalorder %s332, %s334
      %p341 = scmp.eq.s32.totalorder %s30, 1
      %p342 = por %p340, %p341
      %p343 = scmp.ne.s32.totalorder %s334, %s335
      %p344 = scmp.eq.s32.totalorder %s30, 0
      %p345 = por %p343, %p344
      %p346 = scmp.ne.s32.totalorder %s334, %s335
      %p347 = scmp.eq.s32.totalorder %s31, 1
      %p348 = por %p346, %p347
      %p350 = scmp.ne.s32.totalorder %s335, %s349
      %p351 = scmp.eq.s32.totalorder %s31, 0
      %p352 = por %p350, %p351
      %s354 = sadd.s32 %s353, 1
      %p357 = scmp.eq.s32.totalorder %s25, 1
      %p358 = scmp.ne.s32.totalorder %s353, %s355
      %p359 = scmp.eq.s32.totalorder %s25, 0
      %p360 = por %p358, %p359
      %p361 = scmp.ne.s32.totalorder %s353, %s355
      %p362 = scmp.eq.s32.totalorder %s30, 1
      %p363 = por %p361, %p362
      %p364 = scmp.ne.s32.totalorder %s355, %s356
      %p365 = scmp.eq.s32.totalorder %s30, 0
      %p366 = por %p364, %p365
      %p367 = scmp.ne.s32.totalorder %s355, %s356
      %p368 = scmp.eq.s32.totalorder %s31, 1
      %p369 = por %p367, %p368
      %p371 = scmp.ne.s32.totalorder %s356, %s370
      %p372 = scmp.eq.s32.totalorder %s31, 0
      %p373 = por %p371, %p372
      %s374 = ssub.s32 %s25, %s32
      %p375 = scmp.eq.s32.totalorder %s374, 0
      %s377 = sadd.s32 %s376, 1
      %s378 = scalar_select %p375, %s376, %s377
      %p381 = pneg %p375
      %p382 = scmp.eq.s32.totalorder %s25, 1
      %p383 = por %p381, %p382
      %p384 = scmp.ne.s32.totalorder %s376, %s379
      %p385 = scmp.eq.s32.totalorder %s25, 0
      %p386 = por %p384, %p385
      %p387 = scmp.ne.s32.totalorder %s376, %s379
      %p388 = scmp.eq.s32.totalorder %s30, 1
      %p389 = por %p387, %p388
      %p390 = scmp.ne.s32.totalorder %s379, %s380
      %p391 = scmp.eq.s32.totalorder %s30, 0
      %p392 = por %p390, %p391
      %p393 = scmp.ne.s32.totalorder %s379, %s380
      %p394 = scmp.eq.s32.totalorder %s31, 1
      %p395 = por %p393, %p394
      %p397 = scmp.ne.s32.totalorder %s380, %s396
      %p398 = scmp.eq.s32.totalorder %s31, 0
      %p399 = por %p397, %p398
      %p400 = scmp.le.s32.totalorder 1, %s25
      %p401 = scmp.lt.s32.totalorder %s25, 3
      %p402 = pnand %p400, %p401
      %p403 = pneg %p402
      // Predicated region
      $region9: #{mnist_forward.1} parent=5 // pred_check
        _
      $region10: #{mnist_forward.1} parent=5 // pred_check_branch
        %405 = sbr.rel (%p402) target = $region12
      $region11: #{mnist_forward.1} parent=5 // pred_region
        %s406 = ssub.s32 %s25, 1
        // Predicated region
        $region13: #{mnist_forward.1} parent=11 // pred_check
          %p407 = pneg %p72
        $region14: #{mnist_forward.1} parent=11 // pred_check_branch
          %409 = sbr.rel (%p407) target = $region16
        $region15: #{mnist_forward.1} parent=11 // pred_region
          _
        $region16: #{mnist_forward.1} parent=11 // pred_fallthru
          _
        // Predicated region
        $region17: #{mnist_forward.1} parent=11 // pred_check
          %p410 = pneg %p93
        $region18: #{mnist_forward.1} parent=11 // pred_check_branch
          %412 = sbr.rel (%p410) target = $region20
        $region19: #{mnist_forward.1} parent=11 // pred_region
          _
        $region20: #{mnist_forward.1} parent=11 // pred_fallthru
          _
        // Predicated region
        $region21: #{mnist_forward.1} parent=11 // pred_check
          %p413 = pneg %p114
        $region22: #{mnist_forward.1} parent=11 // pred_check_branch
          %415 = sbr.rel (%p413) target = $region24
        $region23: #{mnist_forward.1} parent=11 // pred_region
          _
        $region24: #{mnist_forward.1} parent=11 // pred_fallthru
          _
        // Predicated region
        $region25: #{mnist_forward.1} parent=11 // pred_check
          %p416 = pneg %p135
        $region26: #{mnist_forward.1} parent=11 // pred_check_branch
          %418 = sbr.rel (%p416) target = $region28
        $region27: #{mnist_forward.1} parent=11 // pred_region
          _
        $region28: #{mnist_forward.1} parent=11 // pred_fallthru
          _
        // Predicated region
        $region29: #{mnist_forward.1} parent=11 // pred_check
          %p419 = pneg %p156
        $region30: #{mnist_forward.1} parent=11 // pred_check_branch
          %421 = sbr.rel (%p419) target = $region32
        $region31: #{mnist_forward.1} parent=11 // pred_region
          _
        $region32: #{mnist_forward.1} parent=11 // pred_fallthru
          _
        // Predicated region
        $region33: #{mnist_forward.1} parent=11 // pred_check
          %p422 = pneg %p177
        $region34: #{mnist_forward.1} parent=11 // pred_check_branch
          %424 = sbr.rel (%p422) target = $region36
        $region35: #{mnist_forward.1} parent=11 // pred_region
          _
        $region36: #{mnist_forward.1} parent=11 // pred_fallthru
          _
        // Predicated region
        $region37: #{mnist_forward.1} parent=11 // pred_check
          %p425 = pneg %p198
        $region38: #{mnist_forward.1} parent=11 // pred_check_branch
          %427 = sbr.rel (%p425) target = $region40
        $region39: #{mnist_forward.1} parent=11 // pred_region
          _
        $region40: #{mnist_forward.1} parent=11 // pred_fallthru
          _
        // Predicated region
        $region41: #{mnist_forward.1} parent=11 // pred_check
          %p428 = pneg %p219
        $region42: #{mnist_forward.1} parent=11 // pred_check_branch
          %430 = sbr.rel (%p428) target = $region44
        $region43: #{mnist_forward.1} parent=11 // pred_region
          _
        $region44: #{mnist_forward.1} parent=11 // pred_fallthru
          _
        // Predicated region
        $region45: #{mnist_forward.1} parent=11 // pred_check
          %p431 = pneg %p240
        $region46: #{mnist_forward.1} parent=11 // pred_check_branch
          %433 = sbr.rel (%p431) target = $region48
        $region47: #{mnist_forward.1} parent=11 // pred_region
          _
        $region48: #{mnist_forward.1} parent=11 // pred_fallthru
          _
        // Predicated region
        $region49: #{mnist_forward.1} parent=11 // pred_check
          %p434 = pneg %p261
        $region50: #{mnist_forward.1} parent=11 // pred_check_branch
          %436 = sbr.rel (%p434) target = $region52
        $region51: #{mnist_forward.1} parent=11 // pred_region
          _
        $region52: #{mnist_forward.1} parent=11 // pred_fallthru
          _
        // Predicated region
        $region53: #{mnist_forward.1} parent=11 // pred_check
          %p437 = pneg %p282
        $region54: #{mnist_forward.1} parent=11 // pred_check_branch
          %439 = sbr.rel (%p437) target = $region56
        $region55: #{mnist_forward.1} parent=11 // pred_region
          _
        $region56: #{mnist_forward.1} parent=11 // pred_fallthru
          _
        // Predicated region
        $region57: #{mnist_forward.1} parent=11 // pred_check
          %p440 = pneg %p303
        $region58: #{mnist_forward.1} parent=11 // pred_check_branch
          %442 = sbr.rel (%p440) target = $region60
        $region59: #{mnist_forward.1} parent=11 // pred_region
          _
        $region60: #{mnist_forward.1} parent=11 // pred_fallthru
          _
        // Predicated region
        $region61: #{mnist_forward.1} parent=11 // pred_check
          %p443 = pneg %p324
        $region62: #{mnist_forward.1} parent=11 // pred_check_branch
          %445 = sbr.rel (%p443) target = $region64
        $region63: #{mnist_forward.1} parent=11 // pred_region
          _
        $region64: #{mnist_forward.1} parent=11 // pred_fallthru
          _
        // Predicated region
        $region65: #{mnist_forward.1} parent=11 // pred_check
          %p446 = pneg %p345
        $region66: #{mnist_forward.1} parent=11 // pred_check_branch
          %448 = sbr.rel (%p446) target = $region68
        $region67: #{mnist_forward.1} parent=11 // pred_region
          _
        $region68: #{mnist_forward.1} parent=11 // pred_fallthru
          _
        // Predicated region
        $region69: #{mnist_forward.1} parent=11 // pred_check
          %p449 = pneg %p366
        $region70: #{mnist_forward.1} parent=11 // pred_check_branch
          %451 = sbr.rel (%p449) target = $region72
        $region71: #{mnist_forward.1} parent=11 // pred_region
          _
        $region72: #{mnist_forward.1} parent=11 // pred_fallthru
          _
      $region12: #{mnist_forward.1} parent=5 // pred_fallthru
        _
      %p452 = scmp.lt.s32.totalorder %s25, 2
      // Predicated region
      $region73: #{mnist_forward.1} parent=5 // pred_check
        %p453 = pneg %p452
      $region74: #{mnist_forward.1} parent=5 // pred_check_branch
        %455 = sbr.rel (%p453) target = $region76
      $region75: #{mnist_forward.1} parent=5 // pred_region
        // Predicated region
        $region77: #{mnist_forward.1} parent=75 // pred_check
          %p456 = pneg %p45
        $region78: #{mnist_forward.1} parent=75 // pred_check_branch
          %458 = sbr.rel (%p456) target = $region80
        $region79: #{mnist_forward.1} parent=75 // pred_region
          %p459 = scmp.lt.s32.totalorder %s25, 1
          %s460 = scalar_select %p459, %s25, 1
          %s461 = smul.addr %s460, 8
          %s462 = scalar_lea.vmem %s0, %s461
        $region80: #{mnist_forward.1} parent=75 // pred_fallthru
          _
      $region76: #{mnist_forward.1} parent=5 // pred_fallthru
        _
      %p463 = scmp.le.s32.totalorder 1, %s25
      %p464 = scmp.lt.s32.totalorder %s25, 3
      %p465 = pnand %p463, %p464
      %p466 = pneg %p465
      // Predicated region
      $region81: #{mnist_forward.1} parent=5 // pred_check
        _
      $region82: #{mnist_forward.1} parent=5 // pred_check_branch
        %468 = sbr.rel (%p465) target = $region84
      $region83: #{mnist_forward.1} parent=5 // pred_region
        %s469 = ssub.s32 %s25, 1
        %p470 = scmp.lt.s32.totalorder %s30, 1
        %s471 = scalar_select %p470, %s30, 1
        %s472 = smul.addr %s471, 8
        %s473 = scalar_lea.vmem %s0, %s472
        %p474 = pneg %p51
        %p475 = pneg %p48
        %p476 = pneg %p72
        %p477 = pneg %p69
        %p478 = pneg %p93
        %p479 = pneg %p90
        %p480 = pneg %p114
        %p481 = pneg %p111
        %p482 = pneg %p135
        %p483 = pneg %p132
        %p484 = pneg %p156
        %p485 = pneg %p153
        %p486 = pneg %p177
        %p487 = pneg %p174
        %p488 = pneg %p198
        %p489 = pneg %p195
        %p490 = pneg %p219
        %p491 = pneg %p216
        %p492 = pneg %p240
        %p493 = pneg %p237
        %p494 = pneg %p261
        %p495 = pneg %p258
        %p496 = pneg %p282
        %p497 = pneg %p279
        %p498 = pneg %p303
        %p499 = pneg %p300
        %p500 = pneg %p324
        %p501 = pneg %p321
        %p502 = pneg %p345
        %p503 = pneg %p342
        %p504 = pneg %p366
        %p505 = pneg %p363
        %p506 = pneg %p392
        %p507 = pneg %p389
        %s508 = sand.u32 %s379, 1
        %s509 = scalar_lea.sflag [#allocation3], %s508
        %s510 = sand.u32 %s379, 1
        %s511 = scalar_lea.vmem [#allocation2], %s510
        %p512 = scmp.lt.s32.totalorder %s30, 1
        %s513 = scalar_select %p512, %s30, 1
        %s514 = smul.addr %s513, 8
        %s515 = scalar_lea.vmem %s0, %s514
        %v516 = vld [vmem:[%s515] sm:$0xff]
        %v517 = vld [vmem:[%s1] sm:$0x3f]
        %v518 = vld [vmem:[%s2] sm:$0x3f]
        %v519 = vld [vmem:[%s3] sm:$0x3f]
        %v521 = vlaneseq
        %v522 = vshrl.u32 %v521, 7
        %v523 = vsub.s32 0, %v522
        %v524 = vrot.slane %v516, %v523
        %v525 = vlaneseq
        %v526 = vshrl.u32 %v525, 7
        %v527 = vsub.s32 1, %v526
        %v528 = vrot.slane %v516, %v527
        %v529 = vlaneseq
        %v530 = vshrl.u32 %v529, 7
        %v531 = vsub.s32 2, %v530
        %v532 = vrot.slane %v516, %v531
        %v533 = vlaneseq
        %v534 = vshrl.u32 %v533, 7
        %v535 = vsub.s32 3, %v534
        %v536 = vrot.slane %v516, %v535
        %v537 = vlaneseq
        %v538 = vshrl.u32 %v537, 7
        %v539 = vsub.s32 4, %v538
        %v540 = vrot.slane %v516, %v539
        %v541 = vlaneseq
        %v542 = vshrl.u32 %v541, 7
        %v543 = vsub.s32 5, %v542
        %v544 = vrot.slane %v516, %v543
        %v545 = vlaneseq
        %v546 = vshrl.u32 %v545, 7
        %v547 = vsub.s32 6, %v546
        %v548 = vrot.slane %v516, %v547
        %v549 = vlaneseq
        %v550 = vshrl.u32 %v549, 7
        %v551 = vsub.s32 7, %v550
        %v552 = vrot.slane %v516, %v551
        %561 = vrot.lane.b32.xlu0 %v524, 31
        %v562 = vpop.permute.xlu0 %561
        %563 = vrot.lane.b32.xlu0 %v528, 31
        %v564 = vpop.permute.xlu0 %563
        %565 = vrot.lane.b32.xlu0 %v532, 31
        %v566 = vpop.permute.xlu0 %565
        %567 = vrot.lane.b32.xlu0 %v536, 31
        %v568 = vpop.permute.xlu0 %567
        %569 = vrot.lane.b32.xlu0 %v540, 31
        %v570 = vpop.permute.xlu0 %569
        %571 = vrot.lane.b32.xlu0 %v544, 31
        %v572 = vpop.permute.xlu0 %571
        %573 = vrot.lane.b32.xlu0 %v548, 31
        %v574 = vpop.permute.xlu0 %573
        %575 = vrot.lane.b32.xlu0 %v552, 31
        %v576 = vpop.permute.xlu0 %575
        %v577 = vlaneseq
        %v578 = vand.u32 %v577, 127
        %vm579 = vcmp.lt.s32.totalorder %v578, 31
        %v580 = vsel %vm579, %v574, %v576
        %v581 = vsel %vm579, %v572, %v574
        %v582 = vsel %vm579, %v570, %v572
        %v583 = vsel %vm579, %v568, %v570
        %v584 = vsel %vm579, %v566, %v568
        %v585 = vsel %vm579, %v564, %v566
        %v586 = vsel %vm579, %v562, %v564
        %v587 = vsel %vm579, %v576, %v562
        %588 = vrot.lane.b32.xlu0 %v524, 30
        %v589 = vpop.permute.xlu0 %588
        %590 = vrot.lane.b32.xlu0 %v528, 30
        %v591 = vpop.permute.xlu0 %590
        %592 = vrot.lane.b32.xlu0 %v532, 30
        %v593 = vpop.permute.xlu0 %592
        %594 = vrot.lane.b32.xlu0 %v536, 30
        %v595 = vpop.permute.xlu0 %594
        %596 = vrot.lane.b32.xlu0 %v540, 30
        %v597 = vpop.permute.xlu0 %596
        %598 = vrot.lane.b32.xlu0 %v544, 30
        %v599 = vpop.permute.xlu0 %598
        %600 = vrot.lane.b32.xlu0 %v548, 30
        %v601 = vpop.permute.xlu0 %600
        %602 = vrot.lane.b32.xlu0 %v552, 30
        %v603 = vpop.permute.xlu0 %602
        %vm604 = vcmp.lt.s32.totalorder %v578, 30
        %v605 = vsel %vm604, %v601, %v603
        %v606 = vsel %vm604, %v599, %v601
        %v607 = vsel %vm604, %v597, %v599
        %v608 = vsel %vm604, %v595, %v597
        %v609 = vsel %vm604, %v593, %v595
        %v610 = vsel %vm604, %v591, %v593
        %v611 = vsel %vm604, %v589, %v591
        %v612 = vsel %vm604, %v603, %v589
        %613 = vrot.lane.b32.xlu0 %v524, 29
        %v614 = vpop.permute.xlu0 %613
        %615 = vrot.lane.b32.xlu0 %v528, 29
        %v616 = vpop.permute.xlu0 %615
        %617 = vrot.lane.b32.xlu0 %v532, 29
        %v618 = vpop.permute.xlu0 %617
        %619 = vrot.lane.b32.xlu0 %v536, 29
        %v620 = vpop.permute.xlu0 %619
        %621 = vrot.lane.b32.xlu0 %v540, 29
        %v622 = vpop.permute.xlu0 %621
        %623 = vrot.lane.b32.xlu0 %v544, 29
        %v624 = vpop.permute.xlu0 %623
        %625 = vrot.lane.b32.xlu0 %v548, 29
        %v626 = vpop.permute.xlu0 %625
        %627 = vrot.lane.b32.xlu0 %v552, 29
        %v628 = vpop.permute.xlu0 %627
        %vm629 = vcmp.lt.s32.totalorder %v578, 29
        %v630 = vsel %vm629, %v626, %v628
        %v631 = vsel %vm629, %v624, %v626
        %v632 = vsel %vm629, %v622, %v624
        %v633 = vsel %vm629, %v620, %v622
        %v634 = vsel %vm629, %v618, %v620
        %v635 = vsel %vm629, %v616, %v618
        %v636 = vsel %vm629, %v614, %v616
        %v637 = vsel %vm629, %v628, %v614
        %638 = vrot.lane.b32.xlu0 %v524, 1
        %v639 = vpop.permute.xlu0 %638
        %640 = vrot.lane.b32.xlu0 %v528, 1
        %v641 = vpop.permute.xlu0 %640
        %642 = vrot.lane.b32.xlu0 %v532, 1
        %v643 = vpop.permute.xlu0 %642
        %644 = vrot.lane.b32.xlu0 %v536, 1
        %v645 = vpop.permute.xlu0 %644
        %646 = vrot.lane.b32.xlu0 %v540, 1
        %v647 = vpop.permute.xlu0 %646
        %648 = vrot.lane.b32.xlu0 %v544, 1
        %v649 = vpop.permute.xlu0 %648
        %650 = vrot.lane.b32.xlu0 %v548, 1
        %v651 = vpop.permute.xlu0 %650
        %652 = vrot.lane.b32.xlu0 %v552, 1
        %v653 = vpop.permute.xlu0 %652
        %vm654 = vcmp.lt.s32.totalorder %v578, 1
        %v655 = vsel %vm654, %v651, %v653
        %v656 = vsel %vm654, %v649, %v651
        %v657 = vsel %vm654, %v647, %v649
        %v658 = vsel %vm654, %v645, %v647
        %v659 = vsel %vm654, %v643, %v645
        %v660 = vsel %vm654, %v641, %v643
        %v661 = vsel %vm654, %v639, %v641
        %v662 = vsel %vm654, %v653, %v639
        %663 = vrot.lane.b32.xlu0 %v524, 127
        %v664 = vpop.permute.xlu0 %663
        %665 = vrot.lane.b32.xlu0 %v528, 127
        %v666 = vpop.permute.xlu0 %665
        %667 = vrot.lane.b32.xlu0 %v532, 127
        %v668 = vpop.permute.xlu0 %667
        %669 = vrot.lane.b32.xlu0 %v536, 127
        %v670 = vpop.permute.xlu0 %669
        %671 = vrot.lane.b32.xlu0 %v540, 127
        %v672 = vpop.permute.xlu0 %671
        %673 = vrot.lane.b32.xlu0 %v544, 127
        %v674 = vpop.permute.xlu0 %673
        %675 = vrot.lane.b32.xlu0 %v548, 127
        %v676 = vpop.permute.xlu0 %675
        %677 = vrot.lane.b32.xlu0 %v552, 127
        %v678 = vpop.permute.xlu0 %677
        %vm679 = vcmp.lt.s32.totalorder %v578, 127
        %v680 = vsel %vm679, %v676, %v678
        %v681 = vsel %vm679, %v674, %v676
        %v682 = vsel %vm679, %v672, %v674
        %v683 = vsel %vm679, %v670, %v672
        %v684 = vsel %vm679, %v668, %v670
        %v685 = vsel %vm679, %v666, %v668
        %v686 = vsel %vm679, %v664, %v666
        %v687 = vsel %vm679, %v678, %v664
        %688 = vrot.lane.b32.xlu0 %v524, 99
        %v689 = vpop.permute.xlu0 %688
        %690 = vrot.lane.b32.xlu0 %v528, 99
        %v691 = vpop.permute.xlu0 %690
        %692 = vrot.lane.b32.xlu0 %v532, 99
        %v693 = vpop.permute.xlu0 %692
        %694 = vrot.lane.b32.xlu0 %v536, 99
        %v695 = vpop.permute.xlu0 %694
        %696 = vrot.lane.b32.xlu0 %v540, 99
        %v697 = vpop.permute.xlu0 %696
        %698 = vrot.lane.b32.xlu0 %v544, 99
        %v699 = vpop.permute.xlu0 %698
        %700 = vrot.lane.b32.xlu0 %v548, 99
        %v701 = vpop.permute.xlu0 %700
        %702 = vrot.lane.b32.xlu0 %v552, 99
        %v703 = vpop.permute.xlu0 %702
        %vm704 = vcmp.lt.s32.totalorder %v578, 99
        %v705 = vsel %vm704, %v701, %v703
        %v706 = vsel %vm704, %v699, %v701
        %v707 = vsel %vm704, %v697, %v699
        %v708 = vsel %vm704, %v695, %v697
        %v709 = vsel %vm704, %v693, %v695
        %v710 = vsel %vm704, %v691, %v693
        %v711 = vsel %vm704, %v689, %v691
        %v712 = vsel %vm704, %v703, %v689
        %713 = vrot.lane.b32.xlu0 %v524, 98
        %v714 = vpop.permute.xlu0 %713
        %715 = vrot.lane.b32.xlu0 %v528, 98
        %v716 = vpop.permute.xlu0 %715
        %717 = vrot.lane.b32.xlu0 %v532, 98
        %v718 = vpop.permute.xlu0 %717
        %719 = vrot.lane.b32.xlu0 %v536, 98
        %v720 = vpop.permute.xlu0 %719
        %721 = vrot.lane.b32.xlu0 %v540, 98
        %v722 = vpop.permute.xlu0 %721
        %723 = vrot.lane.b32.xlu0 %v544, 98
        %v724 = vpop.permute.xlu0 %723
        %725 = vrot.lane.b32.xlu0 %v548, 98
        %v726 = vpop.permute.xlu0 %725
        %727 = vrot.lane.b32.xlu0 %v552, 98
        %v728 = vpop.permute.xlu0 %727
        %vm729 = vcmp.lt.s32.totalorder %v578, 98
        %v730 = vsel %vm729, %v726, %v728
        %v731 = vsel %vm729, %v724, %v726
        %v732 = vsel %vm729, %v722, %v724
        %v733 = vsel %vm729, %v720, %v722
        %v734 = vsel %vm729, %v718, %v720
        %v735 = vsel %vm729, %v716, %v718
        %v736 = vsel %vm729, %v714, %v716
        %v737 = vsel %vm729, %v728, %v714
        %738 = vrot.lane.b32.xlu0 %v524, 97
        %v739 = vpop.permute.xlu0 %738
        %740 = vrot.lane.b32.xlu0 %v528, 97
        %v741 = vpop.permute.xlu0 %740
        %742 = vrot.lane.b32.xlu0 %v532, 97
        %v743 = vpop.permute.xlu0 %742
        %744 = vrot.lane.b32.xlu0 %v536, 97
        %v745 = vpop.permute.xlu0 %744
        %746 = vrot.lane.b32.xlu0 %v540, 97
        %v747 = vpop.permute.xlu0 %746
        %748 = vrot.lane.b32.xlu0 %v544, 97
        %v749 = vpop.permute.xlu0 %748
        %750 = vrot.lane.b32.xlu0 %v548, 97
        %v751 = vpop.permute.xlu0 %750
        %752 = vrot.lane.b32.xlu0 %v552, 97
        %v753 = vpop.permute.xlu0 %752
        %vm754 = vcmp.lt.s32.totalorder %v578, 97
        %v755 = vsel %vm754, %v751, %v753
        %v756 = vsel %vm754, %v749, %v751
        %v757 = vsel %vm754, %v747, %v749
        %v758 = vsel %vm754, %v745, %v747
        %v759 = vsel %vm754, %v743, %v745
        %v760 = vsel %vm754, %v741, %v743
        %v761 = vsel %vm754, %v739, %v741
        %v762 = vsel %vm754, %v753, %v739
        %v771 = vrot.slane %v612, 7
        %v772 = vrot.slane %v611, 7
        %v773 = vrot.slane %v610, 7
        %v774 = vrot.slane %v609, 7
        %v775 = vrot.slane %v608, 7
        %v776 = vrot.slane %v607, 7
        %v777 = vrot.slane %v606, 7
        %v778 = vrot.slane %v605, 7
        %v795 = vrot.slane %v637, 6
        %v796 = vrot.slane %v636, 6
        %v797 = vrot.slane %v635, 6
        %v798 = vrot.slane %v634, 6
        %v799 = vrot.slane %v633, 6
        %v800 = vrot.slane %v632, 6
        %v801 = vrot.slane %v631, 6
        %v802 = vrot.slane %v630, 6
        %v819 = vrot.slane %v662, 5
        %v820 = vrot.slane %v661, 5
        %v821 = vrot.slane %v660, 5
        %v822 = vrot.slane %v659, 5
        %v823 = vrot.slane %v658, 5
        %v824 = vrot.slane %v657, 5
        %v825 = vrot.slane %v656, 5
        %v826 = vrot.slane %v655, 5
        %v843 = vrot.slane %v686, 3
        %v844 = vrot.slane %v685, 3
        %v845 = vrot.slane %v684, 3
        %v846 = vrot.slane %v683, 3
        %v847 = vrot.slane %v682, 3
        %v848 = vrot.slane %v681, 3
        %v849 = vrot.slane %v680, 3
        %v850 = vrot.slane %v687, 3
        %v867 = vrot.slane %v711, 2
        %v868 = vrot.slane %v710, 2
        %v869 = vrot.slane %v709, 2
        %v870 = vrot.slane %v708, 2
        %v871 = vrot.slane %v707, 2
        %v872 = vrot.slane %v706, 2
        %v873 = vrot.slane %v705, 2
        %v874 = vrot.slane %v712, 2
        %v891 = vrot.slane %v736, 1
        %v892 = vrot.slane %v735, 1
        %v893 = vrot.slane %v734, 1
        %v894 = vrot.slane %v733, 1
        %v895 = vrot.slane %v732, 1
        %v896 = vrot.slane %v731, 1
        %v897 = vrot.slane %v730, 1
        %v898 = vrot.slane %v737, 1
        %vm907 = vcmask 1040384
        %v908 = vsel %vm907, %v587, %v771
        %v909 = vsel %vm907, %v586, %v772
        %v910 = vsel %vm907, %v585, %v773
        %v911 = vsel %vm907, %v584, %v774
        %v912 = vsel %vm907, %v583, %v775
        %v913 = vsel %vm907, %v582, %v776
        %v914 = vsel %vm907, %v581, %v777
        %v915 = vsel %vm907, %v580, %v778
        %vm916 = vcmask 1041408
        %v917 = vsel %vm916, %v908, %v795
        %v918 = vsel %vm916, %v909, %v796
        %v919 = vsel %vm916, %v910, %v797
        %v920 = vsel %vm916, %v911, %v798
        %v921 = vsel %vm916, %v912, %v799
        %v922 = vsel %vm916, %v913, %v800
        %v923 = vsel %vm916, %v914, %v801
        %v924 = vsel %vm916, %v915, %v802
        %vm925 = vcmask 1042432
        %v926 = vsel %vm925, %v917, %v819
        %v927 = vsel %vm925, %v918, %v820
        %v928 = vsel %vm925, %v919, %v821
        %v929 = vsel %vm925, %v920, %v822
        %v930 = vsel %vm925, %v921, %v823
        %v931 = vsel %vm925, %v922, %v824
        %v932 = vsel %vm925, %v923, %v825
        %v933 = vsel %vm925, %v924, %v826
        %vm934 = vcmask 1043456
        %v935 = vsel %vm934, %v926, %v524
        %v936 = vsel %vm934, %v927, %v528
        %v937 = vsel %vm934, %v928, %v532
        %v938 = vsel %vm934, %v929, %v536
        %v939 = vsel %vm934, %v930, %v540
        %v940 = vsel %vm934, %v931, %v544
        %v941 = vsel %vm934, %v932, %v548
        %v942 = vsel %vm934, %v933, %v552
        %vm943 = vcmask 1044480
        %v944 = vsel %vm943, %v935, %v843
        %v945 = vsel %vm943, %v936, %v844
        %v946 = vsel %vm943, %v937, %v845
        %v947 = vsel %vm943, %v938, %v846
        %v948 = vsel %vm943, %v939, %v847
        %v949 = vsel %vm943, %v940, %v848
        %v950 = vsel %vm943, %v941, %v849
        %v951 = vsel %vm943, %v942, %v850
        %vm952 = vcmask 1045504
        %v953 = vsel %vm952, %v944, %v867
        %v954 = vsel %vm952, %v945, %v868
        %v955 = vsel %vm952, %v946, %v869
        %v956 = vsel %vm952, %v947, %v870
        %v957 = vsel %vm952, %v948, %v871
        %v958 = vsel %vm952, %v949, %v872
        %v959 = vsel %vm952, %v950, %v873
        %v960 = vsel %vm952, %v951, %v874
        %vm961 = vcmask 1046528
        %v962 = vsel %vm961, %v953, %v891
        %v963 = vsel %vm961, %v954, %v892
        %v964 = vsel %vm961, %v955, %v893
        %v965 = vsel %vm961, %v956, %v894
        %v966 = vsel %vm961, %v957, %v895
        %v967 = vsel %vm961, %v958, %v896
        %v968 = vsel %vm961, %v959, %v897
        %v969 = vsel %vm961, %v960, %v898
        %vm970 = vcmask 72704
        %v972 = vsel %vm970, %v517, 0
        %v975 = vsel %vm907, %v761, 0
        %v978 = vsel %vm907, %v760, 0
        %v981 = vsel %vm907, %v759, 0
        %v984 = vsel %vm907, %v758, 0
        %v987 = vsel %vm907, %v757, 0
        %v990 = vsel %vm907, %v756, 0
        %v993 = vsel %vm907, %v755, 0
        %v996 = vsel %vm907, %v762, 0
        %998 = vmatprep.subr.mxu0 %v963
        %999 = vmatpush1.msra.mxu0 %v962
        %1000 = vmatprep.subr.mxu0 %v978
        %1001 = vmatpush1.msra.mxu0 %v975
        %1002 = vmatprep.subr.mxu0 0.0
        %1003 = vmatpush1.msra.mxu0 0.0
        %1004 = vmatprep.subr.mxu0 0.0
        %1005 = vmatpush1.msra.mxu0 0.0
        %1006 = vmatprep.subr.mxu0 0.0
        %1007 = vmatpush1.msra.mxu0 0.0
        %1008 = vmatprep.subr.mxu0 0.0
        %1009 = vmatpush1.msra.mxu0 0.0
        %1010 = vmatprep.subr.mxu0 0.0
        %1011 = vmatpush1.msra.mxu0 0.0
        %1012 = vmatprep.subr.mxu0 0.0
        %1013 = vmatpush1.msra.mxu0 0.0
        %1014 = vmatprep.subr.mxu0 0.0
        %1015 = vmatpush1.msra.mxu0 0.0
        %1016 = vmatprep.subr.mxu0 0.0
        %1017 = vmatpush1.msra.mxu0 0.0
        %1018 = vmatprep.subr.mxu0 0.0
        %1019 = vmatpush1.msra.mxu0 0.0
        %1020 = vmatprep.subr.mxu0 0.0
        %1021 = vmatpush1.msra.mxu0 0.0
        %1022 = vmatprep.subr.mxu0 0.0
        %1023 = vmatpush1.msra.mxu0 0.0
        %1024 = vmatprep.subr.mxu0 0.0
        %1025 = vmatpush1.msra.mxu0 0.0
        %1026 = vmatprep.subr.mxu0 0.0
        %1027 = vmatpush1.msra.mxu0 0.0
        %1028 = vmatprep.subr.mxu0 0.0
        %1029 = vmatpush1.msra.mxu0 0.0
        %1030 = vmatprep.subr.mxu0 0.0
        %1031 = vmatpush1.msra.mxu0 0.0
        %1032 = vmatprep.subr.mxu0 0.0
        %1033 = vmatpush1.msra.mxu0 0.0
        %1034 = vmatprep.subr.mxu0 0.0
        %1035 = vmatpush1.msra.mxu0 0.0
        %1036 = vmatprep.subr.mxu0 0.0
        %1037 = vmatpush1.msra.mxu0 0.0
        %1038 = vmatprep.subr.mxu0 0.0
        %1039 = vmatpush1.msra.mxu0 0.0
        %1040 = vmatprep.subr.mxu0 0.0
        %1041 = vmatpush1.msra.mxu0 0.0
        %1042 = vmatprep.subr.mxu0 0.0
        %1043 = vmatpush1.msra.mxu0 0.0
        %1044 = vmatprep.subr.mxu0 0.0
        %1045 = vmatpush1.msra.mxu0 0.0
        %1046 = vmatprep.subr.mxu0 0.0
        %1047 = vmatpush1.msra.mxu0 0.0
        %1048 = vmatprep.subr.mxu0 0.0
        %1049 = vmatpush1.msra.mxu0 0.0
        %1050 = vmatprep.subr.mxu0 0.0
        %1051 = vmatpush1.msra.mxu0 0.0
        %1052 = vmatprep.subr.mxu0 0.0
        %1053 = vmatpush1.msra.mxu0 0.0
        %1054 = vmatprep.subr.mxu0 0.0
        %1055 = vmatpush1.msra.mxu0 0.0
        %1056 = vmatprep.subr.mxu0 0.0
        %1057 = vmatpush1.msra.mxu0 0.0
        %1058 = vmatprep.subr.mxu0 0.0
        %1059 = vmatpush1.msra.mxu0 0.0
        %1060 = vmatprep.subr.mxu0 0.0
        %1061 = vmatpush1.msra.mxu0 0.0
        %1062 = vmatprep.mubr.f32.mxu0 0.0
        %1063 = vmatmul.mubr.f32.gmra.mrb[0].mxu0 %v972
        %v1064 = vpop.f32.mrb[0].mxu0
        %v1065 = vadd.f32 0.0, %v1064
        %v1066 = vpop.f32.mrb[0].mxu0
        %v1067 = vadd.f32 0.0, %v1066
        %1068 = vdwg.mxu0
        %1069 = vmatprep.subr.mxu0 %v965
        %1070 = vmatpush1.msra.mxu0 %v964
        %1071 = vmatprep.subr.mxu0 %v984
        %1072 = vmatpush1.msra.mxu0 %v981
        %1073 = vmatprep.subr.mxu0 0.0
        %1074 = vmatpush1.msra.mxu0 0.0
        %1075 = vmatprep.subr.mxu0 0.0
        %1076 = vmatpush1.msra.mxu0 0.0
        %1077 = vmatprep.subr.mxu0 0.0
        %1078 = vmatpush1.msra.mxu0 0.0
        %1079 = vmatprep.subr.mxu0 0.0
        %1080 = vmatpush1.msra.mxu0 0.0
        %1081 = vmatprep.subr.mxu0 0.0
        %1082 = vmatpush1.msra.mxu0 0.0
        %1083 = vmatprep.subr.mxu0 0.0
        %1084 = vmatpush1.msra.mxu0 0.0
        %1085 = vmatprep.subr.mxu0 0.0
        %1086 = vmatpush1.msra.mxu0 0.0
        %1087 = vmatprep.subr.mxu0 0.0
        %1088 = vmatpush1.msra.mxu0 0.0
        %1089 = vmatprep.subr.mxu0 0.0
        %1090 = vmatpush1.msra.mxu0 0.0
        %1091 = vmatprep.subr.mxu0 0.0
        %1092 = vmatpush1.msra.mxu0 0.0
        %1093 = vmatprep.subr.mxu0 0.0
        %1094 = vmatpush1.msra.mxu0 0.0
        %1095 = vmatprep.subr.mxu0 0.0
        %1096 = vmatpush1.msra.mxu0 0.0
        %1097 = vmatprep.subr.mxu0 0.0
        %1098 = vmatpush1.msra.mxu0 0.0
        %1099 = vmatprep.subr.mxu0 0.0
        %1100 = vmatpush1.msra.mxu0 0.0
        %1101 = vmatprep.subr.mxu0 0.0
        %1102 = vmatpush1.msra.mxu0 0.0
        %1103 = vmatprep.subr.mxu0 0.0
        %1104 = vmatpush1.msra.mxu0 0.0
        %1105 = vmatprep.subr.mxu0 0.0
        %1106 = vmatpush1.msra.mxu0 0.0
        %1107 = vmatprep.subr.mxu0 0.0
        %1108 = vmatpush1.msra.mxu0 0.0
        %1109 = vmatprep.subr.mxu0 0.0
        %1110 = vmatpush1.msra.mxu0 0.0
        %1111 = vmatprep.subr.mxu0 0.0
        %1112 = vmatpush1.msra.mxu0 0.0
        %1113 = vmatprep.subr.mxu0 0.0
        %1114 = vmatpush1.msra.mxu0 0.0
        %1115 = vmatprep.subr.mxu0 0.0
        %1116 = vmatpush1.msra.mxu0 0.0
        %1117 = vmatprep.subr.mxu0 0.0
        %1118 = vmatpush1.msra.mxu0 0.0
        %1119 = vmatprep.subr.mxu0 0.0
        %1120 = vmatpush1.msra.mxu0 0.0
        %1121 = vmatprep.subr.mxu0 0.0
        %1122 = vmatpush1.msra.mxu0 0.0
        %1123 = vmatprep.subr.mxu0 0.0
        %1124 = vmatpush1.msra.mxu0 0.0
        %1125 = vmatprep.subr.mxu0 0.0
        %1126 = vmatpush1.msra.mxu0 0.0
        %1127 = vmatprep.subr.mxu0 0.0
        %1128 = vmatpush1.msra.mxu0 0.0
        %1129 = vmatprep.subr.mxu0 0.0
        %1130 = vmatpush1.msra.mxu0 0.0
        %1131 = vmatprep.subr.mxu0 0.0
        %1132 = vmatpush1.msra.mxu0 0.0
        %1133 = vmatprep.mubr.f32.mxu0 0.0
        %1134 = vmatmul.mubr.f32.gmra.mrb[0].mxu0 %v972
        %v1135 = vpop.f32.mrb[0].mxu0
        %v1136 = vadd.f32 0.0, %v1135
        %v1137 = vpop.f32.mrb[0].mxu0
        %v1138 = vadd.f32 0.0, %v1137
        %1139 = vdwg.mxu0
        %1140 = vmatprep.subr.mxu0 %v967
        %1141 = vmatpush1.msra.mxu0 %v966
        %1142 = vmatprep.subr.mxu0 %v990
        %1143 = vmatpush1.msra.mxu0 %v987
        %1144 = vmatprep.subr.mxu0 0.0
        %1145 = vmatpush1.msra.mxu0 0.0
        %1146 = vmatprep.subr.mxu0 0.0
        %1147 = vmatpush1.msra.mxu0 0.0
        %1148 = vmatprep.subr.mxu0 0.0
        %1149 = vmatpush1.msra.mxu0 0.0
        %1150 = vmatprep.subr.mxu0 0.0
        %1151 = vmatpush1.msra.mxu0 0.0
        %1152 = vmatprep.subr.mxu0 0.0
        %1153 = vmatpush1.msra.mxu0 0.0
        %1154 = vmatprep.subr.mxu0 0.0
        %1155 = vmatpush1.msra.mxu0 0.0
        %1156 = vmatprep.subr.mxu0 0.0
        %1157 = vmatpush1.msra.mxu0 0.0
        %1158 = vmatprep.subr.mxu0 0.0
        %1159 = vmatpush1.msra.mxu0 0.0
        %1160 = vmatprep.subr.mxu0 0.0
        %1161 = vmatpush1.msra.mxu0 0.0
        %1162 = vmatprep.subr.mxu0 0.0
        %1163 = vmatpush1.msra.mxu0 0.0
        %1164 = vmatprep.subr.mxu0 0.0
        %1165 = vmatpush1.msra.mxu0 0.0
        %1166 = vmatprep.subr.mxu0 0.0
        %1167 = vmatpush1.msra.mxu0 0.0
        %1168 = vmatprep.subr.mxu0 0.0
        %1169 = vmatpush1.msra.mxu0 0.0
        %1170 = vmatprep.subr.mxu0 0.0
        %1171 = vmatpush1.msra.mxu0 0.0
        %1172 = vmatprep.subr.mxu0 0.0
        %1173 = vmatpush1.msra.mxu0 0.0
        %1174 = vmatprep.subr.mxu0 0.0
        %1175 = vmatpush1.msra.mxu0 0.0
        %1176 = vmatprep.subr.mxu0 0.0
        %1177 = vmatpush1.msra.mxu0 0.0
        %1178 = vmatprep.subr.mxu0 0.0
        %1179 = vmatpush1.msra.mxu0 0.0
        %1180 = vmatprep.subr.mxu0 0.0
        %1181 = vmatpush1.msra.mxu0 0.0
        %1182 = vmatprep.subr.mxu0 0.0
        %1183 = vmatpush1.msra.mxu0 0.0
        %1184 = vmatprep.subr.mxu0 0.0
        %1185 = vmatpush1.msra.mxu0 0.0
        %1186 = vmatprep.subr.mxu0 0.0
        %1187 = vmatpush1.msra.mxu0 0.0
        %1188 = vmatprep.subr.mxu0 0.0
        %1189 = vmatpush1.msra.mxu0 0.0
        %1190 = vmatprep.subr.mxu0 0.0
        %1191 = vmatpush1.msra.mxu0 0.0
        %1192 = vmatprep.subr.mxu0 0.0
        %1193 = vmatpush1.msra.mxu0 0.0
        %1194 = vmatprep.subr.mxu0 0.0
        %1195 = vmatpush1.msra.mxu0 0.0
        %1196 = vmatprep.subr.mxu0 0.0
        %1197 = vmatpush1.msra.mxu0 0.0
        %1198 = vmatprep.subr.mxu0 0.0
        %1199 = vmatpush1.msra.mxu0 0.0
        %1200 = vmatprep.subr.mxu0 0.0
        %1201 = vmatpush1.msra.mxu0 0.0
        %1202 = vmatprep.subr.mxu0 0.0
        %1203 = vmatpush1.msra.mxu0 0.0
        %1204 = vmatprep.mubr.f32.mxu0 0.0
        %1205 = vmatmul.mubr.f32.gmra.mrb[0].mxu0 %v972
        %v1206 = vpop.f32.mrb[0].mxu0
        %v1207 = vadd.f32 0.0, %v1206
        %v1208 = vpop.f32.mrb[0].mxu0
        %v1209 = vadd.f32 0.0, %v1208
        %1210 = vdwg.mxu0
        %1211 = vmatprep.subr.mxu0 %v969
        %1212 = vmatpush1.msra.mxu0 %v968
        %1213 = vmatprep.subr.mxu0 %v996
        %1214 = vmatpush1.msra.mxu0 %v993
        %1215 = vmatprep.subr.mxu0 0.0
        %1216 = vmatpush1.msra.mxu0 0.0
        %1217 = vmatprep.subr.mxu0 0.0
        %1218 = vmatpush1.msra.mxu0 0.0
        %1219 = vmatprep.subr.mxu0 0.0
        %1220 = vmatpush1.msra.mxu0 0.0
        %1221 = vmatprep.subr.mxu0 0.0
        %1222 = vmatpush1.msra.mxu0 0.0
        %1223 = vmatprep.subr.mxu0 0.0
        %1224 = vmatpush1.msra.mxu0 0.0
        %1225 = vmatprep.subr.mxu0 0.0
        %1226 = vmatpush1.msra.mxu0 0.0
        %1227 = vmatprep.subr.mxu0 0.0
        %1228 = vmatpush1.msra.mxu0 0.0
        %1229 = vmatprep.subr.mxu0 0.0
        %1230 = vmatpush1.msra.mxu0 0.0
        %1231 = vmatprep.subr.mxu0 0.0
        %1232 = vmatpush1.msra.mxu0 0.0
        %1233 = vmatprep.subr.mxu0 0.0
        %1234 = vmatpush1.msra.mxu0 0.0
        %1235 = vmatprep.subr.mxu0 0.0
        %1236 = vmatpush1.msra.mxu0 0.0
        %1237 = vmatprep.subr.mxu0 0.0
        %1238 = vmatpush1.msra.mxu0 0.0
        %1239 = vmatprep.subr.mxu0 0.0
        %1240 = vmatpush1.msra.mxu0 0.0
        %1241 = vmatprep.subr.mxu0 0.0
        %1242 = vmatpush1.msra.mxu0 0.0
        %1243 = vmatprep.subr.mxu0 0.0
        %1244 = vmatpush1.msra.mxu0 0.0
        %1245 = vmatprep.subr.mxu0 0.0
        %1246 = vmatpush1.msra.mxu0 0.0
        %1247 = vmatprep.subr.mxu0 0.0
        %1248 = vmatpush1.msra.mxu0 0.0
        %1249 = vmatprep.subr.mxu0 0.0
        %1250 = vmatpush1.msra.mxu0 0.0
        %1251 = vmatprep.subr.mxu0 0.0
        %1252 = vmatpush1.msra.mxu0 0.0
        %1253 = vmatprep.subr.mxu0 0.0
        %1254 = vmatpush1.msra.mxu0 0.0
        %1255 = vmatprep.subr.mxu0 0.0
        %1256 = vmatpush1.msra.mxu0 0.0
        %1257 = vmatprep.subr.mxu0 0.0
        %1258 = vmatpush1.msra.mxu0 0.0
        %1259 = vmatprep.subr.mxu0 0.0
        %1260 = vmatpush1.msra.mxu0 0.0
        %1261 = vmatprep.subr.mxu0 0.0
        %1262 = vmatpush1.msra.mxu0 0.0
        %1263 = vmatprep.subr.mxu0 0.0
        %1264 = vmatpush1.msra.mxu0 0.0
        %1265 = vmatprep.subr.mxu0 0.0
        %1266 = vmatpush1.msra.mxu0 0.0
        %1267 = vmatprep.subr.mxu0 0.0
        %1268 = vmatpush1.msra.mxu0 0.0
        %1269 = vmatprep.subr.mxu0 0.0
        %1270 = vmatpush1.msra.mxu0 0.0
        %1271 = vmatprep.subr.mxu0 0.0
        %1272 = vmatpush1.msra.mxu0 0.0
        %1273 = vmatprep.subr.mxu0 0.0
        %1274 = vmatpush1.msra.mxu0 0.0
        %1275 = vmatprep.mubr.f32.mxu0 0.0
        %1276 = vmatmul.mubr.f32.gmra.mrb[0].mxu0 %v972
        %v1277 = vpop.f32.mrb[0].mxu0
        %v1278 = vadd.f32 0.0, %v1277
        %v1279 = vpop.f32.mrb[0].mxu0
        %v1280 = vadd.f32 0.0, %v1279
        %1281 = vdwg.mxu0
        %v1282 = vmul.f32 %v1065, 0.5
        %v1283 = vmul.f32 %v1067, 0.5
        %v1284 = vmul.f32 %v1136, 0.5
        %v1285 = vmul.f32 %v1138, 0.5
        %v1286 = vmul.f32 %v1207, 0.5
        %v1287 = vmul.f32 %v1209, 0.5
        %v1288 = vmul.f32 %v1278, 0.5
        %v1289 = vmul.f32 %v1280, 0.5
        %v1290 = vmul.f32 %v1065, 0.70710677
        %v1291 = vmul.f32 %v1067, 0.70710677
        %v1292 = vmul.f32 %v1136, 0.70710677
        %v1293 = vmul.f32 %v1138, 0.70710677
        %v1294 = vmul.f32 %v1207, 0.70710677
        %v1295 = vmul.f32 %v1209, 0.70710677
        %v1296 = vmul.f32 %v1278, 0.70710677
        %v1297 = vmul.f32 %v1280, 0.70710677
        %v1298 = verf.f32.pop %v1290
        %v1299 = verf.f32.pop %v1291
        %v1300 = verf.f32.pop %v1292
        %v1301 = verf.f32.pop %v1293
        %v1302 = verf.f32.pop %v1294
        %v1303 = verf.f32.pop %v1295
        %v1304 = verf.f32.pop %v1296
        %v1305 = verf.f32.pop %v1297
        %v1306 = vadd.f32 %v1298, 1.0
        %v1307 = vadd.f32 %v1299, 1.0
        %v1308 = vadd.f32 %v1300, 1.0
        %v1309 = vadd.f32 %v1301, 1.0
        %v1310 = vadd.f32 %v1302, 1.0
        %v1311 = vadd.f32 %v1303, 1.0
        %v1312 = vadd.f32 %v1304, 1.0
        %v1313 = vadd.f32 %v1305, 1.0
        %v1314 = vmul.f32 %v1282, %v1306
        %v1315 = vmul.f32 %v1283, %v1307
        %v1316 = vmul.f32 %v1284, %v1308
        %v1317 = vmul.f32 %v1285, %v1309
        %v1318 = vmul.f32 %v1286, %v1310
        %v1319 = vmul.f32 %v1287, %v1311
        %v1320 = vmul.f32 %v1288, %v1312
        %v1321 = vmul.f32 %v1289, %v1313
        %1323 = vset.pattern.permute.xlu0 0
        %1324 = vperm.xlu0 %1323, %v518
        %v1325 = vpop.permute.xlu0 %1324
        %v1327 = vmul.f32 %v1314, %v1325
        %v1328 = vmul.f32 %v1315, %v1325
        %v1329 = vmul.f32 %v1316, %v1325
        %v1330 = vmul.f32 %v1317, %v1325
        %v1331 = vmul.f32 %v1318, %v1325
        %v1332 = vmul.f32 %v1319, %v1325
        %v1333 = vmul.f32 %v1320, %v1325
        %v1334 = vmul.f32 %v1321, %v1325
        %1336 = vset.pattern.permute.xlu0 0
        %1337 = vperm.xlu0 %1336, %v519
        %v1338 = vpop.permute.xlu0 %1337
        %v1340 = vadd.f32 %v1327, %v1338
        %v1341 = vadd.f32 %v1328, %v1338
        %v1342 = vadd.f32 %v1329, %v1338
        %v1343 = vadd.f32 %v1330, %v1338
        %v1344 = vadd.f32 %v1331, %v1338
        %v1345 = vadd.f32 %v1332, %v1338
        %v1346 = vadd.f32 %v1333, %v1338
        %v1347 = vadd.f32 %v1334, %v1338
        %v1348 = vld [vmem:[%s10] sm:$0xff]
        %v1349 = vld [vmem:[%s10 + $0x8] sm:$0xff]
        %v1350 = vld [vmem:[%s10 + $0x10] sm:$0xff]
        %v1351 = vld [vmem:[%s10 + $0x18] sm:$0xff]
        %v1352 = vld [vmem:[%s10 + $0x20] sm:$0xff]
        %v1353 = vld [vmem:[%s10 + $0x28] sm:$0xff]
        %v1354 = vld [vmem:[%s10 + $0x30] sm:$0xff]
        %v1355 = vld [vmem:[%s10 + $0x38] sm:$0xff]
        %v1356 = vld [vmem:[%s10 + $0x40] sm:$0xff]
        %v1357 = vld [vmem:[%s10 + $0x48] sm:$0xff]
        %v1358 = vld [vmem:[%s10 + $0x50] sm:$0xff]
        %v1359 = vld [vmem:[%s10 + $0x58] sm:$0xff]
        %v1360 = vld [vmem:[%s10 + $0x60] sm:$0xff]
        %v1361 = vld [vmem:[%s10 + $0x68] sm:$0xff]
        %v1362 = vld [vmem:[%s10 + $0x70] sm:$0xff]
        %v1363 = vld [vmem:[%s10 + $0x78] sm:$0xff]
        %v1364 = vld [vmem:[%s10 + $0x80] sm:$0xff]
        %v1365 = vld [vmem:[%s10 + $0x88] sm:$0xff]
        %v1366 = vld [vmem:[%s10 + $0x90] sm:$0xff]
        %v1367 = vld [vmem:[%s10 + $0x98] sm:$0xff]
        %v1368 = vld [vmem:[%s10 + $0xa0] sm:$0xff]
        %v1369 = vld [vmem:[%s10 + $0xa8] sm:$0xff]
        %v1370 = vld [vmem:[%s10 + $0xb0] sm:$0xff]
        %v1371 = vld [vmem:[%s10 + $0xb8] sm:$0xff]
        %v1372 = vld [vmem:[%s10 + $0xc0] sm:$0xff]
        %v1373 = vld [vmem:[%s10 + $0xc8] sm:$0xff]
        %v1374 = vld [vmem:[%s10 + $0xd0] sm:$0xff]
        %v1375 = vld [vmem:[%s10 + $0xd8] sm:$0xff]
        %v1376 = vld [vmem:[%s10 + $0xe0] sm:$0xff]
        %v1377 = vld [vmem:[%s10 + $0xe8] sm:$0xff]
        %v1378 = vld [vmem:[%s10 + $0xf0] sm:$0xff]
        %v1379 = vld [vmem:[%s10 + $0xf8] sm:$0xff]
        %v1380 = vld [vmem:[%s10 + $0x100] sm:$0xff]
        %v1381 = vld [vmem:[%s10 + $0x108] sm:$0xff]
        %v1382 = vld [vmem:[%s10 + $0x110] sm:$0xff]
        %v1383 = vld [vmem:[%s10 + $0x118] sm:$0xff]
        %v1384 = vld [vmem:[%s10 + $0x120] sm:$0xff]
        %v1385 = vld [vmem:[%s10 + $0x128] sm:$0xff]
        %v1386 = vld [vmem:[%s10 + $0x130] sm:$0xff]
        %v1387 = vld [vmem:[%s10 + $0x138] sm:$0xff]
        %v1388 = vld [vmem:[%s10 + $0x140] sm:$0xff]
        %v1389 = vld [vmem:[%s10 + $0x148] sm:$0xff]
        %v1390 = vld [vmem:[%s10 + $0x150] sm:$0xff]
        %v1391 = vld [vmem:[%s10 + $0x158] sm:$0xff]
        %v1392 = vld [vmem:[%s10 + $0x160] sm:$0xff]
        %v1393 = vld [vmem:[%s10 + $0x168] sm:$0xff]
        %v1394 = vld [vmem:[%s10 + $0x170] sm:$0xff]
        %v1395 = vld [vmem:[%s10 + $0x178] sm:$0xff]
        %v1396 = vld [vmem:[%s10 + $0x180] sm:$0xff]
        %v1397 = vld [vmem:[%s10 + $0x188] sm:$0xff]
        %v1398 = vld [vmem:[%s10 + $0x190] sm:$0xff]
        %v1399 = vld [vmem:[%s10 + $0x198] sm:$0xff]
        %v1400 = vld [vmem:[%s10 + $0x1a0] sm:$0xff]
        %v1401 = vld [vmem:[%s10 + $0x1a8] sm:$0xff]
        %v1402 = vld [vmem:[%s10 + $0x1b0] sm:$0xff]
        %v1403 = vld [vmem:[%s10 + $0x1b8] sm:$0xff]
        %v1404 = vld [vmem:[%s10 + $0x1c0] sm:$0xff]
        %v1405 = vld [vmem:[%s10 + $0x1c8] sm:$0xff]
        %v1406 = vld [vmem:[%s10 + $0x1d0] sm:$0xff]
        %v1407 = vld [vmem:[%s10 + $0x1d8] sm:$0xff]
        %v1408 = vld [vmem:[%s10 + $0x1e0] sm:$0xff]
        %v1409 = vld [vmem:[%s10 + $0x1e8] sm:$0xff]
        %v1410 = vld [vmem:[%s10 + $0x1f0] sm:$0xff]
        %v1411 = vld [vmem:[%s10 + $0x1f8] sm:$0xff]
        %v1412 = vld [vmem:[%s10 + $0x200] sm:$0xff]
        %v1413 = vld [vmem:[%s10 + $0x208] sm:$0xff]
        %v1414 = vld [vmem:[%s10 + $0x210] sm:$0xff]
        %v1415 = vld [vmem:[%s10 + $0x218] sm:$0xff]
        %v1416 = vld [vmem:[%s10 + $0x220] sm:$0xff]
        %v1417 = vld [vmem:[%s10 + $0x228] sm:$0xff]
        %v1418 = vld [vmem:[%s10 + $0x230] sm:$0xff]
        %v1419 = vld [vmem:[%s10 + $0x238] sm:$0xff]
        %v1420 = vld [vmem:[%s10 + $0x240] sm:$0xff]
        %v1421 = vld [vmem:[%s10 + $0x248] sm:$0xff]
        %v1422 = vld [vmem:[%s10 + $0x250] sm:$0xff]
        %v1423 = vld [vmem:[%s10 + $0x258] sm:$0xff]
        %v1424 = vld [vmem:[%s10 + $0x260] sm:$0xff]
        %v1425 = vld [vmem:[%s10 + $0x268] sm:$0xff]
        %v1426 = vld [vmem:[%s10 + $0x270] sm:$0xff]
        %v1427 = vld [vmem:[%s10 + $0x278] sm:$0xff]
        %v1428 = vld [vmem:[%s10 + $0x280] sm:$0xff]
        %v1429 = vld [vmem:[%s10 + $0x288] sm:$0xff]
        %v1430 = vld [vmem:[%s10 + $0x290] sm:$0xff]
        %v1431 = vld [vmem:[%s10 + $0x298] sm:$0xff]
        %v1432 = vld [vmem:[%s10 + $0x2a0] sm:$0xff]
        %v1433 = vld [vmem:[%s10 + $0x2a8] sm:$0xff]
        %v1434 = vld [vmem:[%s10 + $0x2b0] sm:$0xff]
        %v1435 = vld [vmem:[%s10 + $0x2b8] sm:$0xff]
        %v1436 = vld [vmem:[%s10 + $0x2c0] sm:$0xff]
        %v1437 = vld [vmem:[%s10 + $0x2c8] sm:$0xff]
        %v1438 = vld [vmem:[%s10 + $0x2d0] sm:$0xff]
        %v1439 = vld [vmem:[%s10 + $0x2d8] sm:$0xff]
        %v1440 = vld [vmem:[%s10 + $0x2e0] sm:$0xff]
        %v1441 = vld [vmem:[%s10 + $0x2e8] sm:$0xff]
        %v1442 = vld [vmem:[%s10 + $0x2f0] sm:$0xff]
        %v1443 = vld [vmem:[%s10 + $0x2f8] sm:$0xff]
        %v1444 = vld [vmem:[%s10 + $0x300] sm:$0xff]
        %v1445 = vld [vmem:[%s10 + $0x308] sm:$0xff]
        %v1446 = vld [vmem:[%s10 + $0x310] sm:$0xff]
        %v1447 = vld [vmem:[%s10 + $0x318] sm:$0xff]
        %v1448 = vld [vmem:[%s10 + $0x320] sm:$0xff]
        %v1449 = vld [vmem:[%s10 + $0x328] sm:$0xff]
        %v1450 = vld [vmem:[%s10 + $0x330] sm:$0xff]
        %v1451 = vld [vmem:[%s10 + $0x338] sm:$0xff]
        %v1452 = vld [vmem:[%s10 + $0x340] sm:$0xff]
        %v1453 = vld [vmem:[%s10 + $0x348] sm:$0xff]
        %v1454 = vld [vmem:[%s10 + $0x350] sm:$0xff]
        %v1455 = vld [vmem:[%s10 + $0x358] sm:$0xff]
        %v1456 = vld [vmem:[%s10 + $0x360] sm:$0xff]
        %v1457 = vld [vmem:[%s10 + $0x368] sm:$0xff]
        %v1458 = vld [vmem:[%s10 + $0x370] sm:$0xff]
        %v1459 = vld [vmem:[%s10 + $0x378] sm:$0xff]
        %v1460 = vld [vmem:[%s10 + $0x380] sm:$0xff]
        %v1461 = vld [vmem:[%s10 + $0x388] sm:$0xff]
        %v1462 = vld [vmem:[%s10 + $0x390] sm:$0xff]
        %v1463 = vld [vmem:[%s10 + $0x398] sm:$0xff]
        %v1464 = vld [vmem:[%s10 + $0x3a0] sm:$0xff]
        %v1465 = vld [vmem:[%s10 + $0x3a8] sm:$0xff]
        %v1466 = vld [vmem:[%s10 + $0x3b0] sm:$0xff]
        %v1467 = vld [vmem:[%s10 + $0x3b8] sm:$0xff]
        %v1468 = vld [vmem:[%s10 + $0x3c0] sm:$0xff]
        %v1469 = vld [vmem:[%s10 + $0x3c8] sm:$0xff]
        %v1470 = vld [vmem:[%s10 + $0x3d0] sm:$0xff]
        %v1471 = vld [vmem:[%s10 + $0x3d8] sm:$0xff]
        %v1472 = vld [vmem:[%s10 + $0x3e0] sm:$0xff]
        %v1473 = vld [vmem:[%s10 + $0x3e8] sm:$0xff]
        %v1474 = vld [vmem:[%s10 + $0x3f0] sm:$0xff]
        %v1475 = vld [vmem:[%s10 + $0x3f8] sm:$0xff]
        %v1476 = vld [vmem:[%s10 + $0x400] sm:$0xff]
        %v1477 = vld [vmem:[%s10 + $0x408] sm:$0xff]
        %v1478 = vld [vmem:[%s10 + $0x410] sm:$0xff]
        %v1479 = vld [vmem:[%s10 + $0x418] sm:$0xff]
        %v1480 = vld [vmem:[%s10 + $0x420] sm:$0xff]
        %v1481 = vld [vmem:[%s10 + $0x428] sm:$0xff]
        %v1482 = vld [vmem:[%s10 + $0x430] sm:$0xff]
        %v1483 = vld [vmem:[%s10 + $0x438] sm:$0xff]
        %v1484 = vld [vmem:[%s10 + $0x440] sm:$0xff]
        %v1485 = vld [vmem:[%s10 + $0x448] sm:$0xff]
        %v1486 = vld [vmem:[%s10 + $0x450] sm:$0xff]
        %v1487 = vld [vmem:[%s10 + $0x458] sm:$0xff]
        %v1488 = vld [vmem:[%s10 + $0x460] sm:$0xff]
        %v1489 = vld [vmem:[%s10 + $0x468] sm:$0xff]
        %v1490 = vld [vmem:[%s10 + $0x470] sm:$0xff]
        %v1491 = vld [vmem:[%s10 + $0x478] sm:$0xff]
        %v1492 = vld [vmem:[%s10 + $0x480] sm:$0xff]
        %v1493 = vld [vmem:[%s10 + $0x488] sm:$0xff]
        %v1494 = vld [vmem:[%s10 + $0x490] sm:$0xff]
        %v1495 = vld [vmem:[%s10 + $0x498] sm:$0xff]
        %v1496 = vld [vmem:[%s10 + $0x4a0] sm:$0xff]
        %v1497 = vld [vmem:[%s10 + $0x4a8] sm:$0xff]
        %v1498 = vld [vmem:[%s10 + $0x4b0] sm:$0xff]
        %v1499 = vld [vmem:[%s10 + $0x4b8] sm:$0xff]
        %v1500 = vld [vmem:[%s10 + $0x4c0] sm:$0xff]
        %v1501 = vld [vmem:[%s10 + $0x4c8] sm:$0xff]
        %v1502 = vld [vmem:[%s10 + $0x4d0] sm:$0xff]
        %v1503 = vld [vmem:[%s10 + $0x4d8] sm:$0xff]
        %v1504 = vld [vmem:[%s10 + $0x4e0] sm:$0xff]
        %v1505 = vld [vmem:[%s10 + $0x4e8] sm:$0xff]
        %v1506 = vld [vmem:[%s10 + $0x4f0] sm:$0xff]
        %v1507 = vld [vmem:[%s10 + $0x4f8] sm:$0xff]
        %v1508 = vld [vmem:[%s10 + $0x500] sm:$0xff]
        %v1509 = vld [vmem:[%s10 + $0x508] sm:$0xff]
        %v1510 = vld [vmem:[%s10 + $0x510] sm:$0xff]
        %v1511 = vld [vmem:[%s10 + $0x518] sm:$0xff]
        %v1512 = vld [vmem:[%s10 + $0x520] sm:$0xff]
        %v1513 = vld [vmem:[%s10 + $0x528] sm:$0xff]
        %v1514 = vld [vmem:[%s10 + $0x530] sm:$0xff]
        %v1515 = vld [vmem:[%s10 + $0x538] sm:$0xff]
        %v1516 = vld [vmem:[%s10 + $0x540] sm:$0xff]
        %v1517 = vld [vmem:[%s10 + $0x548] sm:$0xff]
        %v1518 = vld [vmem:[%s10 + $0x550] sm:$0xff]
        %v1519 = vld [vmem:[%s10 + $0x558] sm:$0xff]
        %v1520 = vld [vmem:[%s10 + $0x560] sm:$0xff]
        %v1521 = vld [vmem:[%s10 + $0x568] sm:$0xff]
        %v1522 = vld [vmem:[%s10 + $0x570] sm:$0xff]
        %v1523 = vld [vmem:[%s10 + $0x578] sm:$0xff]
        %v1524 = vld [vmem:[%s10 + $0x580] sm:$0xff]
        %v1525 = vld [vmem:[%s10 + $0x588] sm:$0xff]
        %v1526 = vld [vmem:[%s10 + $0x590] sm:$0xff]
        %v1527 = vld [vmem:[%s10 + $0x598] sm:$0xff]
        %v1528 = vld [vmem:[%s10 + $0x5a0] sm:$0xff]
        %v1529 = vld [vmem:[%s10 + $0x5a8] sm:$0xff]
        %v1530 = vld [vmem:[%s10 + $0x5b0] sm:$0xff]
        %v1531 = vld [vmem:[%s10 + $0x5b8] sm:$0xff]
        %v1532 = vld [vmem:[%s10 + $0x5c0] sm:$0xff]
        %v1533 = vld [vmem:[%s10 + $0x5c8] sm:$0xff]
        %v1534 = vld [vmem:[%s10 + $0x5d0] sm:$0xff]
        %v1535 = vld [vmem:[%s10 + $0x5d8] sm:$0xff]
        %v1536 = vld [vmem:[%s10 + $0x5e0] sm:$0xff]
        %v1537 = vld [vmem:[%s10 + $0x5e8] sm:$0xff]
        %v1538 = vld [vmem:[%s10 + $0x5f0] sm:$0xff]
        %v1539 = vld [vmem:[%s10 + $0x5f8] sm:$0xff]
        %v1540 = vld [vmem:[%s10 + $0x600] sm:$0xff]
        %v1541 = vld [vmem:[%s10 + $0x608] sm:$0xff]
        %v1542 = vld [vmem:[%s10 + $0x610] sm:$0xff]
        %v1543 = vld [vmem:[%s10 + $0x618] sm:$0xff]
        %v1544 = vld [vmem:[%s10 + $0x620] sm:$0xff]
        %v1545 = vld [vmem:[%s10 + $0x628] sm:$0xff]
        %v1546 = vld [vmem:[%s10 + $0x630] sm:$0xff]
        %v1547 = vld [vmem:[%s10 + $0x638] sm:$0xff]
        %v1548 = vld [vmem:[%s10 + $0x640] sm:$0xff]
        %v1549 = vld [vmem:[%s10 + $0x648] sm:$0xff]
        %v1550 = vld [vmem:[%s10 + $0x650] sm:$0xff]
        %v1551 = vld [vmem:[%s10 + $0x658] sm:$0xff]
        %v1552 = vld [vmem:[%s10 + $0x660] sm:$0xff]
        %v1553 = vld [vmem:[%s10 + $0x668] sm:$0xff]
        %v1554 = vld [vmem:[%s10 + $0x670] sm:$0xff]
        %v1555 = vld [vmem:[%s10 + $0x678] sm:$0xff]
        %v1556 = vld [vmem:[%s10 + $0x680] sm:$0xff]
        %v1557 = vld [vmem:[%s10 + $0x688] sm:$0xff]
        %v1558 = vld [vmem:[%s10 + $0x690] sm:$0xff]
        %v1559 = vld [vmem:[%s10 + $0x698] sm:$0xff]
        %v1560 = vld [vmem:[%s10 + $0x6a0] sm:$0xff]
        %v1561 = vld [vmem:[%s10 + $0x6a8] sm:$0xff]
        %v1562 = vld [vmem:[%s10 + $0x6b0] sm:$0xff]
        %v1563 = vld [vmem:[%s10 + $0x6b8] sm:$0xff]
        %v1564 = vld [vmem:[%s10 + $0x6c0] sm:$0xff]
        %v1565 = vld [vmem:[%s10 + $0x6c8] sm:$0xff]
        %v1566 = vld [vmem:[%s10 + $0x6d0] sm:$0xff]
        %v1567 = vld [vmem:[%s10 + $0x6d8] sm:$0xff]
        %v1568 = vld [vmem:[%s10 + $0x6e0] sm:$0xff]
        %v1569 = vld [vmem:[%s10 + $0x6e8] sm:$0xff]
        %v1570 = vld [vmem:[%s10 + $0x6f0] sm:$0xff]
        %v1571 = vld [vmem:[%s10 + $0x6f8] sm:$0xff]
        %v1572 = vld [vmem:[%s10 + $0x700] sm:$0xff]
        %v1573 = vld [vmem:[%s10 + $0x708] sm:$0xff]
        %v1574 = vld [vmem:[%s10 + $0x710] sm:$0xff]
        %v1575 = vld [vmem:[%s10 + $0x718] sm:$0xff]
        %v1576 = vld [vmem:[%s10 + $0x720] sm:$0xff]
        %v1577 = vld [vmem:[%s10 + $0x728] sm:$0xff]
        %v1578 = vld [vmem:[%s10 + $0x730] sm:$0xff]
        %v1579 = vld [vmem:[%s10 + $0x738] sm:$0xff]
        %v1580 = vld [vmem:[%s10 + $0x740] sm:$0xff]
        %v1581 = vld [vmem:[%s10 + $0x748] sm:$0xff]
        %v1582 = vld [vmem:[%s10 + $0x750] sm:$0xff]
        %v1583 = vld [vmem:[%s10 + $0x758] sm:$0xff]
        %v1584 = vld [vmem:[%s10 + $0x760] sm:$0xff]
        %v1585 = vld [vmem:[%s10 + $0x768] sm:$0xff]
        %v1586 = vld [vmem:[%s10 + $0x770] sm:$0xff]
        %v1587 = vld [vmem:[%s10 + $0x778] sm:$0xff]
        %v1588 = vld [vmem:[%s10 + $0x780] sm:$0xff]
        %v1589 = vld [vmem:[%s10 + $0x788] sm:$0xff]
        %v1590 = vld [vmem:[%s10 + $0x790] sm:$0xff]
        %v1591 = vld [vmem:[%s10 + $0x798] sm:$0xff]
        %v1592 = vld [vmem:[%s10 + $0x7a0] sm:$0xff]
        %v1593 = vld [vmem:[%s10 + $0x7a8] sm:$0xff]
        %v1594 = vld [vmem:[%s10 + $0x7b0] sm:$0xff]
        %v1595 = vld [vmem:[%s10 + $0x7b8] sm:$0xff]
        %v1596 = vld [vmem:[%s10 + $0x7c0] sm:$0xff]
        %v1597 = vld [vmem:[%s10 + $0x7c8] sm:$0xff]
        %v1598 = vld [vmem:[%s10 + $0x7d0] sm:$0xff]
        %v1599 = vld [vmem:[%s10 + $0x7d8] sm:$0xff]
        %v1600 = vld [vmem:[%s10 + $0x7e0] sm:$0xff]
        %v1601 = vld [vmem:[%s10 + $0x7e8] sm:$0xff]
        %v1602 = vld [vmem:[%s10 + $0x7f0] sm:$0xff]
        %v1603 = vld [vmem:[%s10 + $0x7f8] sm:$0xff]
        %1604 = vrot.lane.b32.xlu0 %v1340, 127
        %v1605 = vpop.permute.xlu0 %1604
        %1606 = vrot.lane.b32.xlu0 %v1341, 127
        %v1607 = vpop.permute.xlu0 %1606
        %1608 = vrot.lane.b32.xlu0 %v1342, 127
        %v1609 = vpop.permute.xlu0 %1608
        %1610 = vrot.lane.b32.xlu0 %v1343, 127
        %v1611 = vpop.permute.xlu0 %1610
        %1612 = vrot.lane.b32.xlu0 %v1344, 127
        %v1613 = vpop.permute.xlu0 %1612
        %1614 = vrot.lane.b32.xlu0 %v1345, 127
        %v1615 = vpop.permute.xlu0 %1614
        %1616 = vrot.lane.b32.xlu0 %v1346, 127
        %v1617 = vpop.permute.xlu0 %1616
        %1618 = vrot.lane.b32.xlu0 %v1347, 127
        %v1619 = vpop.permute.xlu0 %1618
        %v1620 = vsel %vm679, %v1617, %v1619
        %v1621 = vsel %vm679, %v1615, %v1617
        %v1622 = vsel %vm679, %v1613, %v1615
        %v1623 = vsel %vm679, %v1611, %v1613
        %v1624 = vsel %vm679, %v1609, %v1611
        %v1625 = vsel %vm679, %v1607, %v1609
        %v1626 = vsel %vm679, %v1605, %v1607
        %v1627 = vsel %vm679, %v1619, %v1605
        %v1628 = vmax.f32 %v1340, %v1626
        %v1629 = vmax.f32 %v1341, %v1625
        %v1630 = vmax.f32 %v1342, %v1624
        %v1631 = vmax.f32 %v1343, %v1623
        %v1632 = vmax.f32 %v1344, %v1622
        %v1633 = vmax.f32 %v1345, %v1621
        %v1634 = vmax.f32 %v1346, %v1620
        %v1635 = vmax.f32 %v1347, %v1627
        %1636 = vrot.lane.b32.xlu0 %v1340, 98
        %v1637 = vpop.permute.xlu0 %1636
        %1638 = vrot.lane.b32.xlu0 %v1341, 98
        %v1639 = vpop.permute.xlu0 %1638
        %1640 = vrot.lane.b32.xlu0 %v1342, 98
        %v1641 = vpop.permute.xlu0 %1640
        %1642 = vrot.lane.b32.xlu0 %v1343, 98
        %v1643 = vpop.permute.xlu0 %1642
        %1644 = vrot.lane.b32.xlu0 %v1344, 98
        %v1645 = vpop.permute.xlu0 %1644
        %1646 = vrot.lane.b32.xlu0 %v1345, 98
        %v1647 = vpop.permute.xlu0 %1646
        %1648 = vrot.lane.b32.xlu0 %v1346, 98
        %v1649 = vpop.permute.xlu0 %1648
        %1650 = vrot.lane.b32.xlu0 %v1347, 98
        %v1651 = vpop.permute.xlu0 %1650
        %v1652 = vsel %vm729, %v1649, %v1651
        %v1653 = vsel %vm729, %v1647, %v1649
        %v1654 = vsel %vm729, %v1645, %v1647
        %v1655 = vsel %vm729, %v1643, %v1645
        %v1656 = vsel %vm729, %v1641, %v1643
        %v1657 = vsel %vm729, %v1639, %v1641
        %v1658 = vsel %vm729, %v1637, %v1639
        %v1659 = vsel %vm729, %v1651, %v1637
        %v1660 = vmax.f32 %v1628, %v1658
        %v1661 = vmax.f32 %v1629, %v1657
        %v1662 = vmax.f32 %v1630, %v1656
        %v1663 = vmax.f32 %v1631, %v1655
        %v1664 = vmax.f32 %v1632, %v1654
        %v1665 = vmax.f32 %v1633, %v1653
        %v1666 = vmax.f32 %v1634, %v1652
        %v1667 = vmax.f32 %v1635, %v1659
        %1668 = vrot.lane.b32.xlu0 %v1340, 97
        %v1669 = vpop.permute.xlu0 %1668
        %1670 = vrot.lane.b32.xlu0 %v1341, 97
        %v1671 = vpop.permute.xlu0 %1670
        %1672 = vrot.lane.b32.xlu0 %v1342, 97
        %v1673 = vpop.permute.xlu0 %1672
        %1674 = vrot.lane.b32.xlu0 %v1343, 97
        %v1675 = vpop.permute.xlu0 %1674
        %1676 = vrot.lane.b32.xlu0 %v1344, 97
        %v1677 = vpop.permute.xlu0 %1676
        %1678 = vrot.lane.b32.xlu0 %v1345, 97
        %v1679 = vpop.permute.xlu0 %1678
        %1680 = vrot.lane.b32.xlu0 %v1346, 97
        %v1681 = vpop.permute.xlu0 %1680
        %1682 = vrot.lane.b32.xlu0 %v1347, 97
        %v1683 = vpop.permute.xlu0 %1682
        %v1684 = vsel %vm754, %v1681, %v1683
        %v1685 = vsel %vm754, %v1679, %v1681
        %v1686 = vsel %vm754, %v1677, %v1679
        %v1687 = vsel %vm754, %v1675, %v1677
        %v1688 = vsel %vm754, %v1673, %v1675
        %v1689 = vsel %vm754, %v1671, %v1673
        %v1690 = vsel %vm754, %v1669, %v1671
        %v1691 = vsel %vm754, %v1683, %v1669
        %v1692 = vmax.f32 %v1660, %v1690
        %v1693 = vmax.f32 %v1661, %v1689
        %v1694 = vmax.f32 %v1662, %v1688
        %v1695 = vmax.f32 %v1663, %v1687
        %v1696 = vmax.f32 %v1664, %v1686
        %v1697 = vmax.f32 %v1665, %v1685
        %v1698 = vmax.f32 %v1666, %v1684
        %v1699 = vmax.f32 %v1667, %v1691
        %1700 = vmatprep.subr.mxu0 %v1349
        %1701 = vmatpush1.msra.mxu0 %v1348
        %1702 = vmatprep.subr.mxu0 %v1351
        %1703 = vmatpush1.msra.mxu0 %v1350
        %1704 = vmatprep.subr.mxu0 %v1353
        %1705 = vmatpush1.msra.mxu0 %v1352
        %1706 = vmatprep.subr.mxu0 %v1355
        %1707 = vmatpush1.msra.mxu0 %v1354
        %1708 = vmatprep.subr.mxu0 %v1357
        %1709 = vmatpush1.msra.mxu0 %v1356
        %1710 = vmatprep.subr.mxu0 %v1359
        %1711 = vmatpush1.msra.mxu0 %v1358
        %1712 = vmatprep.subr.mxu0 %v1361
        %1713 = vmatpush1.msra.mxu0 %v1360
        %1714 = vmatprep.subr.mxu0 %v1363
        %1715 = vmatpush1.msra.mxu0 %v1362
        %1716 = vmatprep.subr.mxu0 %v1365
        %1717 = vmatpush1.msra.mxu0 %v1364
        %1718 = vmatprep.subr.mxu0 %v1367
        %1719 = vmatpush1.msra.mxu0 %v1366
        %1720 = vmatprep.subr.mxu0 %v1369
        %1721 = vmatpush1.msra.mxu0 %v1368
        %1722 = vmatprep.subr.mxu0 %v1371
        %1723 = vmatpush1.msra.mxu0 %v1370
        %1724 = vmatprep.subr.mxu0 %v1373
        %1725 = vmatpush1.msra.mxu0 %v1372
        %1726 = vmatprep.subr.mxu0 %v1375
        %1727 = vmatpush1.msra.mxu0 %v1374
        %1728 = vmatprep.subr.mxu0 %v1377
        %1729 = vmatpush1.msra.mxu0 %v1376
        %1730 = vmatprep.subr.mxu0 %v1379
        %1731 = vmatpush1.msra.mxu0 %v1378
        %1732 = vmatprep.subr.mxu0 %v1381
        %1733 = vmatpush1.msra.mxu0 %v1380
        %1734 = vmatprep.subr.mxu0 %v1383
        %1735 = vmatpush1.msra.mxu0 %v1382
        %1736 = vmatprep.subr.mxu0 %v1385
        %1737 = vmatpush1.msra.mxu0 %v1384
        %1738 = vmatprep.subr.mxu0 %v1387
        %1739 = vmatpush1.msra.mxu0 %v1386
        %1740 = vmatprep.subr.mxu0 %v1389
        %1741 = vmatpush1.msra.mxu0 %v1388
        %1742 = vmatprep.subr.mxu0 %v1391
        %1743 = vmatpush1.msra.mxu0 %v1390
        %1744 = vmatprep.subr.mxu0 %v1393
        %1745 = vmatpush1.msra.mxu0 %v1392
        %1746 = vmatprep.subr.mxu0 %v1395
        %1747 = vmatpush1.msra.mxu0 %v1394
        %1748 = vmatprep.subr.mxu0 %v1397
        %1749 = vmatpush1.msra.mxu0 %v1396
        %1750 = vmatprep.subr.mxu0 %v1399
        %1751 = vmatpush1.msra.mxu0 %v1398
        %1752 = vmatprep.subr.mxu0 %v1401
        %1753 = vmatpush1.msra.mxu0 %v1400
        %1754 = vmatprep.subr.mxu0 %v1403
        %1755 = vmatpush1.msra.mxu0 %v1402
        %1756 = vmatprep.subr.mxu0 %v1405
        %1757 = vmatpush1.msra.mxu0 %v1404
        %1758 = vmatprep.subr.mxu0 %v1407
        %1759 = vmatpush1.msra.mxu0 %v1406
        %1760 = vmatprep.subr.mxu0 %v1409
        %1761 = vmatpush1.msra.mxu0 %v1408
        %1762 = vmatprep.subr.mxu0 %v1411
        %1763 = vmatpush1.msra.mxu0 %v1410
        %1764 = vmatprep.mubr.f32.mxu0 %v1693
        %1765 = vmatmul.mubr.f32.gmra.mrb[0].mxu0 %v1692
        %v1766 = vpop.f32.mrb[0].mxu0
        %v1767 = vadd.f32 0.0, %v1766
        %v1768 = vpop.f32.mrb[0].mxu0
        %v1769 = vadd.f32 0.0, %v1768
        %1770 = vdwg.mxu0
        %1771 = vmatprep.subr.mxu0 %v1413
        %1772 = vmatpush1.msra.mxu0 %v1412
        %1773 = vmatprep.subr.mxu0 %v1415
        %1774 = vmatpush1.msra.mxu0 %v1414
        %1775 = vmatprep.subr.mxu0 %v1417
        %1776 = vmatpush1.msra.mxu0 %v1416
        %1777 = vmatprep.subr.mxu0 %v1419
        %1778 = vmatpush1.msra.mxu0 %v1418
        %1779 = vmatprep.subr.mxu0 %v1421
        %1780 = vmatpush1.msra.mxu0 %v1420
        %1781 = vmatprep.subr.mxu0 %v1423
        %1782 = vmatpush1.msra.mxu0 %v1422
        %1783 = vmatprep.subr.mxu0 %v1425
        %1784 = vmatpush1.msra.mxu0 %v1424
        %1785 = vmatprep.subr.mxu0 %v1427
        %1786 = vmatpush1.msra.mxu0 %v1426
        %1787 = vmatprep.subr.mxu0 %v1429
        %1788 = vmatpush1.msra.mxu0 %v1428
        %1789 = vmatprep.subr.mxu0 %v1431
        %1790 = vmatpush1.msra.mxu0 %v1430
        %1791 = vmatprep.subr.mxu0 %v1433
        %1792 = vmatpush1.msra.mxu0 %v1432
        %1793 = vmatprep.subr.mxu0 %v1435
        %1794 = vmatpush1.msra.mxu0 %v1434
        %1795 = vmatprep.subr.mxu0 %v1437
        %1796 = vmatpush1.msra.mxu0 %v1436
        %1797 = vmatprep.subr.mxu0 %v1439
        %1798 = vmatpush1.msra.mxu0 %v1438
        %1799 = vmatprep.subr.mxu0 %v1441
        %1800 = vmatpush1.msra.mxu0 %v1440
        %1801 = vmatprep.subr.mxu0 %v1443
        %1802 = vmatpush1.msra.mxu0 %v1442
        %1803 = vmatprep.subr.mxu0 %v1445
        %1804 = vmatpush1.msra.mxu0 %v1444
        %1805 = vmatprep.subr.mxu0 %v1447
        %1806 = vmatpush1.msra.mxu0 %v1446
        %1807 = vmatprep.subr.mxu0 %v1449
        %1808 = vmatpush1.msra.mxu0 %v1448
        %1809 = vmatprep.subr.mxu0 %v1451
        %1810 = vmatpush1.msra.mxu0 %v1450
        %1811 = vmatprep.subr.mxu0 %v1453
        %1812 = vmatpush1.msra.mxu0 %v1452
        %1813 = vmatprep.subr.mxu0 %v1455
        %1814 = vmatpush1.msra.mxu0 %v1454
        %1815 = vmatprep.subr.mxu0 %v1457
        %1816 = vmatpush1.msra.mxu0 %v1456
        %1817 = vmatprep.subr.mxu0 %v1459
        %1818 = vmatpush1.msra.mxu0 %v1458
        %1819 = vmatprep.subr.mxu0 %v1461
        %1820 = vmatpush1.msra.mxu0 %v1460
        %1821 = vmatprep.subr.mxu0 %v1463
        %1822 = vmatpush1.msra.mxu0 %v1462
        %1823 = vmatprep.subr.mxu0 %v1465
        %1824 = vmatpush1.msra.mxu0 %v1464
        %1825 = vmatprep.subr.mxu0 %v1467
        %1826 = vmatpush1.msra.mxu0 %v1466
        %1827 = vmatprep.subr.mxu0 %v1469
        %1828 = vmatpush1.msra.mxu0 %v1468
        %1829 = vmatprep.subr.mxu0 %v1471
        %1830 = vmatpush1.msra.mxu0 %v1470
        %1831 = vmatprep.subr.mxu0 %v1473
        %1832 = vmatpush1.msra.mxu0 %v1472
        %1833 = vmatprep.subr.mxu0 %v1475
        %1834 = vmatpush1.msra.mxu0 %v1474
        %1835 = vmatprep.mubr.f32.mxu0 %v1695
        %1836 = vmatmul.mubr.f32.gmra.mrb[0].mxu0 %v1694
        %v1837 = vpop.f32.mrb[0].mxu0
        %v1838 = vadd.f32 %v1767, %v1837
        %v1839 = vpop.f32.mrb[0].mxu0
        %v1840 = vadd.f32 %v1769, %v1839
        %1841 = vdwg.mxu0
        %1842 = vmatprep.subr.mxu0 %v1477
        %1843 = vmatpush1.msra.mxu0 %v1476
        %1844 = vmatprep.subr.mxu0 %v1479
        %1845 = vmatpush1.msra.mxu0 %v1478
        %1846 = vmatprep.subr.mxu0 %v1481
        %1847 = vmatpush1.msra.mxu0 %v1480
        %1848 = vmatprep.subr.mxu0 %v1483
        %1849 = vmatpush1.msra.mxu0 %v1482
        %1850 = vmatprep.subr.mxu0 %v1485
        %1851 = vmatpush1.msra.mxu0 %v1484
        %1852 = vmatprep.subr.mxu0 %v1487
        %1853 = vmatpush1.msra.mxu0 %v1486
        %1854 = vmatprep.subr.mxu0 %v1489
        %1855 = vmatpush1.msra.mxu0 %v1488
        %1856 = vmatprep.subr.mxu0 %v1491
        %1857 = vmatpush1.msra.mxu0 %v1490
        %1858 = vmatprep.subr.mxu0 %v1493
        %1859 = vmatpush1.msra.mxu0 %v1492
        %1860 = vmatprep.subr.mxu0 %v1495
        %1861 = vmatpush1.msra.mxu0 %v1494
        %1862 = vmatprep.subr.mxu0 %v1497
        %1863 = vmatpush1.msra.mxu0 %v1496
        %1864 = vmatprep.subr.mxu0 %v1499
        %1865 = vmatpush1.msra.mxu0 %v1498
        %1866 = vmatprep.subr.mxu0 %v1501
        %1867 = vmatpush1.msra.mxu0 %v1500
        %1868 = vmatprep.subr.mxu0 %v1503
        %1869 = vmatpush1.msra.mxu0 %v1502
        %1870 = vmatprep.subr.mxu0 %v1505
        %1871 = vmatpush1.msra.mxu0 %v1504
        %1872 = vmatprep.subr.mxu0 %v1507
        %1873 = vmatpush1.msra.mxu0 %v1506
        %1874 = vmatprep.subr.mxu0 %v1509
        %1875 = vmatpush1.msra.mxu0 %v1508
        %1876 = vmatprep.subr.mxu0 %v1511
        %1877 = vmatpush1.msra.mxu0 %v1510
        %1878 = vmatprep.subr.mxu0 %v1513
        %1879 = vmatpush1.msra.mxu0 %v1512
        %1880 = vmatprep.subr.mxu0 %v1515
        %1881 = vmatpush1.msra.mxu0 %v1514
        %1882 = vmatprep.subr.mxu0 %v1517
        %1883 = vmatpush1.msra.mxu0 %v1516
        %1884 = vmatprep.subr.mxu0 %v1519
        %1885 = vmatpush1.msra.mxu0 %v1518
        %1886 = vmatprep.subr.mxu0 %v1521
        %1887 = vmatpush1.msra.mxu0 %v1520
        %1888 = vmatprep.subr.mxu0 %v1523
        %1889 = vmatpush1.msra.mxu0 %v1522
        %1890 = vmatprep.subr.mxu0 %v1525
        %1891 = vmatpush1.msra.mxu0 %v1524
        %1892 = vmatprep.subr.mxu0 %v1527
        %1893 = vmatpush1.msra.mxu0 %v1526
        %1894 = vmatprep.subr.mxu0 %v1529
        %1895 = vmatpush1.msra.mxu0 %v1528
        %1896 = vmatprep.subr.mxu0 %v1531
        %1897 = vmatpush1.msra.mxu0 %v1530
        %1898 = vmatprep.subr.mxu0 %v1533
        %1899 = vmatpush1.msra.mxu0 %v1532
        %1900 = vmatprep.subr.mxu0 %v1535
        %1901 = vmatpush1.msra.mxu0 %v1534
        %1902 = vmatprep.subr.mxu0 %v1537
        %1903 = vmatpush1.msra.mxu0 %v1536
        %1904 = vmatprep.subr.mxu0 %v1539
        %1905 = vmatpush1.msra.mxu0 %v1538
        %1906 = vmatprep.mubr.f32.mxu0 %v1697
        %1907 = vmatmul.mubr.f32.gmra.mrb[0].mxu0 %v1696
        %v1908 = vpop.f32.mrb[0].mxu0
        %v1909 = vadd.f32 %v1838, %v1908
        %v1910 = vpop.f32.mrb[0].mxu0
        %v1911 = vadd.f32 %v1840, %v1910
        %1912 = vdwg.mxu0
        %1913 = vmatprep.subr.mxu0 %v1541
        %1914 = vmatpush1.msra.mxu0 %v1540
        %1915 = vmatprep.subr.mxu0 %v1543
        %1916 = vmatpush1.msra.mxu0 %v1542
        %1917 = vmatprep.subr.mxu0 %v1545
        %1918 = vmatpush1.msra.mxu0 %v1544
        %1919 = vmatprep.subr.mxu0 %v1547
        %1920 = vmatpush1.msra.mxu0 %v1546
        %1921 = vmatprep.subr.mxu0 %v1549
        %1922 = vmatpush1.msra.mxu0 %v1548
        %1923 = vmatprep.subr.mxu0 %v1551
        %1924 = vmatpush1.msra.mxu0 %v1550
        %1925 = vmatprep.subr.mxu0 %v1553
        %1926 = vmatpush1.msra.mxu0 %v1552
        %1927 = vmatprep.subr.mxu0 %v1555
        %1928 = vmatpush1.msra.mxu0 %v1554
        %1929 = vmatprep.subr.mxu0 %v1557
        %1930 = vmatpush1.msra.mxu0 %v1556
        %1931 = vmatprep.subr.mxu0 %v1559
        %1932 = vmatpush1.msra.mxu0 %v1558
        %1933 = vmatprep.subr.mxu0 %v1561
        %1934 = vmatpush1.msra.mxu0 %v1560
        %1935 = vmatprep.subr.mxu0 %v1563
        %1936 = vmatpush1.msra.mxu0 %v1562
        %1937 = vmatprep.subr.mxu0 %v1565
        %1938 = vmatpush1.msra.mxu0 %v1564
        %1939 = vmatprep.subr.mxu0 %v1567
        %1940 = vmatpush1.msra.mxu0 %v1566
        %1941 = vmatprep.subr.mxu0 %v1569
        %1942 = vmatpush1.msra.mxu0 %v1568
        %1943 = vmatprep.subr.mxu0 %v1571
        %1944 = vmatpush1.msra.mxu0 %v1570
        %1945 = vmatprep.subr.mxu0 %v1573
        %1946 = vmatpush1.msra.mxu0 %v1572
        %1947 = vmatprep.subr.mxu0 %v1575
        %1948 = vmatpush1.msra.mxu0 %v1574
        %1949 = vmatprep.subr.mxu0 %v1577
        %1950 = vmatpush1.msra.mxu0 %v1576
        %1951 = vmatprep.subr.mxu0 %v1579
        %1952 = vmatpush1.msra.mxu0 %v1578
        %1953 = vmatprep.subr.mxu0 %v1581
        %1954 = vmatpush1.msra.mxu0 %v1580
        %1955 = vmatprep.subr.mxu0 %v1583
        %1956 = vmatpush1.msra.mxu0 %v1582
        %1957 = vmatprep.subr.mxu0 %v1585
        %1958 = vmatpush1.msra.mxu0 %v1584
        %1959 = vmatprep.subr.mxu0 %v1587
        %1960 = vmatpush1.msra.mxu0 %v1586
        %1961 = vmatprep.subr.mxu0 %v1589
        %1962 = vmatpush1.msra.mxu0 %v1588
        %1963 = vmatprep.subr.mxu0 %v1591
        %1964 = vmatpush1.msra.mxu0 %v1590
        %1965 = vmatprep.subr.mxu0 %v1593
        %1966 = vmatpush1.msra.mxu0 %v1592
        %1967 = vmatprep.subr.mxu0 %v1595
        %1968 = vmatpush1.msra.mxu0 %v1594
        %1969 = vmatprep.subr.mxu0 %v1597
        %1970 = vmatpush1.msra.mxu0 %v1596
        %1971 = vmatprep.subr.mxu0 %v1599
        %1972 = vmatpush1.msra.mxu0 %v1598
        %1973 = vmatprep.subr.mxu0 %v1601
        %1974 = vmatpush1.msra.mxu0 %v1600
        %1975 = vmatprep.subr.mxu0 %v1603
        %1976 = vmatpush1.msra.mxu0 %v1602
        %1977 = vmatprep.mubr.f32.mxu0 %v1699
        %1978 = vmatmul.mubr.f32.gmra.mrb[0].mxu0 %v1698
        %v1979 = vpop.f32.mrb[0].mxu0
        %v1980 = vadd.f32 %v1909, %v1979
        %v1981 = vpop.f32.mrb[0].mxu0
        %v1982 = vadd.f32 %v1911, %v1981
        %1983 = vdwg.mxu0
        %v1984 = vld [vmem:[%s4] sm:$0xff]
        %v1985 = vld [vmem:[%s4 + $0x8] sm:$0xf]
        %v1986 = vld [vmem:[%s5] sm:$0xff]
        %v1987 = vld [vmem:[%s5 + $0x8] sm:$0xf]
        %v1988 = vld [vmem:[%s6] sm:$0xff]
        %v1989 = vld [vmem:[%s6 + $0x8] sm:$0xf]
        %1990 = vrot.lane.b32.xlu0 %v1980, 17
        %v1991 = vpop.permute.xlu0 %1990
        %1992 = vrot.lane.b32.xlu0 %v1982, 17
        %v1993 = vpop.permute.xlu0 %1992
        %vm1994 = vcmp.lt.s32.totalorder %v578, 17
        %v1995 = vsel %vm1994, %v1991, %v1993
        %v1996 = vsel %vm1994, %v1993, %v1991
        %1997 = vrot.lane.b32.xlu0 %v1980, 16
        %v1998 = vpop.permute.xlu0 %1997
        %1999 = vrot.lane.b32.xlu0 %v1982, 16
        %v2000 = vpop.permute.xlu0 %1999
        %vm2001 = vcmp.lt.s32.totalorder %v578, 16
        %v2002 = vsel %vm2001, %v1998, %v2000
        %v2003 = vsel %vm2001, %v2000, %v1998
        %2004 = vrot.lane.b32.xlu0 %v1980, 15
        %v2005 = vpop.permute.xlu0 %2004
        %2006 = vrot.lane.b32.xlu0 %v1982, 15
        %v2007 = vpop.permute.xlu0 %2006
        %vm2008 = vcmp.lt.s32.totalorder %v578, 15
        %v2009 = vsel %vm2008, %v2005, %v2007
        %v2010 = vsel %vm2008, %v2007, %v2005
        %2011 = vrot.lane.b32.xlu0 %v1980, 1
        %v2012 = vpop.permute.xlu0 %2011
        %2013 = vrot.lane.b32.xlu0 %v1982, 1
        %v2014 = vpop.permute.xlu0 %2013
        %v2015 = vsel %vm654, %v2012, %v2014
        %v2016 = vsel %vm654, %v2014, %v2012
        %2017 = vrot.lane.b32.xlu0 %v1980, 127
        %v2018 = vpop.permute.xlu0 %2017
        %2019 = vrot.lane.b32.xlu0 %v1982, 127
        %v2020 = vpop.permute.xlu0 %2019
        %v2021 = vsel %vm679, %v2018, %v2020
        %v2022 = vsel %vm679, %v2020, %v2018
        %2023 = vrot.lane.b32.xlu0 %v1980, 113
        %v2024 = vpop.permute.xlu0 %2023
        %2025 = vrot.lane.b32.xlu0 %v1982, 113
        %v2026 = vpop.permute.xlu0 %2025
        %vm2027 = vcmp.lt.s32.totalorder %v578, 113
        %v2028 = vsel %vm2027, %v2024, %v2026
        %v2029 = vsel %vm2027, %v2026, %v2024
        %2030 = vrot.lane.b32.xlu0 %v1980, 112
        %v2031 = vpop.permute.xlu0 %2030
        %2032 = vrot.lane.b32.xlu0 %v1982, 112
        %v2033 = vpop.permute.xlu0 %2032
        %vm2034 = vcmp.lt.s32.totalorder %v578, 112
        %v2035 = vsel %vm2034, %v2031, %v2033
        %v2036 = vsel %vm2034, %v2033, %v2031
        %2037 = vrot.lane.b32.xlu0 %v1980, 111
        %v2038 = vpop.permute.xlu0 %2037
        %2039 = vrot.lane.b32.xlu0 %v1982, 111
        %v2040 = vpop.permute.xlu0 %2039
        %vm2041 = vcmp.lt.s32.totalorder %v578, 111
        %v2042 = vsel %vm2041, %v2038, %v2040
        %v2043 = vsel %vm2041, %v2040, %v2038
        %v2046 = vrot.slane %v2003, 2
        %v2047 = vrot.slane %v2002, 2
        %v2052 = vrot.slane %v2010, 4
        %v2053 = vrot.slane %v2009, 4
        %v2058 = vrot.slane %v2016, 6
        %v2059 = vrot.slane %v2015, 6
        %v2064 = vrot.slane %v2021, 2
        %v2065 = vrot.slane %v2022, 2
        %v2070 = vrot.slane %v2028, 4
        %v2071 = vrot.slane %v2029, 4
        %v2076 = vrot.slane %v2035, 6
        %v2077 = vrot.slane %v2036, 6
        %v2080 = vsel %vm952, %v1996, %v2046
        %v2081 = vsel %vm952, %v1995, %v2047
        %v2082 = vsel %vm934, %v2046, %v2052
        %v2083 = vsel %vm934, %v2047, %v2053
        %v2084 = vsel %vm916, %v2052, %v2058
        %v2085 = vsel %vm916, %v2053, %v2059
        %v2086 = vsel %vm952, %v1980, %v2064
        %v2087 = vsel %vm952, %v1982, %v2065
        %v2088 = vsel %vm934, %v2064, %v2070
        %v2089 = vsel %vm934, %v2065, %v2071
        %v2090 = vsel %vm916, %v2070, %v2076
        %v2091 = vsel %vm916, %v2071, %v2077
        %vm2092 = vcmask 441344
        %v2094 = vsel %vm2092, %v1984, 0
        %v2097 = vsel %vm2092, %v1985, 0
        %v2100 = vsel %vm952, %v2042, 0
        %v2103 = vsel %vm952, %v2043, 0
        %2105 = vmatprep.subr.mxu0 %v2081
        %2106 = vmatpush1.msra.mxu0 %v2080
        %2107 = vmatprep.subr.mxu0 %v2083
        %2108 = vmatpush1.msra.mxu0 %v2082
        %2109 = vmatprep.subr.mxu0 %v2085
        %2110 = vmatpush1.msra.mxu0 %v2084
        %2111 = vmatprep.subr.mxu0 %v2087
        %2112 = vmatpush1.msra.mxu0 %v2086
        %2113 = vmatprep.subr.mxu0 %v2089
        %2114 = vmatpush1.msra.mxu0 %v2088
        %2115 = vmatprep.subr.mxu0 %v2091
        %2116 = vmatpush1.msra.mxu0 %v2090
        %2117 = vmatprep.subr.mxu0 %v2103
        %2118 = vmatpush1.msra.mxu0 %v2100
        %2119 = vmatprep.subr.mxu0 0.0
        %2120 = vmatpush1.msra.mxu0 0.0
        %2121 = vmatprep.subr.mxu0 0.0
        %2122 = vmatpush1.msra.mxu0 0.0
        %2123 = vmatprep.subr.mxu0 0.0
        %2124 = vmatpush1.msra.mxu0 0.0
        %2125 = vmatprep.subr.mxu0 0.0
        %2126 = vmatpush1.msra.mxu0 0.0
        %2127 = vmatprep.subr.mxu0 0.0
        %2128 = vmatpush1.msra.mxu0 0.0
        %2129 = vmatprep.subr.mxu0 0.0
        %2130 = vmatpush1.msra.mxu0 0.0
        %2131 = vmatprep.subr.mxu0 0.0
        %2132 = vmatpush1.msra.mxu0 0.0
        %2133 = vmatprep.subr.mxu0 0.0
        %2134 = vmatpush1.msra.mxu0 0.0
        %2135 = vmatprep.subr.mxu0 0.0
        %2136 = vmatpush1.msra.mxu0 0.0
        %2137 = vmatprep.subr.mxu0 0.0
        %2138 = vmatpush1.msra.mxu0 0.0
        %2139 = vmatprep.subr.mxu0 0.0
        %2140 = vmatpush1.msra.mxu0 0.0
        %2141 = vmatprep.subr.mxu0 0.0
        %2142 = vmatpush1.msra.mxu0 0.0
        %2143 = vmatprep.subr.mxu0 0.0
        %2144 = vmatpush1.msra.mxu0 0.0
        %2145 = vmatprep.subr.mxu0 0.0
        %2146 = vmatpush1.msra.mxu0 0.0
        %2147 = vmatprep.subr.mxu0 0.0
        %2148 = vmatpush1.msra.mxu0 0.0
        %2149 = vmatprep.subr.mxu0 0.0
        %2150 = vmatpush1.msra.mxu0 0.0
        %2151 = vmatprep.subr.mxu0 0.0
        %2152 = vmatpush1.msra.mxu0 0.0
        %2153 = vmatprep.subr.mxu0 0.0
        %2154 = vmatpush1.msra.mxu0 0.0
        %2155 = vmatprep.subr.mxu0 0.0
        %2156 = vmatpush1.msra.mxu0 0.0
        %2157 = vmatprep.subr.mxu0 0.0
        %2158 = vmatpush1.msra.mxu0 0.0
        %2159 = vmatprep.subr.mxu0 0.0
        %2160 = vmatpush1.msra.mxu0 0.0
        %2161 = vmatprep.subr.mxu0 0.0
        %2162 = vmatpush1.msra.mxu0 0.0
        %2163 = vmatprep.subr.mxu0 0.0
        %2164 = vmatpush1.msra.mxu0 0.0
        %2165 = vmatprep.subr.mxu0 0.0
        %2166 = vmatpush1.msra.mxu0 0.0
        %2167 = vmatprep.subr.mxu0 0.0
        %2168 = vmatpush1.msra.mxu0 0.0
        %2169 = vmatprep.mubr.f32.mxu0 0.0
        %2170 = vmatmul.mubr.f32.gmra.mrb[0].mxu0 %v2094
        %v2171 = vpop.f32.mrb[0].mxu0
        %v2172 = vadd.f32 0.0, %v2171
        %v2173 = vpop.f32.mrb[0].mxu0
        %v2174 = vadd.f32 0.0, %v2173
        %2175 = vmatprep.mubr.f32.mxu0 0.0
        %2176 = vmatmul.mubr.f32.gmra.mrb[0].mxu0 %v2097
        %v2177 = vpop.f32.mrb[0].mxu0
        %v2178 = vadd.f32 0.0, %v2177
        %v2179 = vpop.f32.mrb[0].mxu0
        %v2180 = vadd.f32 0.0, %v2179
        %2181 = vdwg.mxu0
        %v2182 = vmul.f32 %v2172, 0.5
        %v2183 = vmul.f32 %v2174, 0.5
        %v2184 = vmul.f32 %v2178, 0.5
        %v2185 = vmul.f32 %v2180, 0.5
        %v2186 = vmul.f32 %v2172, 0.70710677
        %v2187 = vmul.f32 %v2174, 0.70710677
        %v2188 = vmul.f32 %v2178, 0.70710677
        %v2189 = vmul.f32 %v2180, 0.70710677
        %v2190 = verf.f32.pop %v2186
        %v2191 = verf.f32.pop %v2187
        %v2192 = verf.f32.pop %v2188
        %v2193 = verf.f32.pop %v2189
        %v2194 = vadd.f32 %v2190, 1.0
        %v2195 = vadd.f32 %v2191, 1.0
        %v2196 = vadd.f32 %v2192, 1.0
        %v2197 = vadd.f32 %v2193, 1.0
        %v2198 = vmul.f32 %v2182, %v2194
        %v2199 = vmul.f32 %v2183, %v2195
        %v2200 = vmul.f32 %v2184, %v2196
        %v2201 = vmul.f32 %v2185, %v2197
        %2203 = vset.pattern.permute.xlu0 0
        %2204 = vperm.xlu0 %2203, %v1986
        %v2205 = vpop.permute.xlu0 %2204
        %2208 = vset.pattern.permute.xlu0 0
        %2209 = vperm.xlu0 %2208, %v1987
        %v2210 = vpop.permute.xlu0 %2209
        %v2212 = vmul.f32 %v2198, %v2205
        %v2213 = vmul.f32 %v2199, %v2205
        %v2214 = vmul.f32 %v2200, %v2210
        %v2215 = vmul.f32 %v2201, %v2210
        %2217 = vset.pattern.permute.xlu0 0
        %2218 = vperm.xlu0 %2217, %v1988
        %v2219 = vpop.permute.xlu0 %2218
        %2222 = vset.pattern.permute.xlu0 0
        %2223 = vperm.xlu0 %2222, %v1989
        %v2224 = vpop.permute.xlu0 %2223
        %v2226 = vadd.f32 %v2212, %v2219
        %v2227 = vadd.f32 %v2213, %v2219
        %v2228 = vadd.f32 %v2214, %v2224
        %v2229 = vadd.f32 %v2215, %v2224
        %v2230 = vld [vmem:[%s11] sm:$0xff]
        %v2231 = vld [vmem:[%s11 + $0x8] sm:$0xff]
        %v2232 = vld [vmem:[%s11 + $0x10] sm:$0xff]
        %v2233 = vld [vmem:[%s11 + $0x18] sm:$0xff]
        %v2234 = vld [vmem:[%s11 + $0x20] sm:$0xff]
        %v2235 = vld [vmem:[%s11 + $0x28] sm:$0xff]
        %v2236 = vld [vmem:[%s11 + $0x30] sm:$0xff]
        %v2237 = vld [vmem:[%s11 + $0x38] sm:$0xff]
        %v2238 = vld [vmem:[%s11 + $0x40] sm:$0xff]
        %v2239 = vld [vmem:[%s11 + $0x48] sm:$0xff]
        %v2240 = vld [vmem:[%s11 + $0x50] sm:$0xff]
        %v2241 = vld [vmem:[%s11 + $0x58] sm:$0xff]
        %v2242 = vld [vmem:[%s11 + $0x60] sm:$0xff]
        %v2243 = vld [vmem:[%s11 + $0x68] sm:$0xff]
        %v2244 = vld [vmem:[%s11 + $0x70] sm:$0xff]
        %v2245 = vld [vmem:[%s11 + $0x78] sm:$0xff]
        %v2246 = vld [vmem:[%s11 + $0x80] sm:$0xff]
        %v2247 = vld [vmem:[%s11 + $0x88] sm:$0xff]
        %v2248 = vld [vmem:[%s11 + $0x90] sm:$0xff]
        %v2249 = vld [vmem:[%s11 + $0x98] sm:$0xff]
        %v2250 = vld [vmem:[%s11 + $0xa0] sm:$0xff]
        %v2251 = vld [vmem:[%s11 + $0xa8] sm:$0xff]
        %v2252 = vld [vmem:[%s11 + $0xb0] sm:$0xff]
        %v2253 = vld [vmem:[%s11 + $0xb8] sm:$0xff]
        %v2254 = vld [vmem:[%s11 + $0xc0] sm:$0xff]
        %v2255 = vld [vmem:[%s11 + $0xc8] sm:$0xff]
        %v2256 = vld [vmem:[%s11 + $0xd0] sm:$0xff]
        %v2257 = vld [vmem:[%s11 + $0xd8] sm:$0xff]
        %v2258 = vld [vmem:[%s11 + $0xe0] sm:$0xff]
        %v2259 = vld [vmem:[%s11 + $0xe8] sm:$0xff]
        %v2260 = vld [vmem:[%s11 + $0xf0] sm:$0xff]
        %v2261 = vld [vmem:[%s11 + $0xf8] sm:$0xff]
        %2262 = vrot.lane.b32.xlu0 %v2226, 127
        %v2263 = vpop.permute.xlu0 %2262
        %2264 = vrot.lane.b32.xlu0 %v2228, 127
        %v2265 = vpop.permute.xlu0 %2264
        %2266 = vrot.lane.b32.xlu0 %v2227, 127
        %v2267 = vpop.permute.xlu0 %2266
        %2268 = vrot.lane.b32.xlu0 %v2229, 127
        %v2269 = vpop.permute.xlu0 %2268
        %v2270 = vsel %vm679, %v2263, %v2267
        %v2271 = vsel %vm679, %v2265, %v2269
        %v2272 = vsel %vm679, %v2267, %v2263
        %v2273 = vsel %vm679, %v2269, %v2265
        %v2274 = vmax.f32 %v2226, %v2270
        %v2275 = vmax.f32 %v2227, %v2272
        %v2276 = vmax.f32 %v2228, %v2271
        %v2277 = vmax.f32 %v2229, %v2273
        %2278 = vrot.lane.b32.xlu0 %v2226, 112
        %v2279 = vpop.permute.xlu0 %2278
        %2280 = vrot.lane.b32.xlu0 %v2228, 112
        %v2281 = vpop.permute.xlu0 %2280
        %2282 = vrot.lane.b32.xlu0 %v2227, 112
        %v2283 = vpop.permute.xlu0 %2282
        %2284 = vrot.lane.b32.xlu0 %v2229, 112
        %v2285 = vpop.permute.xlu0 %2284
        %v2286 = vsel %vm2034, %v2279, %v2283
        %v2287 = vsel %vm2034, %v2281, %v2285
        %v2288 = vsel %vm2034, %v2283, %v2279
        %v2289 = vsel %vm2034, %v2285, %v2281
        %v2290 = vmax.f32 %v2274, %v2286
        %v2291 = vmax.f32 %v2275, %v2288
        %v2292 = vmax.f32 %v2276, %v2287
        %v2293 = vmax.f32 %v2277, %v2289
        %2294 = vrot.lane.b32.xlu0 %v2226, 111
        %v2295 = vpop.permute.xlu0 %2294
        %2296 = vrot.lane.b32.xlu0 %v2228, 111
        %v2297 = vpop.permute.xlu0 %2296
        %2298 = vrot.lane.b32.xlu0 %v2227, 111
        %v2299 = vpop.permute.xlu0 %2298
        %2300 = vrot.lane.b32.xlu0 %v2229, 111
        %v2301 = vpop.permute.xlu0 %2300
        %v2302 = vsel %vm2041, %v2295, %v2299
        %v2303 = vsel %vm2041, %v2297, %v2301
        %v2304 = vsel %vm2041, %v2299, %v2295
        %v2305 = vsel %vm2041, %v2301, %v2297
        %v2306 = vmax.f32 %v2290, %v2302
        %v2307 = vmax.f32 %v2291, %v2304
        %v2308 = vmax.f32 %v2292, %v2303
        %v2309 = vmax.f32 %v2293, %v2305
        %2310 = vmatprep.subr.mxu0 0.0
        %2311 = vmatpush1.msra.mxu0 %v2230
        %2312 = vmatprep.subr.mxu0 0.0
        %2313 = vmatpush1.msra.mxu0 %v2231
        %2314 = vmatprep.subr.mxu0 0.0
        %2315 = vmatpush1.msra.mxu0 %v2232
        %2316 = vmatprep.subr.mxu0 0.0
        %2317 = vmatpush1.msra.mxu0 %v2233
        %2318 = vmatprep.subr.mxu0 0.0
        %2319 = vmatpush1.msra.mxu0 %v2234
        %2320 = vmatprep.subr.mxu0 0.0
        %2321 = vmatpush1.msra.mxu0 %v2235
        %2322 = vmatprep.subr.mxu0 0.0
        %2323 = vmatpush1.msra.mxu0 %v2236
        %2324 = vmatprep.subr.mxu0 0.0
        %2325 = vmatpush1.msra.mxu0 %v2237
        %2326 = vmatprep.subr.mxu0 0.0
        %2327 = vmatpush1.msra.mxu0 %v2238
        %2328 = vmatprep.subr.mxu0 0.0
        %2329 = vmatpush1.msra.mxu0 %v2239
        %2330 = vmatprep.subr.mxu0 0.0
        %2331 = vmatpush1.msra.mxu0 %v2240
        %2332 = vmatprep.subr.mxu0 0.0
        %2333 = vmatpush1.msra.mxu0 %v2241
        %2334 = vmatprep.subr.mxu0 0.0
        %2335 = vmatpush1.msra.mxu0 %v2242
        %2336 = vmatprep.subr.mxu0 0.0
        %2337 = vmatpush1.msra.mxu0 %v2243
        %2338 = vmatprep.subr.mxu0 0.0
        %2339 = vmatpush1.msra.mxu0 %v2244
        %2340 = vmatprep.subr.mxu0 0.0
        %2341 = vmatpush1.msra.mxu0 %v2245
        %2342 = vmatprep.subr.mxu0 0.0
        %2343 = vmatpush1.msra.mxu0 %v2246
        %2344 = vmatprep.subr.mxu0 0.0
        %2345 = vmatpush1.msra.mxu0 %v2247
        %2346 = vmatprep.subr.mxu0 0.0
        %2347 = vmatpush1.msra.mxu0 %v2248
        %2348 = vmatprep.subr.mxu0 0.0
        %2349 = vmatpush1.msra.mxu0 %v2249
        %2350 = vmatprep.subr.mxu0 0.0
        %2351 = vmatpush1.msra.mxu0 %v2250
        %2352 = vmatprep.subr.mxu0 0.0
        %2353 = vmatpush1.msra.mxu0 %v2251
        %2354 = vmatprep.subr.mxu0 0.0
        %2355 = vmatpush1.msra.mxu0 %v2252
        %2356 = vmatprep.subr.mxu0 0.0
        %2357 = vmatpush1.msra.mxu0 %v2253
        %2358 = vmatprep.subr.mxu0 0.0
        %2359 = vmatpush1.msra.mxu0 %v2254
        %2360 = vmatprep.subr.mxu0 0.0
        %2361 = vmatpush1.msra.mxu0 %v2255
        %2362 = vmatprep.subr.mxu0 0.0
        %2363 = vmatpush1.msra.mxu0 %v2256
        %2364 = vmatprep.subr.mxu0 0.0
        %2365 = vmatpush1.msra.mxu0 %v2257
        %2366 = vmatprep.subr.mxu0 0.0
        %2367 = vmatpush1.msra.mxu0 %v2258
        %2368 = vmatprep.subr.mxu0 0.0
        %2369 = vmatpush1.msra.mxu0 %v2259
        %2370 = vmatprep.subr.mxu0 0.0
        %2371 = vmatpush1.msra.mxu0 %v2260
        %2372 = vmatprep.subr.mxu0 0.0
        %2373 = vmatpush1.msra.mxu0 %v2261
        %2374 = vmatprep.mubr.f32.mxu0 %v2307
        %2375 = vmatmul.mubr.f32.gmra.mrb[0].mxu0 %v2306
        %v2376 = vpop.f32.mrb[0].mxu0
        %v2377 = vadd.f32 0.0, %v2376
        %v2378 = vpop.f32.mrb[0].mxu0
        %2379 = vmatprep.mubr.f32.mxu0 %v2309
        %2380 = vmatmul.mubr.f32.gmra.mrb[0].mxu0 %v2308
        %v2381 = vpop.f32.mrb[0].mxu0
        %v2382 = vadd.f32 0.0, %v2381
        %v2383 = vpop.f32.mrb[0].mxu0
        %2384 = vdwg.mxu0
        %v2385 = vld [vmem:[%s7] sm:$0xff]
        %v2386 = vld [vmem:[%s7 + $0x8] sm:$0xff]
        %v2387 = vld [vmem:[%s8] sm:$0xff]
        %v2388 = vld [vmem:[%s8 + $0x8] sm:$0xff]
        %v2389 = vld [vmem:[%s9] sm:$0xff]
        %v2390 = vld [vmem:[%s9 + $0x8] sm:$0xff]
        %2391 = vrot.lane.b32.xlu0 %v2377, 10
        %v2392 = vpop.permute.xlu0 %2391
        %2393 = vrot.lane.b32.xlu0 %v2382, 10
        %v2394 = vpop.permute.xlu0 %2393
        %2395 = vrot.lane.b32.xlu0 %v2377, 9
        %v2396 = vpop.permute.xlu0 %2395
        %2397 = vrot.lane.b32.xlu0 %v2382, 9
        %v2398 = vpop.permute.xlu0 %2397
        %2399 = vrot.lane.b32.xlu0 %v2377, 8
        %v2400 = vpop.permute.xlu0 %2399
        %2401 = vrot.lane.b32.xlu0 %v2382, 8
        %v2402 = vpop.permute.xlu0 %2401
        %2403 = vrot.lane.b32.xlu0 %v2377, 1
        %v2404 = vpop.permute.xlu0 %2403
        %2405 = vrot.lane.b32.xlu0 %v2382, 1
        %v2406 = vpop.permute.xlu0 %2405
        %2407 = vrot.lane.b32.xlu0 %v2377, 127
        %v2408 = vpop.permute.xlu0 %2407
        %2409 = vrot.lane.b32.xlu0 %v2382, 127
        %v2410 = vpop.permute.xlu0 %2409
        %2411 = vrot.lane.b32.xlu0 %v2377, 120
        %v2412 = vpop.permute.xlu0 %2411
        %2413 = vrot.lane.b32.xlu0 %v2382, 120
        %v2414 = vpop.permute.xlu0 %2413
        %2415 = vrot.lane.b32.xlu0 %v2377, 119
        %v2416 = vpop.permute.xlu0 %2415
        %2417 = vrot.lane.b32.xlu0 %v2382, 119
        %v2418 = vpop.permute.xlu0 %2417
        %2419 = vrot.lane.b32.xlu0 %v2377, 118
        %v2420 = vpop.permute.xlu0 %2419
        %2421 = vrot.lane.b32.xlu0 %v2382, 118
        %v2422 = vpop.permute.xlu0 %2421
        %v2425 = vrot.slane %v2396, 4
        %v2426 = vrot.slane %v2398, 4
        %v2427 = vsel %vm934, %v2425, %v2426
        %v2432 = vrot.slane %v2404, 4
        %v2433 = vrot.slane %v2406, 4
        %v2434 = vsel %vm934, %v2432, %v2433
        %v2439 = vrot.slane %v2408, 4
        %v2440 = vrot.slane %v2410, 4
        %v2441 = vsel %vm934, %v2439, %v2440
        %v2446 = vrot.slane %v2416, 4
        %v2447 = vrot.slane %v2418, 4
        %v2448 = vsel %vm934, %v2446, %v2447
        %v2451 = vsel %vm934, %v2394, %v2425
        %v2452 = vsel %vm934, %v2402, %v2432
        %v2453 = vsel %vm934, %v2382, %v2439
        %v2454 = vsel %vm934, %v2414, %v2446
        %vm2455 = vcmask 883712
        %v2457 = vsel %vm2455, %v2385, 0
        %v2460 = vsel %vm2455, %v2386, 0
        %v2463 = vsel %vm934, %v2422, 0
        %2465 = vmatprep.subr.mxu0 0.0
        %2466 = vmatpush1.msra.mxu0 %v2392
        %2467 = vmatprep.subr.mxu0 0.0
        %2468 = vmatpush1.msra.mxu0 %v2451
        %2469 = vmatprep.subr.mxu0 0.0
        %2470 = vmatpush1.msra.mxu0 %v2427
        %2471 = vmatprep.subr.mxu0 0.0
        %2472 = vmatpush1.msra.mxu0 %v2400
        %2473 = vmatprep.subr.mxu0 0.0
        %2474 = vmatpush1.msra.mxu0 %v2452
        %2475 = vmatprep.subr.mxu0 0.0
        %2476 = vmatpush1.msra.mxu0 %v2434
        %2477 = vmatprep.subr.mxu0 0.0
        %2478 = vmatpush1.msra.mxu0 %v2377
        %2479 = vmatprep.subr.mxu0 0.0
        %2480 = vmatpush1.msra.mxu0 %v2453
        %2481 = vmatprep.subr.mxu0 0.0
        %2482 = vmatpush1.msra.mxu0 %v2441
        %2483 = vmatprep.subr.mxu0 0.0
        %2484 = vmatpush1.msra.mxu0 %v2412
        %2485 = vmatprep.subr.mxu0 0.0
        %2486 = vmatpush1.msra.mxu0 %v2454
        %2487 = vmatprep.subr.mxu0 0.0
        %2488 = vmatpush1.msra.mxu0 %v2448
        %2489 = vmatprep.subr.mxu0 0.0
        %2490 = vmatpush1.msra.mxu0 %v2420
        %2491 = vmatprep.subr.mxu0 0.0
        %2492 = vmatpush1.msra.mxu0 %v2463
        %2493 = vmatprep.subr.mxu0 0.0
        %2494 = vmatpush1.msra.mxu0 0.0
        %2495 = vmatprep.subr.mxu0 0.0
        %2496 = vmatpush1.msra.mxu0 0.0
        %2497 = vmatprep.subr.mxu0 0.0
        %2498 = vmatpush1.msra.mxu0 0.0
        %2499 = vmatprep.subr.mxu0 0.0
        %2500 = vmatpush1.msra.mxu0 0.0
        %2501 = vmatprep.subr.mxu0 0.0
        %2502 = vmatpush1.msra.mxu0 0.0
        %2503 = vmatprep.subr.mxu0 0.0
        %2504 = vmatpush1.msra.mxu0 0.0
        %2505 = vmatprep.subr.mxu0 0.0
        %2506 = vmatpush1.msra.mxu0 0.0
        %2507 = vmatprep.subr.mxu0 0.0
        %2508 = vmatpush1.msra.mxu0 0.0
        %2509 = vmatprep.subr.mxu0 0.0
        %2510 = vmatpush1.msra.mxu0 0.0
        %2511 = vmatprep.subr.mxu0 0.0
        %2512 = vmatpush1.msra.mxu0 0.0
        %2513 = vmatprep.subr.mxu0 0.0
        %2514 = vmatpush1.msra.mxu0 0.0
        %2515 = vmatprep.subr.mxu0 0.0
        %2516 = vmatpush1.msra.mxu0 0.0
        %2517 = vmatprep.subr.mxu0 0.0
        %2518 = vmatpush1.msra.mxu0 0.0
        %2519 = vmatprep.subr.mxu0 0.0
        %2520 = vmatpush1.msra.mxu0 0.0
        %2521 = vmatprep.subr.mxu0 0.0
        %2522 = vmatpush1.msra.mxu0 0.0
        %2523 = vmatprep.subr.mxu0 0.0
        %2524 = vmatpush1.msra.mxu0 0.0
        %2525 = vmatprep.subr.mxu0 0.0
        %2526 = vmatpush1.msra.mxu0 0.0
        %2527 = vmatprep.subr.mxu0 0.0
        %2528 = vmatpush1.msra.mxu0 0.0
        %2529 = vmatprep.mubr.f32.mxu0 0.0
        %2530 = vmatmul.mubr.f32.gmra.mrb[0].mxu0 %v2457
        %v2531 = vpop.f32.mrb[0].mxu0
        %v2532 = vadd.f32 0.0, %v2531
        %v2533 = vpop.f32.mrb[0].mxu0
        %2534 = vmatprep.mubr.f32.mxu0 0.0
        %2535 = vmatmul.mubr.f32.gmra.mrb[0].mxu0 %v2460
        %v2536 = vpop.f32.mrb[0].mxu0
        %v2537 = vadd.f32 0.0, %v2536
        %v2538 = vpop.f32.mrb[0].mxu0
        %2539 = vdwg.mxu0
        %v2540 = vmul.f32 %v2532, 0.5
        %v2541 = vmul.f32 %v2537, 0.5
        %v2542 = vmul.f32 %v2532, 0.70710677
        %v2543 = vmul.f32 %v2537, 0.70710677
        %v2544 = verf.f32.pop %v2542
        %v2545 = verf.f32.pop %v2543
        %v2546 = vadd.f32 %v2544, 1.0
        %v2547 = vadd.f32 %v2545, 1.0
        %v2548 = vmul.f32 %v2540, %v2546
        %v2549 = vmul.f32 %v2541, %v2547
        %2551 = vset.pattern.permute.xlu0 0
        %2552 = vperm.xlu0 %2551, %v2387
        %v2553 = vpop.permute.xlu0 %2552
        %2556 = vset.pattern.permute.xlu0 0
        %2557 = vperm.xlu0 %2556, %v2388
        %v2558 = vpop.permute.xlu0 %2557
        %v2560 = vmul.f32 %v2548, %v2553
        %v2561 = vmul.f32 %v2549, %v2558
        %2563 = vset.pattern.permute.xlu0 0
        %2564 = vperm.xlu0 %2563, %v2389
        %v2565 = vpop.permute.xlu0 %2564
        %2568 = vset.pattern.permute.xlu0 0
        %2569 = vperm.xlu0 %2568, %v2390
        %v2570 = vpop.permute.xlu0 %2569
        %v2572 = vadd.f32 %v2560, %v2565
        %v2573 = vadd.f32 %v2561, %v2570
        %v2575 = vrot.slane %v2572, 1
        %v2577 = vrot.slane %v2572, 2
        %v2579 = vrot.slane %v2572, 3
        %v2581 = vrot.slane %v2572, 4
        %v2583 = vrot.slane %v2572, 5
        %v2585 = vrot.slane %v2572, 6
        %v2587 = vrot.slane %v2572, 7
        %v2590 = vrot.slane %v2573, 1
        %v2592 = vrot.slane %v2573, 2
        %v2594 = vrot.slane %v2573, 3
        %v2596 = vrot.slane %v2573, 4
        %v2598 = vrot.slane %v2573, 5
        %v2600 = vrot.slane %v2573, 6
        %v2602 = vrot.slane %v2573, 7
        %v2604 = vld [vmem:[%s12] sm:$0xff]
        %v2605 = vld [vmem:[%s12 + $0x8] sm:$0xff]
        %v2606 = vld [vmem:[%s12 + $0x10] sm:$0xff]
        %v2607 = vld [vmem:[%s12 + $0x18] sm:$0xff]
        %v2608 = vld [vmem:[%s12 + $0x20] sm:$0xff]
        %v2609 = vld [vmem:[%s12 + $0x28] sm:$0xff]
        %v2610 = vld [vmem:[%s12 + $0x30] sm:$0xff]
        %v2611 = vld [vmem:[%s12 + $0x38] sm:$0xff]
        %v2612 = vld [vmem:[%s12 + $0x40] sm:$0xff]
        %v2613 = vld [vmem:[%s12 + $0x48] sm:$0xff]
        %v2614 = vld [vmem:[%s12 + $0x50] sm:$0xff]
        %v2615 = vld [vmem:[%s12 + $0x58] sm:$0xff]
        %v2616 = vld [vmem:[%s12 + $0x60] sm:$0xff]
        %v2617 = vld [vmem:[%s12 + $0x68] sm:$0xff]
        %v2618 = vld [vmem:[%s12 + $0x70] sm:$0xff]
        %v2619 = vld [vmem:[%s12 + $0x78] sm:$0xff]
        %v2620 = vld [vmem:[%s12 + $0x80] sm:$0xff]
        %v2621 = vld [vmem:[%s12 + $0x88] sm:$0xff]
        %v2622 = vld [vmem:[%s12 + $0x90] sm:$0xff]
        %v2623 = vld [vmem:[%s12 + $0x98] sm:$0xff]
        %v2624 = vld [vmem:[%s12 + $0xa0] sm:$0xff]
        %v2625 = vld [vmem:[%s12 + $0xa8] sm:$0xff]
        %v2626 = vld [vmem:[%s12 + $0xb0] sm:$0xff]
        %v2627 = vld [vmem:[%s12 + $0xb8] sm:$0xff]
        %v2628 = vld [vmem:[%s12 + $0xc0] sm:$0xff]
        %v2629 = vld [vmem:[%s12 + $0xc8] sm:$0xff]
        %v2630 = vld [vmem:[%s12 + $0xd0] sm:$0xff]
        %v2631 = vld [vmem:[%s12 + $0xd8] sm:$0xff]
        %v2632 = vld [vmem:[%s12 + $0xe0] sm:$0xff]
        %v2633 = vld [vmem:[%s12 + $0xe8] sm:$0xff]
        %v2634 = vld [vmem:[%s12 + $0xf0] sm:$0xff]
        %v2635 = vld [vmem:[%s12 + $0xf8] sm:$0xff]
        %v2636 = vld [vmem:[%s12 + $0x100] sm:$0xff]
        %v2637 = vld [vmem:[%s12 + $0x108] sm:$0xff]
        %v2638 = vld [vmem:[%s12 + $0x110] sm:$0xff]
        %v2639 = vld [vmem:[%s12 + $0x118] sm:$0xff]
        %v2640 = vld [vmem:[%s12 + $0x120] sm:$0xff]
        %v2641 = vld [vmem:[%s12 + $0x128] sm:$0xff]
        %v2642 = vld [vmem:[%s12 + $0x130] sm:$0xff]
        %v2643 = vld [vmem:[%s12 + $0x138] sm:$0xff]
        %v2644 = vld [vmem:[%s12 + $0x140] sm:$0xff]
        %v2645 = vld [vmem:[%s12 + $0x148] sm:$0xff]
        %v2646 = vld [vmem:[%s12 + $0x150] sm:$0xff]
        %v2647 = vld [vmem:[%s12 + $0x158] sm:$0xff]
        %v2648 = vld [vmem:[%s12 + $0x160] sm:$0xff]
        %v2649 = vld [vmem:[%s12 + $0x168] sm:$0xff]
        %v2650 = vld [vmem:[%s12 + $0x170] sm:$0xff]
        %v2651 = vld [vmem:[%s12 + $0x178] sm:$0xff]
        %v2652 = vld [vmem:[%s12 + $0x180] sm:$0xff]
        %v2653 = vld [vmem:[%s12 + $0x188] sm:$0xff]
        %v2654 = vld [vmem:[%s12 + $0x190] sm:$0xff]
        %v2655 = vld [vmem:[%s12 + $0x198] sm:$0xff]
        %v2656 = vld [vmem:[%s12 + $0x1a0] sm:$0xff]
        %v2657 = vld [vmem:[%s12 + $0x1a8] sm:$0xff]
        %v2658 = vld [vmem:[%s12 + $0x1b0] sm:$0xff]
        %v2659 = vld [vmem:[%s12 + $0x1b8] sm:$0xff]
        %v2660 = vld [vmem:[%s12 + $0x1c0] sm:$0xff]
        %v2661 = vld [vmem:[%s12 + $0x1c8] sm:$0xff]
        %v2662 = vld [vmem:[%s12 + $0x1d0] sm:$0xff]
        %v2663 = vld [vmem:[%s12 + $0x1d8] sm:$0xff]
        %v2664 = vld [vmem:[%s12 + $0x1e0] sm:$0xff]
        %v2665 = vld [vmem:[%s12 + $0x1e8] sm:$0xff]
        %v2666 = vld [vmem:[%s12 + $0x1f0] sm:$0xff]
        %v2667 = vld [vmem:[%s12 + $0x1f8] sm:$0xff]
        %v2668 = vld [vmem:[%s12 + $0x200] sm:$0xff]
        %v2669 = vld [vmem:[%s12 + $0x208] sm:$0xff]
        %v2670 = vld [vmem:[%s12 + $0x210] sm:$0xff]
        %v2671 = vld [vmem:[%s12 + $0x218] sm:$0xff]
        %v2672 = vld [vmem:[%s12 + $0x220] sm:$0xff]
        %v2673 = vld [vmem:[%s12 + $0x228] sm:$0xff]
        %v2674 = vld [vmem:[%s12 + $0x230] sm:$0xff]
        %v2675 = vld [vmem:[%s12 + $0x238] sm:$0xff]
        %v2676 = vld [vmem:[%s12 + $0x240] sm:$0xff]
        %v2677 = vld [vmem:[%s12 + $0x248] sm:$0xff]
        %v2678 = vld [vmem:[%s12 + $0x250] sm:$0xff]
        %v2679 = vld [vmem:[%s12 + $0x258] sm:$0xff]
        %v2680 = vld [vmem:[%s12 + $0x260] sm:$0xff]
        %v2681 = vld [vmem:[%s12 + $0x268] sm:$0xff]
        %v2682 = vld [vmem:[%s12 + $0x270] sm:$0xff]
        %v2683 = vld [vmem:[%s12 + $0x278] sm:$0xff]
        %v2684 = vld [vmem:[%s12 + $0x280] sm:$0xff]
        %v2685 = vld [vmem:[%s12 + $0x288] sm:$0xff]
        %v2686 = vld [vmem:[%s12 + $0x290] sm:$0xff]
        %v2687 = vld [vmem:[%s12 + $0x298] sm:$0xff]
        %v2688 = vld [vmem:[%s12 + $0x2a0] sm:$0xff]
        %v2689 = vld [vmem:[%s12 + $0x2a8] sm:$0xff]
        %v2690 = vld [vmem:[%s12 + $0x2b0] sm:$0xff]
        %v2691 = vld [vmem:[%s12 + $0x2b8] sm:$0xff]
        %v2692 = vld [vmem:[%s12 + $0x2c0] sm:$0xff]
        %v2693 = vld [vmem:[%s12 + $0x2c8] sm:$0xff]
        %v2694 = vld [vmem:[%s12 + $0x2d0] sm:$0xff]
        %v2695 = vld [vmem:[%s12 + $0x2d8] sm:$0xff]
        %v2696 = vld [vmem:[%s12 + $0x2e0] sm:$0xff]
        %v2697 = vld [vmem:[%s12 + $0x2e8] sm:$0xff]
        %v2698 = vld [vmem:[%s12 + $0x2f0] sm:$0xff]
        %v2699 = vld [vmem:[%s12 + $0x2f8] sm:$0xff]
        %v2700 = vld [vmem:[%s12 + $0x300] sm:$0xff]
        %v2701 = vld [vmem:[%s12 + $0x308] sm:$0xff]
        %v2702 = vld [vmem:[%s12 + $0x310] sm:$0xff]
        %v2703 = vld [vmem:[%s12 + $0x318] sm:$0xff]
        %v2704 = vld [vmem:[%s12 + $0x320] sm:$0xff]
        %v2705 = vld [vmem:[%s12 + $0x328] sm:$0xff]
        %v2706 = vld [vmem:[%s12 + $0x330] sm:$0xff]
        %v2707 = vld [vmem:[%s12 + $0x338] sm:$0xff]
        %v2708 = vld [vmem:[%s12 + $0x340] sm:$0xff]
        %v2709 = vld [vmem:[%s12 + $0x348] sm:$0xff]
        %v2710 = vld [vmem:[%s12 + $0x350] sm:$0xff]
        %v2711 = vld [vmem:[%s12 + $0x358] sm:$0xff]
        %v2712 = vld [vmem:[%s12 + $0x360] sm:$0xff]
        %v2713 = vld [vmem:[%s12 + $0x368] sm:$0xff]
        %v2714 = vld [vmem:[%s12 + $0x370] sm:$0xff]
        %v2715 = vld [vmem:[%s12 + $0x378] sm:$0xff]
        %v2716 = vld [vmem:[%s12 + $0x380] sm:$0xff]
        %v2717 = vld [vmem:[%s12 + $0x388] sm:$0xff]
        %v2718 = vld [vmem:[%s12 + $0x390] sm:$0xff]
        %v2719 = vld [vmem:[%s12 + $0x398] sm:$0xff]
        %v2720 = vld [vmem:[%s12 + $0x3a0] sm:$0xff]
        %v2721 = vld [vmem:[%s12 + $0x3a8] sm:$0xff]
        %v2722 = vld [vmem:[%s12 + $0x3b0] sm:$0xff]
        %v2723 = vld [vmem:[%s12 + $0x3b8] sm:$0xff]
        %v2724 = vld [vmem:[%s12 + $0x3c0] sm:$0xff]
        %v2725 = vld [vmem:[%s12 + $0x3c8] sm:$0xff]
        %v2726 = vld [vmem:[%s12 + $0x3d0] sm:$0xff]
        %v2727 = vld [vmem:[%s12 + $0x3d8] sm:$0xff]
        %v2728 = vld [vmem:[%s12 + $0x3e0] sm:$0xff]
        %v2729 = vld [vmem:[%s12 + $0x3e8] sm:$0xff]
        %v2730 = vld [vmem:[%s12 + $0x3f0] sm:$0xff]
        %v2731 = vld [vmem:[%s12 + $0x3f8] sm:$0xff]
        %v2732 = vld [vmem:[%s12 + $0x400] sm:$0xff]
        %v2733 = vld [vmem:[%s12 + $0x408] sm:$0xff]
        %v2734 = vld [vmem:[%s12 + $0x410] sm:$0xff]
        %v2735 = vld [vmem:[%s12 + $0x418] sm:$0xff]
        %v2736 = vld [vmem:[%s12 + $0x420] sm:$0xff]
        %v2737 = vld [vmem:[%s12 + $0x428] sm:$0xff]
        %v2738 = vld [vmem:[%s12 + $0x430] sm:$0xff]
        %v2739 = vld [vmem:[%s12 + $0x438] sm:$0xff]
        %v2740 = vld [vmem:[%s12 + $0x440] sm:$0xff]
        %v2741 = vld [vmem:[%s12 + $0x448] sm:$0xff]
        %v2742 = vld [vmem:[%s12 + $0x450] sm:$0xff]
        %v2743 = vld [vmem:[%s12 + $0x458] sm:$0xff]
        %v2744 = vld [vmem:[%s12 + $0x460] sm:$0xff]
        %v2745 = vld [vmem:[%s12 + $0x468] sm:$0xff]
        %v2746 = vld [vmem:[%s12 + $0x470] sm:$0xff]
        %v2747 = vld [vmem:[%s12 + $0x478] sm:$0xff]
        %v2748 = vld [vmem:[%s12 + $0x480] sm:$0xff]
        %v2749 = vld [vmem:[%s12 + $0x488] sm:$0xff]
        %v2750 = vld [vmem:[%s12 + $0x490] sm:$0xff]
        %v2751 = vld [vmem:[%s12 + $0x498] sm:$0xff]
        %v2752 = vld [vmem:[%s12 + $0x4a0] sm:$0xff]
        %v2753 = vld [vmem:[%s12 + $0x4a8] sm:$0xff]
        %v2754 = vld [vmem:[%s12 + $0x4b0] sm:$0xff]
        %v2755 = vld [vmem:[%s12 + $0x4b8] sm:$0xff]
        %v2756 = vld [vmem:[%s12 + $0x4c0] sm:$0xff]
        %v2757 = vld [vmem:[%s12 + $0x4c8] sm:$0xff]
        %v2758 = vld [vmem:[%s12 + $0x4d0] sm:$0xff]
        %v2759 = vld [vmem:[%s12 + $0x4d8] sm:$0xff]
        %v2760 = vld [vmem:[%s12 + $0x4e0] sm:$0xff]
        %v2761 = vld [vmem:[%s12 + $0x4e8] sm:$0xff]
        %v2762 = vld [vmem:[%s12 + $0x4f0] sm:$0xff]
        %v2763 = vld [vmem:[%s12 + $0x4f8] sm:$0xff]
        %v2764 = vld [vmem:[%s12 + $0x500] sm:$0xff]
        %v2765 = vld [vmem:[%s12 + $0x508] sm:$0xff]
        %v2766 = vld [vmem:[%s12 + $0x510] sm:$0xff]
        %v2767 = vld [vmem:[%s12 + $0x518] sm:$0xff]
        %v2768 = vld [vmem:[%s12 + $0x520] sm:$0xff]
        %v2769 = vld [vmem:[%s12 + $0x528] sm:$0xff]
        %v2770 = vld [vmem:[%s12 + $0x530] sm:$0xff]
        %v2771 = vld [vmem:[%s12 + $0x538] sm:$0xff]
        %v2772 = vld [vmem:[%s12 + $0x540] sm:$0xff]
        %v2773 = vld [vmem:[%s12 + $0x548] sm:$0xff]
        %v2774 = vld [vmem:[%s12 + $0x550] sm:$0xff]
        %v2775 = vld [vmem:[%s12 + $0x558] sm:$0xff]
        %v2776 = vld [vmem:[%s12 + $0x560] sm:$0xff]
        %v2777 = vld [vmem:[%s12 + $0x568] sm:$0xff]
        %v2778 = vld [vmem:[%s12 + $0x570] sm:$0xff]
        %v2779 = vld [vmem:[%s12 + $0x578] sm:$0xff]
        %v2780 = vld [vmem:[%s12 + $0x580] sm:$0xff]
        %v2781 = vld [vmem:[%s12 + $0x588] sm:$0xff]
        %v2782 = vld [vmem:[%s12 + $0x590] sm:$0xff]
        %v2783 = vld [vmem:[%s12 + $0x598] sm:$0xff]
        %v2784 = vld [vmem:[%s12 + $0x5a0] sm:$0xff]
        %v2785 = vld [vmem:[%s12 + $0x5a8] sm:$0xff]
        %v2786 = vld [vmem:[%s12 + $0x5b0] sm:$0xff]
        %v2787 = vld [vmem:[%s12 + $0x5b8] sm:$0xff]
        %v2788 = vld [vmem:[%s12 + $0x5c0] sm:$0xff]
        %v2789 = vld [vmem:[%s12 + $0x5c8] sm:$0xff]
        %v2790 = vld [vmem:[%s12 + $0x5d0] sm:$0xff]
        %v2791 = vld [vmem:[%s12 + $0x5d8] sm:$0xff]
        %v2792 = vld [vmem:[%s12 + $0x5e0] sm:$0xff]
        %v2793 = vld [vmem:[%s12 + $0x5e8] sm:$0xff]
        %v2794 = vld [vmem:[%s12 + $0x5f0] sm:$0xff]
        %v2795 = vld [vmem:[%s12 + $0x5f8] sm:$0xff]
        %v2796 = vld [vmem:[%s12 + $0x600] sm:$0xff]
        %v2797 = vld [vmem:[%s12 + $0x608] sm:$0xff]
        %v2798 = vld [vmem:[%s12 + $0x610] sm:$0xff]
        %v2799 = vld [vmem:[%s12 + $0x618] sm:$0xff]
        %v2800 = vld [vmem:[%s12 + $0x620] sm:$0xff]
        %v2801 = vld [vmem:[%s12 + $0x628] sm:$0xff]
        %v2802 = vld [vmem:[%s12 + $0x630] sm:$0xff]
        %v2803 = vld [vmem:[%s12 + $0x638] sm:$0xff]
        %v2804 = vld [vmem:[%s12 + $0x640] sm:$0xff]
        %v2805 = vld [vmem:[%s12 + $0x648] sm:$0xff]
        %v2806 = vld [vmem:[%s12 + $0x650] sm:$0xff]
        %v2807 = vld [vmem:[%s12 + $0x658] sm:$0xff]
        %v2808 = vld [vmem:[%s12 + $0x660] sm:$0xff]
        %v2809 = vld [vmem:[%s12 + $0x668] sm:$0xff]
        %v2810 = vld [vmem:[%s12 + $0x670] sm:$0xff]
        %v2811 = vld [vmem:[%s12 + $0x678] sm:$0xff]
        %v2812 = vld [vmem:[%s12 + $0x680] sm:$0xff]
        %v2813 = vld [vmem:[%s12 + $0x688] sm:$0xff]
        %v2814 = vld [vmem:[%s12 + $0x690] sm:$0xff]
        %v2815 = vld [vmem:[%s12 + $0x698] sm:$0xff]
        %v2816 = vld [vmem:[%s12 + $0x6a0] sm:$0xff]
        %v2817 = vld [vmem:[%s12 + $0x6a8] sm:$0xff]
        %v2818 = vld [vmem:[%s12 + $0x6b0] sm:$0xff]
        %v2819 = vld [vmem:[%s12 + $0x6b8] sm:$0xff]
        %v2820 = vld [vmem:[%s12 + $0x6c0] sm:$0xff]
        %v2821 = vld [vmem:[%s12 + $0x6c8] sm:$0xff]
        %v2822 = vld [vmem:[%s12 + $0x6d0] sm:$0xff]
        %v2823 = vld [vmem:[%s12 + $0x6d8] sm:$0xff]
        %v2824 = vld [vmem:[%s12 + $0x6e0] sm:$0xff]
        %v2825 = vld [vmem:[%s12 + $0x6e8] sm:$0xff]
        %v2826 = vld [vmem:[%s12 + $0x6f0] sm:$0xff]
        %v2827 = vld [vmem:[%s12 + $0x6f8] sm:$0xff]
        %v2828 = vld [vmem:[%s12 + $0x700] sm:$0xff]
        %v2829 = vld [vmem:[%s12 + $0x708] sm:$0xff]
        %v2830 = vld [vmem:[%s12 + $0x710] sm:$0xff]
        %v2831 = vld [vmem:[%s12 + $0x718] sm:$0xff]
        %v2832 = vld [vmem:[%s12 + $0x720] sm:$0xff]
        %v2833 = vld [vmem:[%s12 + $0x728] sm:$0xff]
        %v2834 = vld [vmem:[%s12 + $0x730] sm:$0xff]
        %v2835 = vld [vmem:[%s12 + $0x738] sm:$0xff]
        %v2836 = vld [vmem:[%s12 + $0x740] sm:$0xff]
        %v2837 = vld [vmem:[%s12 + $0x748] sm:$0xff]
        %v2838 = vld [vmem:[%s12 + $0x750] sm:$0xff]
        %v2839 = vld [vmem:[%s12 + $0x758] sm:$0xff]
        %v2840 = vld [vmem:[%s12 + $0x760] sm:$0xff]
        %v2841 = vld [vmem:[%s12 + $0x768] sm:$0xff]
        %v2842 = vld [vmem:[%s12 + $0x770] sm:$0xff]
        %v2843 = vld [vmem:[%s12 + $0x778] sm:$0xff]
        %v2844 = vld [vmem:[%s12 + $0x780] sm:$0xff]
        %v2845 = vld [vmem:[%s12 + $0x788] sm:$0xff]
        %v2846 = vld [vmem:[%s12 + $0x790] sm:$0xff]
        %v2847 = vld [vmem:[%s12 + $0x798] sm:$0xff]
        %v2848 = vld [vmem:[%s12 + $0x7a0] sm:$0xff]
        %v2849 = vld [vmem:[%s12 + $0x7a8] sm:$0xff]
        %v2850 = vld [vmem:[%s12 + $0x7b0] sm:$0xff]
        %v2851 = vld [vmem:[%s12 + $0x7b8] sm:$0xff]
        %v2852 = vld [vmem:[%s12 + $0x7c0] sm:$0xff]
        %v2853 = vld [vmem:[%s12 + $0x7c8] sm:$0xff]
        %v2854 = vld [vmem:[%s12 + $0x7d0] sm:$0xff]
        %v2855 = vld [vmem:[%s12 + $0x7d8] sm:$0xff]
        %v2856 = vld [vmem:[%s12 + $0x7e0] sm:$0xff]
        %v2857 = vld [vmem:[%s12 + $0x7e8] sm:$0xff]
        %v2858 = vld [vmem:[%s12 + $0x7f0] sm:$0xff]
        %v2859 = vld [vmem:[%s12 + $0x7f8] sm:$0xff]
        %v2860 = vld [vmem:[%s13] sm:$0x1]
        %2861 = vmatprep.subr.mxu0 0.0
        %2862 = vmatpush1.msra.mxu0 %v2604
        %2863 = vmatprep.subr.mxu0 0.0
        %2864 = vmatpush1.msra.mxu0 %v2605
        %2865 = vmatprep.subr.mxu0 0.0
        %2866 = vmatpush1.msra.mxu0 %v2606
        %2867 = vmatprep.subr.mxu0 0.0
        %2868 = vmatpush1.msra.mxu0 %v2607
        %2869 = vmatprep.subr.mxu0 0.0
        %2870 = vmatpush1.msra.mxu0 %v2608
        %2871 = vmatprep.subr.mxu0 0.0
        %2872 = vmatpush1.msra.mxu0 %v2609
        %2873 = vmatprep.subr.mxu0 0.0
        %2874 = vmatpush1.msra.mxu0 %v2610
        %2875 = vmatprep.subr.mxu0 0.0
        %2876 = vmatpush1.msra.mxu0 %v2611
        %2877 = vmatprep.subr.mxu0 0.0
        %2878 = vmatpush1.msra.mxu0 %v2612
        %2879 = vmatprep.subr.mxu0 0.0
        %2880 = vmatpush1.msra.mxu0 %v2613
        %2881 = vmatprep.subr.mxu0 0.0
        %2882 = vmatpush1.msra.mxu0 %v2614
        %2883 = vmatprep.subr.mxu0 0.0
        %2884 = vmatpush1.msra.mxu0 %v2615
        %2885 = vmatprep.subr.mxu0 0.0
        %2886 = vmatpush1.msra.mxu0 %v2616
        %2887 = vmatprep.subr.mxu0 0.0
        %2888 = vmatpush1.msra.mxu0 %v2617
        %2889 = vmatprep.subr.mxu0 0.0
        %2890 = vmatpush1.msra.mxu0 %v2618
        %2891 = vmatprep.subr.mxu0 0.0
        %2892 = vmatpush1.msra.mxu0 %v2619
        %2893 = vmatprep.subr.mxu0 0.0
        %2894 = vmatpush1.msra.mxu0 %v2620
        %2895 = vmatprep.subr.mxu0 0.0
        %2896 = vmatpush1.msra.mxu0 %v2621
        %2897 = vmatprep.subr.mxu0 0.0
        %2898 = vmatpush1.msra.mxu0 %v2622
        %2899 = vmatprep.subr.mxu0 0.0
        %2900 = vmatpush1.msra.mxu0 %v2623
        %2901 = vmatprep.subr.mxu0 0.0
        %2902 = vmatpush1.msra.mxu0 %v2624
        %2903 = vmatprep.subr.mxu0 0.0
        %2904 = vmatpush1.msra.mxu0 %v2625
        %2905 = vmatprep.subr.mxu0 0.0
        %2906 = vmatpush1.msra.mxu0 %v2626
        %2907 = vmatprep.subr.mxu0 0.0
        %2908 = vmatpush1.msra.mxu0 %v2627
        %2909 = vmatprep.subr.mxu0 0.0
        %2910 = vmatpush1.msra.mxu0 %v2628
        %2911 = vmatprep.subr.mxu0 0.0
        %2912 = vmatpush1.msra.mxu0 %v2629
        %2913 = vmatprep.subr.mxu0 0.0
        %2914 = vmatpush1.msra.mxu0 %v2630
        %2915 = vmatprep.subr.mxu0 0.0
        %2916 = vmatpush1.msra.mxu0 %v2631
        %2917 = vmatprep.subr.mxu0 0.0
        %2918 = vmatpush1.msra.mxu0 %v2632
        %2919 = vmatprep.subr.mxu0 0.0
        %2920 = vmatpush1.msra.mxu0 %v2633
        %2921 = vmatprep.subr.mxu0 0.0
        %2922 = vmatpush1.msra.mxu0 %v2634
        %2923 = vmatprep.subr.mxu0 0.0
        %2924 = vmatpush1.msra.mxu0 %v2635
        %2925 = vmatprep.mubr.f32.mxu0 %v2575
        %2926 = vmatmul.mubr.f32.gmra.mrb[0].mxu0 %v2572
        %v2927 = vpop.f32.mrb[0].mxu0
        %v2928 = vadd.f32 %v2860, %v2927
        %v2929 = vpop.f32.mrb[0].mxu0
        %2930 = vdwg.mxu0
        %2931 = vmatprep.subr.mxu0 0.0
        %2932 = vmatpush1.msra.mxu0 %v2636
        %2933 = vmatprep.subr.mxu0 0.0
        %2934 = vmatpush1.msra.mxu0 %v2637
        %2935 = vmatprep.subr.mxu0 0.0
        %2936 = vmatpush1.msra.mxu0 %v2638
        %2937 = vmatprep.subr.mxu0 0.0
        %2938 = vmatpush1.msra.mxu0 %v2639
        %2939 = vmatprep.subr.mxu0 0.0
        %2940 = vmatpush1.msra.mxu0 %v2640
        %2941 = vmatprep.subr.mxu0 0.0
        %2942 = vmatpush1.msra.mxu0 %v2641
        %2943 = vmatprep.subr.mxu0 0.0
        %2944 = vmatpush1.msra.mxu0 %v2642
        %2945 = vmatprep.subr.mxu0 0.0
        %2946 = vmatpush1.msra.mxu0 %v2643
        %2947 = vmatprep.subr.mxu0 0.0
        %2948 = vmatpush1.msra.mxu0 %v2644
        %2949 = vmatprep.subr.mxu0 0.0
        %2950 = vmatpush1.msra.mxu0 %v2645
        %2951 = vmatprep.subr.mxu0 0.0
        %2952 = vmatpush1.msra.mxu0 %v2646
        %2953 = vmatprep.subr.mxu0 0.0
        %2954 = vmatpush1.msra.mxu0 %v2647
        %2955 = vmatprep.subr.mxu0 0.0
        %2956 = vmatpush1.msra.mxu0 %v2648
        %2957 = vmatprep.subr.mxu0 0.0
        %2958 = vmatpush1.msra.mxu0 %v2649
        %2959 = vmatprep.subr.mxu0 0.0
        %2960 = vmatpush1.msra.mxu0 %v2650
        %2961 = vmatprep.subr.mxu0 0.0
        %2962 = vmatpush1.msra.mxu0 %v2651
        %2963 = vmatprep.subr.mxu0 0.0
        %2964 = vmatpush1.msra.mxu0 %v2652
        %2965 = vmatprep.subr.mxu0 0.0
        %2966 = vmatpush1.msra.mxu0 %v2653
        %2967 = vmatprep.subr.mxu0 0.0
        %2968 = vmatpush1.msra.mxu0 %v2654
        %2969 = vmatprep.subr.mxu0 0.0
        %2970 = vmatpush1.msra.mxu0 %v2655
        %2971 = vmatprep.subr.mxu0 0.0
        %2972 = vmatpush1.msra.mxu0 %v2656
        %2973 = vmatprep.subr.mxu0 0.0
        %2974 = vmatpush1.msra.mxu0 %v2657
        %2975 = vmatprep.subr.mxu0 0.0
        %2976 = vmatpush1.msra.mxu0 %v2658
        %2977 = vmatprep.subr.mxu0 0.0
        %2978 = vmatpush1.msra.mxu0 %v2659
        %2979 = vmatprep.subr.mxu0 0.0
        %2980 = vmatpush1.msra.mxu0 %v2660
        %2981 = vmatprep.subr.mxu0 0.0
        %2982 = vmatpush1.msra.mxu0 %v2661
        %2983 = vmatprep.subr.mxu0 0.0
        %2984 = vmatpush1.msra.mxu0 %v2662
        %2985 = vmatprep.subr.mxu0 0.0
        %2986 = vmatpush1.msra.mxu0 %v2663
        %2987 = vmatprep.subr.mxu0 0.0
        %2988 = vmatpush1.msra.mxu0 %v2664
        %2989 = vmatprep.subr.mxu0 0.0
        %2990 = vmatpush1.msra.mxu0 %v2665
        %2991 = vmatprep.subr.mxu0 0.0
        %2992 = vmatpush1.msra.mxu0 %v2666
        %2993 = vmatprep.subr.mxu0 0.0
        %2994 = vmatpush1.msra.mxu0 %v2667
        %2995 = vmatprep.mubr.f32.mxu0 %v2579
        %2996 = vmatmul.mubr.f32.gmra.mrb[0].mxu0 %v2577
        %v2997 = vpop.f32.mrb[0].mxu0
        %v2998 = vadd.f32 %v2928, %v2997
        %v2999 = vpop.f32.mrb[0].mxu0
        %3000 = vdwg.mxu0
        %3001 = vmatprep.subr.mxu0 0.0
        %3002 = vmatpush1.msra.mxu0 %v2668
        %3003 = vmatprep.subr.mxu0 0.0
        %3004 = vmatpush1.msra.mxu0 %v2669
        %3005 = vmatprep.subr.mxu0 0.0
        %3006 = vmatpush1.msra.mxu0 %v2670
        %3007 = vmatprep.subr.mxu0 0.0
        %3008 = vmatpush1.msra.mxu0 %v2671
        %3009 = vmatprep.subr.mxu0 0.0
        %3010 = vmatpush1.msra.mxu0 %v2672
        %3011 = vmatprep.subr.mxu0 0.0
        %3012 = vmatpush1.msra.mxu0 %v2673
        %3013 = vmatprep.subr.mxu0 0.0
        %3014 = vmatpush1.msra.mxu0 %v2674
        %3015 = vmatprep.subr.mxu0 0.0
        %3016 = vmatpush1.msra.mxu0 %v2675
        %3017 = vmatprep.subr.mxu0 0.0
        %3018 = vmatpush1.msra.mxu0 %v2676
        %3019 = vmatprep.subr.mxu0 0.0
        %3020 = vmatpush1.msra.mxu0 %v2677
        %3021 = vmatprep.subr.mxu0 0.0
        %3022 = vmatpush1.msra.mxu0 %v2678
        %3023 = vmatprep.subr.mxu0 0.0
        %3024 = vmatpush1.msra.mxu0 %v2679
        %3025 = vmatprep.subr.mxu0 0.0
        %3026 = vmatpush1.msra.mxu0 %v2680
        %3027 = vmatprep.subr.mxu0 0.0
        %3028 = vmatpush1.msra.mxu0 %v2681
        %3029 = vmatprep.subr.mxu0 0.0
        %3030 = vmatpush1.msra.mxu0 %v2682
        %3031 = vmatprep.subr.mxu0 0.0
        %3032 = vmatpush1.msra.mxu0 %v2683
        %3033 = vmatprep.subr.mxu0 0.0
        %3034 = vmatpush1.msra.mxu0 %v2684
        %3035 = vmatprep.subr.mxu0 0.0
        %3036 = vmatpush1.msra.mxu0 %v2685
        %3037 = vmatprep.subr.mxu0 0.0
        %3038 = vmatpush1.msra.mxu0 %v2686
        %3039 = vmatprep.subr.mxu0 0.0
        %3040 = vmatpush1.msra.mxu0 %v2687
        %3041 = vmatprep.subr.mxu0 0.0
        %3042 = vmatpush1.msra.mxu0 %v2688
        %3043 = vmatprep.subr.mxu0 0.0
        %3044 = vmatpush1.msra.mxu0 %v2689
        %3045 = vmatprep.subr.mxu0 0.0
        %3046 = vmatpush1.msra.mxu0 %v2690
        %3047 = vmatprep.subr.mxu0 0.0
        %3048 = vmatpush1.msra.mxu0 %v2691
        %3049 = vmatprep.subr.mxu0 0.0
        %3050 = vmatpush1.msra.mxu0 %v2692
        %3051 = vmatprep.subr.mxu0 0.0
        %3052 = vmatpush1.msra.mxu0 %v2693
        %3053 = vmatprep.subr.mxu0 0.0
        %3054 = vmatpush1.msra.mxu0 %v2694
        %3055 = vmatprep.subr.mxu0 0.0
        %3056 = vmatpush1.msra.mxu0 %v2695
        %3057 = vmatprep.subr.mxu0 0.0
        %3058 = vmatpush1.msra.mxu0 %v2696
        %3059 = vmatprep.subr.mxu0 0.0
        %3060 = vmatpush1.msra.mxu0 %v2697
        %3061 = vmatprep.subr.mxu0 0.0
        %3062 = vmatpush1.msra.mxu0 %v2698
        %3063 = vmatprep.subr.mxu0 0.0
        %3064 = vmatpush1.msra.mxu0 %v2699
        %3065 = vmatprep.mubr.f32.mxu0 %v2583
        %3066 = vmatmul.mubr.f32.gmra.mrb[0].mxu0 %v2581
        %v3067 = vpop.f32.mrb[0].mxu0
        %v3068 = vadd.f32 %v2998, %v3067
        %v3069 = vpop.f32.mrb[0].mxu0
        %3070 = vdwg.mxu0
        %3071 = vmatprep.subr.mxu0 0.0
        %3072 = vmatpush1.msra.mxu0 %v2700
        %3073 = vmatprep.subr.mxu0 0.0
        %3074 = vmatpush1.msra.mxu0 %v2701
        %3075 = vmatprep.subr.mxu0 0.0
        %3076 = vmatpush1.msra.mxu0 %v2702
        %3077 = vmatprep.subr.mxu0 0.0
        %3078 = vmatpush1.msra.mxu0 %v2703
        %3079 = vmatprep.subr.mxu0 0.0
        %3080 = vmatpush1.msra.mxu0 %v2704
        %3081 = vmatprep.subr.mxu0 0.0
        %3082 = vmatpush1.msra.mxu0 %v2705
        %3083 = vmatprep.subr.mxu0 0.0
        %3084 = vmatpush1.msra.mxu0 %v2706
        %3085 = vmatprep.subr.mxu0 0.0
        %3086 = vmatpush1.msra.mxu0 %v2707
        %3087 = vmatprep.subr.mxu0 0.0
        %3088 = vmatpush1.msra.mxu0 %v2708
        %3089 = vmatprep.subr.mxu0 0.0
        %3090 = vmatpush1.msra.mxu0 %v2709
        %3091 = vmatprep.subr.mxu0 0.0
        %3092 = vmatpush1.msra.mxu0 %v2710
        %3093 = vmatprep.subr.mxu0 0.0
        %3094 = vmatpush1.msra.mxu0 %v2711
        %3095 = vmatprep.subr.mxu0 0.0
        %3096 = vmatpush1.msra.mxu0 %v2712
        %3097 = vmatprep.subr.mxu0 0.0
        %3098 = vmatpush1.msra.mxu0 %v2713
        %3099 = vmatprep.subr.mxu0 0.0
        %3100 = vmatpush1.msra.mxu0 %v2714
        %3101 = vmatprep.subr.mxu0 0.0
        %3102 = vmatpush1.msra.mxu0 %v2715
        %3103 = vmatprep.subr.mxu0 0.0
        %3104 = vmatpush1.msra.mxu0 %v2716
        %3105 = vmatprep.subr.mxu0 0.0
        %3106 = vmatpush1.msra.mxu0 %v2717
        %3107 = vmatprep.subr.mxu0 0.0
        %3108 = vmatpush1.msra.mxu0 %v2718
        %3109 = vmatprep.subr.mxu0 0.0
        %3110 = vmatpush1.msra.mxu0 %v2719
        %3111 = vmatprep.subr.mxu0 0.0
        %3112 = vmatpush1.msra.mxu0 %v2720
        %3113 = vmatprep.subr.mxu0 0.0
        %3114 = vmatpush1.msra.mxu0 %v2721
        %3115 = vmatprep.subr.mxu0 0.0
        %3116 = vmatpush1.msra.mxu0 %v2722
        %3117 = vmatprep.subr.mxu0 0.0
        %3118 = vmatpush1.msra.mxu0 %v2723
        %3119 = vmatprep.subr.mxu0 0.0
        %3120 = vmatpush1.msra.mxu0 %v2724
        %3121 = vmatprep.subr.mxu0 0.0
        %3122 = vmatpush1.msra.mxu0 %v2725
        %3123 = vmatprep.subr.mxu0 0.0
        %3124 = vmatpush1.msra.mxu0 %v2726
        %3125 = vmatprep.subr.mxu0 0.0
        %3126 = vmatpush1.msra.mxu0 %v2727
        %3127 = vmatprep.subr.mxu0 0.0
        %3128 = vmatpush1.msra.mxu0 %v2728
        %3129 = vmatprep.subr.mxu0 0.0
        %3130 = vmatpush1.msra.mxu0 %v2729
        %3131 = vmatprep.subr.mxu0 0.0
        %3132 = vmatpush1.msra.mxu0 %v2730
        %3133 = vmatprep.subr.mxu0 0.0
        %3134 = vmatpush1.msra.mxu0 %v2731
        %3135 = vmatprep.mubr.f32.mxu0 %v2587
        %3136 = vmatmul.mubr.f32.gmra.mrb[0].mxu0 %v2585
        %v3137 = vpop.f32.mrb[0].mxu0
        %v3138 = vadd.f32 %v3068, %v3137
        %v3139 = vpop.f32.mrb[0].mxu0
        %3140 = vdwg.mxu0
        %3141 = vmatprep.subr.mxu0 0.0
        %3142 = vmatpush1.msra.mxu0 %v2732
        %3143 = vmatprep.subr.mxu0 0.0
        %3144 = vmatpush1.msra.mxu0 %v2733
        %3145 = vmatprep.subr.mxu0 0.0
        %3146 = vmatpush1.msra.mxu0 %v2734
        %3147 = vmatprep.subr.mxu0 0.0
        %3148 = vmatpush1.msra.mxu0 %v2735
        %3149 = vmatprep.subr.mxu0 0.0
        %3150 = vmatpush1.msra.mxu0 %v2736
        %3151 = vmatprep.subr.mxu0 0.0
        %3152 = vmatpush1.msra.mxu0 %v2737
        %3153 = vmatprep.subr.mxu0 0.0
        %3154 = vmatpush1.msra.mxu0 %v2738
        %3155 = vmatprep.subr.mxu0 0.0
        %3156 = vmatpush1.msra.mxu0 %v2739
        %3157 = vmatprep.subr.mxu0 0.0
        %3158 = vmatpush1.msra.mxu0 %v2740
        %3159 = vmatprep.subr.mxu0 0.0
        %3160 = vmatpush1.msra.mxu0 %v2741
        %3161 = vmatprep.subr.mxu0 0.0
        %3162 = vmatpush1.msra.mxu0 %v2742
        %3163 = vmatprep.subr.mxu0 0.0
        %3164 = vmatpush1.msra.mxu0 %v2743
        %3165 = vmatprep.subr.mxu0 0.0
        %3166 = vmatpush1.msra.mxu0 %v2744
        %3167 = vmatprep.subr.mxu0 0.0
        %3168 = vmatpush1.msra.mxu0 %v2745
        %3169 = vmatprep.subr.mxu0 0.0
        %3170 = vmatpush1.msra.mxu0 %v2746
        %3171 = vmatprep.subr.mxu0 0.0
        %3172 = vmatpush1.msra.mxu0 %v2747
        %3173 = vmatprep.subr.mxu0 0.0
        %3174 = vmatpush1.msra.mxu0 %v2748
        %3175 = vmatprep.subr.mxu0 0.0
        %3176 = vmatpush1.msra.mxu0 %v2749
        %3177 = vmatprep.subr.mxu0 0.0
        %3178 = vmatpush1.msra.mxu0 %v2750
        %3179 = vmatprep.subr.mxu0 0.0
        %3180 = vmatpush1.msra.mxu0 %v2751
        %3181 = vmatprep.subr.mxu0 0.0
        %3182 = vmatpush1.msra.mxu0 %v2752
        %3183 = vmatprep.subr.mxu0 0.0
        %3184 = vmatpush1.msra.mxu0 %v2753
        %3185 = vmatprep.subr.mxu0 0.0
        %3186 = vmatpush1.msra.mxu0 %v2754
        %3187 = vmatprep.subr.mxu0 0.0
        %3188 = vmatpush1.msra.mxu0 %v2755
        %3189 = vmatprep.subr.mxu0 0.0
        %3190 = vmatpush1.msra.mxu0 %v2756
        %3191 = vmatprep.subr.mxu0 0.0
        %3192 = vmatpush1.msra.mxu0 %v2757
        %3193 = vmatprep.subr.mxu0 0.0
        %3194 = vmatpush1.msra.mxu0 %v2758
        %3195 = vmatprep.subr.mxu0 0.0
        %3196 = vmatpush1.msra.mxu0 %v2759
        %3197 = vmatprep.subr.mxu0 0.0
        %3198 = vmatpush1.msra.mxu0 %v2760
        %3199 = vmatprep.subr.mxu0 0.0
        %3200 = vmatpush1.msra.mxu0 %v2761
        %3201 = vmatprep.subr.mxu0 0.0
        %3202 = vmatpush1.msra.mxu0 %v2762
        %3203 = vmatprep.subr.mxu0 0.0
        %3204 = vmatpush1.msra.mxu0 %v2763
        %3205 = vmatprep.mubr.f32.mxu0 %v2590
        %3206 = vmatmul.mubr.f32.gmra.mrb[0].mxu0 %v2573
        %v3207 = vpop.f32.mrb[0].mxu0
        %v3208 = vadd.f32 %v3138, %v3207
        %v3209 = vpop.f32.mrb[0].mxu0
        %3210 = vdwg.mxu0
        %3211 = vmatprep.subr.mxu0 0.0
        %3212 = vmatpush1.msra.mxu0 %v2764
        %3213 = vmatprep.subr.mxu0 0.0
        %3214 = vmatpush1.msra.mxu0 %v2765
        %3215 = vmatprep.subr.mxu0 0.0
        %3216 = vmatpush1.msra.mxu0 %v2766
        %3217 = vmatprep.subr.mxu0 0.0
        %3218 = vmatpush1.msra.mxu0 %v2767
        %3219 = vmatprep.subr.mxu0 0.0
        %3220 = vmatpush1.msra.mxu0 %v2768
        %3221 = vmatprep.subr.mxu0 0.0
        %3222 = vmatpush1.msra.mxu0 %v2769
        %3223 = vmatprep.subr.mxu0 0.0
        %3224 = vmatpush1.msra.mxu0 %v2770
        %3225 = vmatprep.subr.mxu0 0.0
        %3226 = vmatpush1.msra.mxu0 %v2771
        %3227 = vmatprep.subr.mxu0 0.0
        %3228 = vmatpush1.msra.mxu0 %v2772
        %3229 = vmatprep.subr.mxu0 0.0
        %3230 = vmatpush1.msra.mxu0 %v2773
        %3231 = vmatprep.subr.mxu0 0.0
        %3232 = vmatpush1.msra.mxu0 %v2774
        %3233 = vmatprep.subr.mxu0 0.0
        %3234 = vmatpush1.msra.mxu0 %v2775
        %3235 = vmatprep.subr.mxu0 0.0
        %3236 = vmatpush1.msra.mxu0 %v2776
        %3237 = vmatprep.subr.mxu0 0.0
        %3238 = vmatpush1.msra.mxu0 %v2777
        %3239 = vmatprep.subr.mxu0 0.0
        %3240 = vmatpush1.msra.mxu0 %v2778
        %3241 = vmatprep.subr.mxu0 0.0
        %3242 = vmatpush1.msra.mxu0 %v2779
        %3243 = vmatprep.subr.mxu0 0.0
        %3244 = vmatpush1.msra.mxu0 %v2780
        %3245 = vmatprep.subr.mxu0 0.0
        %3246 = vmatpush1.msra.mxu0 %v2781
        %3247 = vmatprep.subr.mxu0 0.0
        %3248 = vmatpush1.msra.mxu0 %v2782
        %3249 = vmatprep.subr.mxu0 0.0
        %3250 = vmatpush1.msra.mxu0 %v2783
        %3251 = vmatprep.subr.mxu0 0.0
        %3252 = vmatpush1.msra.mxu0 %v2784
        %3253 = vmatprep.subr.mxu0 0.0
        %3254 = vmatpush1.msra.mxu0 %v2785
        %3255 = vmatprep.subr.mxu0 0.0
        %3256 = vmatpush1.msra.mxu0 %v2786
        %3257 = vmatprep.subr.mxu0 0.0
        %3258 = vmatpush1.msra.mxu0 %v2787
        %3259 = vmatprep.subr.mxu0 0.0
        %3260 = vmatpush1.msra.mxu0 %v2788
        %3261 = vmatprep.subr.mxu0 0.0
        %3262 = vmatpush1.msra.mxu0 %v2789
        %3263 = vmatprep.subr.mxu0 0.0
        %3264 = vmatpush1.msra.mxu0 %v2790
        %3265 = vmatprep.subr.mxu0 0.0
        %3266 = vmatpush1.msra.mxu0 %v2791
        %3267 = vmatprep.subr.mxu0 0.0
        %3268 = vmatpush1.msra.mxu0 %v2792
        %3269 = vmatprep.subr.mxu0 0.0
        %3270 = vmatpush1.msra.mxu0 %v2793
        %3271 = vmatprep.subr.mxu0 0.0
        %3272 = vmatpush1.msra.mxu0 %v2794
        %3273 = vmatprep.subr.mxu0 0.0
        %3274 = vmatpush1.msra.mxu0 %v2795
        %3275 = vmatprep.mubr.f32.mxu0 %v2594
        %3276 = vmatmul.mubr.f32.gmra.mrb[0].mxu0 %v2592
        %v3277 = vpop.f32.mrb[0].mxu0
        %v3278 = vadd.f32 %v3208, %v3277
        %v3279 = vpop.f32.mrb[0].mxu0
        %3280 = vdwg.mxu0
        %3281 = vmatprep.subr.mxu0 0.0
        %3282 = vmatpush1.msra.mxu0 %v2796
        %3283 = vmatprep.subr.mxu0 0.0
        %3284 = vmatpush1.msra.mxu0 %v2797
        %3285 = vmatprep.subr.mxu0 0.0
        %3286 = vmatpush1.msra.mxu0 %v2798
        %3287 = vmatprep.subr.mxu0 0.0
        %3288 = vmatpush1.msra.mxu0 %v2799
        %3289 = vmatprep.subr.mxu0 0.0
        %3290 = vmatpush1.msra.mxu0 %v2800
        %3291 = vmatprep.subr.mxu0 0.0
        %3292 = vmatpush1.msra.mxu0 %v2801
        %3293 = vmatprep.subr.mxu0 0.0
        %3294 = vmatpush1.msra.mxu0 %v2802
        %3295 = vmatprep.subr.mxu0 0.0
        %3296 = vmatpush1.msra.mxu0 %v2803
        %3297 = vmatprep.subr.mxu0 0.0
        %3298 = vmatpush1.msra.mxu0 %v2804
        %3299 = vmatprep.subr.mxu0 0.0
        %3300 = vmatpush1.msra.mxu0 %v2805
        %3301 = vmatprep.subr.mxu0 0.0
        %3302 = vmatpush1.msra.mxu0 %v2806
        %3303 = vmatprep.subr.mxu0 0.0
        %3304 = vmatpush1.msra.mxu0 %v2807
        %3305 = vmatprep.subr.mxu0 0.0
        %3306 = vmatpush1.msra.mxu0 %v2808
        %3307 = vmatprep.subr.mxu0 0.0
        %3308 = vmatpush1.msra.mxu0 %v2809
        %3309 = vmatprep.subr.mxu0 0.0
        %3310 = vmatpush1.msra.mxu0 %v2810
        %3311 = vmatprep.subr.mxu0 0.0
        %3312 = vmatpush1.msra.mxu0 %v2811
        %3313 = vmatprep.subr.mxu0 0.0
        %3314 = vmatpush1.msra.mxu0 %v2812
        %3315 = vmatprep.subr.mxu0 0.0
        %3316 = vmatpush1.msra.mxu0 %v2813
        %3317 = vmatprep.subr.mxu0 0.0
        %3318 = vmatpush1.msra.mxu0 %v2814
        %3319 = vmatprep.subr.mxu0 0.0
        %3320 = vmatpush1.msra.mxu0 %v2815
        %3321 = vmatprep.subr.mxu0 0.0
        %3322 = vmatpush1.msra.mxu0 %v2816
        %3323 = vmatprep.subr.mxu0 0.0
        %3324 = vmatpush1.msra.mxu0 %v2817
        %3325 = vmatprep.subr.mxu0 0.0
        %3326 = vmatpush1.msra.mxu0 %v2818
        %3327 = vmatprep.subr.mxu0 0.0
        %3328 = vmatpush1.msra.mxu0 %v2819
        %3329 = vmatprep.subr.mxu0 0.0
        %3330 = vmatpush1.msra.mxu0 %v2820
        %3331 = vmatprep.subr.mxu0 0.0
        %3332 = vmatpush1.msra.mxu0 %v2821
        %3333 = vmatprep.subr.mxu0 0.0
        %3334 = vmatpush1.msra.mxu0 %v2822
        %3335 = vmatprep.subr.mxu0 0.0
        %3336 = vmatpush1.msra.mxu0 %v2823
        %3337 = vmatprep.subr.mxu0 0.0
        %3338 = vmatpush1.msra.mxu0 %v2824
        %3339 = vmatprep.subr.mxu0 0.0
        %3340 = vmatpush1.msra.mxu0 %v2825
        %3341 = vmatprep.subr.mxu0 0.0
        %3342 = vmatpush1.msra.mxu0 %v2826
        %3343 = vmatprep.subr.mxu0 0.0
        %3344 = vmatpush1.msra.mxu0 %v2827
        %3345 = vmatprep.mubr.f32.mxu0 %v2598
        %3346 = vmatmul.mubr.f32.gmra.mrb[0].mxu0 %v2596
        %v3347 = vpop.f32.mrb[0].mxu0
        %v3348 = vadd.f32 %v3278, %v3347
        %v3349 = vpop.f32.mrb[0].mxu0
        %3350 = vdwg.mxu0
        %3351 = vmatprep.subr.mxu0 0.0
        %3352 = vmatpush1.msra.mxu0 %v2828
        %3353 = vmatprep.subr.mxu0 0.0
        %3354 = vmatpush1.msra.mxu0 %v2829
        %3355 = vmatprep.subr.mxu0 0.0
        %3356 = vmatpush1.msra.mxu0 %v2830
        %3357 = vmatprep.subr.mxu0 0.0
        %3358 = vmatpush1.msra.mxu0 %v2831
        %3359 = vmatprep.subr.mxu0 0.0
        %3360 = vmatpush1.msra.mxu0 %v2832
        %3361 = vmatprep.subr.mxu0 0.0
        %3362 = vmatpush1.msra.mxu0 %v2833
        %3363 = vmatprep.subr.mxu0 0.0
        %3364 = vmatpush1.msra.mxu0 %v2834
        %3365 = vmatprep.subr.mxu0 0.0
        %3366 = vmatpush1.msra.mxu0 %v2835
        %3367 = vmatprep.subr.mxu0 0.0
        %3368 = vmatpush1.msra.mxu0 %v2836
        %3369 = vmatprep.subr.mxu0 0.0
        %3370 = vmatpush1.msra.mxu0 %v2837
        %3371 = vmatprep.subr.mxu0 0.0
        %3372 = vmatpush1.msra.mxu0 %v2838
        %3373 = vmatprep.subr.mxu0 0.0
        %3374 = vmatpush1.msra.mxu0 %v2839
        %3375 = vmatprep.subr.mxu0 0.0
        %3376 = vmatpush1.msra.mxu0 %v2840
        %3377 = vmatprep.subr.mxu0 0.0
        %3378 = vmatpush1.msra.mxu0 %v2841
        %3379 = vmatprep.subr.mxu0 0.0
        %3380 = vmatpush1.msra.mxu0 %v2842
        %3381 = vmatprep.subr.mxu0 0.0
        %3382 = vmatpush1.msra.mxu0 %v2843
        %3383 = vmatprep.subr.mxu0 0.0
        %3384 = vmatpush1.msra.mxu0 %v2844
        %3385 = vmatprep.subr.mxu0 0.0
        %3386 = vmatpush1.msra.mxu0 %v2845
        %3387 = vmatprep.subr.mxu0 0.0
        %3388 = vmatpush1.msra.mxu0 %v2846
        %3389 = vmatprep.subr.mxu0 0.0
        %3390 = vmatpush1.msra.mxu0 %v2847
        %3391 = vmatprep.subr.mxu0 0.0
        %3392 = vmatpush1.msra.mxu0 %v2848
        %3393 = vmatprep.subr.mxu0 0.0
        %3394 = vmatpush1.msra.mxu0 %v2849
        %3395 = vmatprep.subr.mxu0 0.0
        %3396 = vmatpush1.msra.mxu0 %v2850
        %3397 = vmatprep.subr.mxu0 0.0
        %3398 = vmatpush1.msra.mxu0 %v2851
        %3399 = vmatprep.subr.mxu0 0.0
        %3400 = vmatpush1.msra.mxu0 %v2852
        %3401 = vmatprep.subr.mxu0 0.0
        %3402 = vmatpush1.msra.mxu0 %v2853
        %3403 = vmatprep.subr.mxu0 0.0
        %3404 = vmatpush1.msra.mxu0 %v2854
        %3405 = vmatprep.subr.mxu0 0.0
        %3406 = vmatpush1.msra.mxu0 %v2855
        %3407 = vmatprep.subr.mxu0 0.0
        %3408 = vmatpush1.msra.mxu0 %v2856
        %3409 = vmatprep.subr.mxu0 0.0
        %3410 = vmatpush1.msra.mxu0 %v2857
        %3411 = vmatprep.subr.mxu0 0.0
        %3412 = vmatpush1.msra.mxu0 %v2858
        %3413 = vmatprep.subr.mxu0 0.0
        %3414 = vmatpush1.msra.mxu0 %v2859
        %3415 = vmatprep.mubr.f32.mxu0 %v2602
        %3416 = vmatmul.mubr.f32.gmra.mrb[0].mxu0 %v2600
        %v3417 = vpop.f32.mrb[0].mxu0
        %v3418 = vadd.f32 %v3348, %v3417
        %v3419 = vpop.f32.mrb[0].mxu0
        %3420 = vdwg.mxu0
        %v3421 = vmul.f32 %v3418, 0.5
        %v3422 = vmul.f32 %v3418, 0.70710677
        %v3423 = verf.f32.pop %v3422
        %v3424 = vadd.f32 %v3423, 1.0
        %v3425 = vmul.f32 %v3421, %v3424
        %v3426 = vld [vmem:[%s14] sm:$0xff]
        %v3427 = vld [vmem:[%s14 + $0x8] sm:$0xff]
        %v3428 = vld [vmem:[%s14 + $0x10] sm:$0xff]
        %v3429 = vld [vmem:[%s15] sm:$0x1]
        %vm3430 = vcmask 195584
        %v3432 = vsel %vm3430, %v3425, 0
        %3434 = vmatprep.subr.mxu0 0.0
        %3435 = vmatpush1.msra.mxu0 %v3426
        %3436 = vmatprep.subr.mxu0 0.0
        %3437 = vmatpush1.msra.mxu0 %v3427
        %3438 = vmatprep.subr.mxu0 0.0
        %3439 = vmatpush1.msra.mxu0 %v3428
        %3440 = vmatprep.subr.mxu0 0.0
        %3441 = vmatpush1.msra.mxu0 0.0
        %3442 = vmatprep.subr.mxu0 0.0
        %3443 = vmatpush1.msra.mxu0 0.0
        %3444 = vmatprep.subr.mxu0 0.0
        %3445 = vmatpush1.msra.mxu0 0.0
        %3446 = vmatprep.subr.mxu0 0.0
        %3447 = vmatpush1.msra.mxu0 0.0
        %3448 = vmatprep.subr.mxu0 0.0
        %3449 = vmatpush1.msra.mxu0 0.0
        %3450 = vmatprep.subr.mxu0 0.0
        %3451 = vmatpush1.msra.mxu0 0.0
        %3452 = vmatprep.subr.mxu0 0.0
        %3453 = vmatpush1.msra.mxu0 0.0
        %3454 = vmatprep.subr.mxu0 0.0
        %3455 = vmatpush1.msra.mxu0 0.0
        %3456 = vmatprep.subr.mxu0 0.0
        %3457 = vmatpush1.msra.mxu0 0.0
        %3458 = vmatprep.subr.mxu0 0.0
        %3459 = vmatpush1.msra.mxu0 0.0
        %3460 = vmatprep.subr.mxu0 0.0
        %3461 = vmatpush1.msra.mxu0 0.0
        %3462 = vmatprep.subr.mxu0 0.0
        %3463 = vmatpush1.msra.mxu0 0.0
        %3464 = vmatprep.subr.mxu0 0.0
        %3465 = vmatpush1.msra.mxu0 0.0
        %3466 = vmatprep.subr.mxu0 0.0
        %3467 = vmatpush1.msra.mxu0 0.0
        %3468 = vmatprep.subr.mxu0 0.0
        %3469 = vmatpush1.msra.mxu0 0.0
        %3470 = vmatprep.subr.mxu0 0.0
        %3471 = vmatpush1.msra.mxu0 0.0
        %3472 = vmatprep.subr.mxu0 0.0
        %3473 = vmatpush1.msra.mxu0 0.0
        %3474 = vmatprep.subr.mxu0 0.0
        %3475 = vmatpush1.msra.mxu0 0.0
        %3476 = vmatprep.subr.mxu0 0.0
        %3477 = vmatpush1.msra.mxu0 0.0
        %3478 = vmatprep.subr.mxu0 0.0
        %3479 = vmatpush1.msra.mxu0 0.0
        %3480 = vmatprep.subr.mxu0 0.0
        %3481 = vmatpush1.msra.mxu0 0.0
        %3482 = vmatprep.subr.mxu0 0.0
        %3483 = vmatpush1.msra.mxu0 0.0
        %3484 = vmatprep.subr.mxu0 0.0
        %3485 = vmatpush1.msra.mxu0 0.0
        %3486 = vmatprep.subr.mxu0 0.0
        %3487 = vmatpush1.msra.mxu0 0.0
        %3488 = vmatprep.subr.mxu0 0.0
        %3489 = vmatpush1.msra.mxu0 0.0
        %3490 = vmatprep.subr.mxu0 0.0
        %3491 = vmatpush1.msra.mxu0 0.0
        %3492 = vmatprep.subr.mxu0 0.0
        %3493 = vmatpush1.msra.mxu0 0.0
        %3494 = vmatprep.subr.mxu0 0.0
        %3495 = vmatpush1.msra.mxu0 0.0
        %3496 = vmatprep.subr.mxu0 0.0
        %3497 = vmatpush1.msra.mxu0 0.0
        %3498 = vmatprep.mubr.f32.mxu0 0.0
        %3499 = vmatmul.mubr.f32.gmra.mrb[0].mxu0 %v3432
        %v3500 = vpop.f32.mrb[0].mxu0
        %v3501 = vadd.f32 %v3429, %v3500
        %v3502 = vpop.f32.mrb[0].mxu0
        %3503 = vdwg.mxu0
        %vm3504 = vcmask 73728
        %v3505 = vsel %vm3504, %v3501, -inf
        %3506 = vmax.xlane.f32.xlu0 %v3505
        %v3507 = vpop.xlane.xlu0 %3506
        %v3508 = vsub.f32 %v3501, %v3507
        %v3509 = vmul.f32 %v3508, 1.442695
        %v3510 = vpow.pop %v3509
        %v3511 = vsel %vm3504, %v3510, 0.0
        %3512 = vadd.xlane.f32.xlu0 %v3511
        %v3513 = vpop.xlane.xlu0 %3512
        %v3514 = vlog2.pop %v3513
        %v3515 = vmul.f32 %v3514, 0.6931472
        %v3516 = vadd.f32 %v3515, %v3507
        %v3517 = vsub.f32 %v3501, %v3516
        %3518 = vst.msk [vmem:[%s511] sm:$0x1] %vm3504, %v3517
        %s3519 = sand.u32 %s379, 1
        %s3520 = scalar_lea.sflag [#allocation3], %s3519
        %s3521 = sand.u32 %s379, 1
        %s3522 = scalar_lea.vmem [#allocation2], %s3521
        // Predicated region
        $region85: #{mnist_forward.1} parent=83 // pred_check
          %p3523 = pneg %p389
        $region86: #{mnist_forward.1} parent=83 // pred_check_branch
          %3525 = sbr.rel (%p3523) target = $region88
        $region87: #{mnist_forward.1} parent=83 // pred_region
          %s3527 = ssub.s32 16, 16
          %3528 = vsyncadd %s3520, %s3527
          %s3529 = smul.addr %s30, 16
          %s3530 = scalar_lea.hbm %s16, %s3529
          %s3532 = sshll.u32 %s3522, 4
          %s3533 = int_to_ptr.vmem [resolvable:$true] %s3532
          %3535 = dma.vmem_to_hbm [thread:$0]  %s3533, 16, %s3530, %s3520
        $region88: #{mnist_forward.1} parent=83 // pred_fallthru
          _
      $region84: #{mnist_forward.1} parent=5 // pred_fallthru
        _
      %p3536 = scmp.le.s32.totalorder 2, %s25
      // Predicated region
      $region89: #{mnist_forward.1} parent=5 // pred_check
        %p3537 = pneg %p3536
      $region90: #{mnist_forward.1} parent=5 // pred_check_branch
        %3539 = sbr.rel (%p3537) target = $region92
      $region91: #{mnist_forward.1} parent=5 // pred_region
        %s3540 = ssub.s32 %s25, 2
        // Predicated region
        $region93: #{mnist_forward.1} parent=91 // pred_check
          %p3541 = pneg %p395
        $region94: #{mnist_forward.1} parent=91 // pred_check_branch
          %3543 = sbr.rel (%p3541) target = $region96
        $region95: #{mnist_forward.1} parent=91 // pred_region
          %s3544 = sand.u32 %s380, 1
          %s3545 = scalar_lea.sflag [#allocation3], %s3544
          %s3546 = sand.u32 %s380, 1
          %s3547 = scalar_lea.vmem [#allocation2], %s3546
          %3548 = dma.done %s3545, 16
        $region96: #{mnist_forward.1} parent=91 // pred_fallthru
          _
      $region92: #{mnist_forward.1} parent=5 // pred_fallthru
        _
    $region6: #{mnist_forward.1} parent=1 // loop_footer
      %s29 = sadd.s32 1, %s25
    $region7: #{mnist_forward.1} parent=1 // loop_footer_branch
      %24 = sbr.rel target = $region3
    $region8: #{mnist_forward.1} parent=1 // loop_exit
      _
    %3549 = vsyncpa [#allocation3], 1
    %s3550 = scalar_lea.sflag [#allocation3], 1
    %3551 = vsyncpa %s3550, 1

</llo_original>
